<compile_context>
chip_gen: v6e
topology: v6e:2x2x1
jax: 0.10.0
libtpu: 0.0.40
codegen_flags: <defaults>
</compile_context>

<pallas_src>
import functools

import jax
import jax.numpy as jnp
from jax.experimental import pallas as pl
from jax.experimental.pallas import tpu as pltpu

KSIZE = 7
PAD = KSIZE // 2
LANE = 128
SUBLANE = 8


def _round_up(x, m):
    return (x + m - 1) // m * m


def _sa_kernel(x_ref, w_ref, o_ref, pad_ref, *, nb, c_in, h, w, wp_out):
    """One grid step processes NB images.

    x_ref  : (NB, C, H, W)       VMEM input block
    w_ref  : (2*K*K,)            SMEM flattened conv weight, layout [in_ch, kh, kw]
    o_ref  : (NB, 1, H, WP_OUT)  VMEM lane-dense (padded-width) output block
    pad_ref: (NB, 2, HP, WS)     VMEM scratch: zero-padded [avg, max] maps
    """
    inv_c = jnp.float32(1.0 / c_in)

    # Zero the padded scratch each step: keeps the conv halo at zero and is
    # cheap; safe no matter how the parallel grid axis is split across cores.
    pad_ref[...] = jnp.zeros(pad_ref.shape, pad_ref.dtype)

    for b in range(nb):
        # ---- fused channel sum/max reduction: single pass over x ----
        ch = x_ref[b, 0].astype(jnp.float32)              # (H, W)
        s = ch
        m = ch
        for c in range(1, c_in):
            ch = x_ref[b, c].astype(jnp.float32)
            s = s + ch
            m = jnp.maximum(m, ch)
        # Write avg / max into the interior of the zero-padded scratch.
        pad_ref[b, 0, PAD:PAD + h, PAD:PAD + w] = s * inv_c
        pad_ref[b, 1, PAD:PAD + h, PAD:PAD + w] = m

        # ---- 7x7 conv: lane (kx) shifts hoisted out of the ky loop ----
        acc = jnp.zeros((h, wp_out), jnp.float32)
        for c in range(2):
            for kx in range(KSIZE):
                # Single lane-offset read per (channel, kx): (HP, WP_OUT).
                col = pad_ref[b, c, :, kx:kx + wp_out]
                for ky in range(KSIZE):
                    wv = w_ref[c * KSIZE * KSIZE + ky * KSIZE + kx]
                    acc = acc + col[ky:ky + h, :] * wv

        # Full-lane-width store; columns >= W are garbage and sliced off
        # in the wrapper.
        o_ref[b, 0] = jax.nn.sigmoid(acc).astype(o_ref.dtype)


def spatial_attention(x, weight, *, batch_block=None):
    """x: (N, C, H, W); weight: (1, 2, K, K) OIHW, bias-free. Returns (N, 1, H, W)."""
    n, c, h, w = x.shape
    assert weight.shape == (1, 2, KSIZE, KSIZE)

    wp_out = _round_up(w, LANE)              # lane-dense output width
    ws = wp_out + LANE                       # scratch width: room for +6 halo reads
    hp = _round_up(h + 2 * PAD, SUBLANE)

    # ---- pick images-per-block: big blocks amortize per-step overhead, but
    # keep grid length >= 2 (v7x has 2 TensorCores) and stay inside VMEM. ----
    bytes_per_img = (2 * c * h * w * 4           # double-buffered input block
                     + 2 * hp * ws * 4           # padded scratch ([avg, max])
                     + 2 * h * wp_out * 4)       # double-buffered output block
    vmem_budget = 24 * 1024 * 1024               # conservative (fits v7x's 64 MiB)
    nb_cap = max(1, vmem_budget // max(bytes_per_img, 1))
    if batch_block is None:
        divisors = [d for d in range(1, n + 1) if n % d == 0 and d <= nb_cap]
        prefer = [d for d in divisors if n // d >= 2] or divisors
        nb = max(prefer)
    else:
        nb = batch_block
    assert n % nb == 0

    w_flat = weight.reshape(-1).astype(jnp.float32)      # (2*K*K,) -> SMEM

    kernel = functools.partial(_sa_kernel, nb=nb, c_in=c, h=h, w=w, wp_out=wp_out)

    cost = pl.CostEstimate(
        flops=n * h * w * (2 * c + 4 * KSIZE * KSIZE),
        transcendentals=n * h * w,
        bytes_accessed=n * c * h * w * 4 + n * h * wp_out * 4 + 2 * KSIZE * KSIZE * 4,
    )

    out_padded = pl.pallas_call(
        kernel,
        out_shape=jax.ShapeDtypeStruct((n, 1, h, wp_out), x.dtype),
        grid=(n // nb,),
        in_specs=[
            pl.BlockSpec((nb, c, h, w), lambda i: (i, 0, 0, 0)),
            pl.BlockSpec(memory_space=pltpu.MemorySpace.SMEM),
        ],
        out_specs=pl.BlockSpec((nb, 1, h, wp_out), lambda i: (i, 0, 0, 0)),
        scratch_shapes=[pltpu.VMEM((nb, 2, hp, ws), jnp.float32)],
        compiler_params=pltpu.CompilerParams(
            dimension_semantics=("parallel",),
            vmem_limit_bytes=64 * 1024 * 1024,
        ),
        cost_estimate=cost,
    )(x, w_flat)

    # Drop the lane-padding columns outside the kernel (cheap XLA slice).
    return out_padded[:, :, :, :w]


def spatial_attention_ref(x, weight):
    """Pure-JAX reference mirroring the PyTorch module."""
    avg = jnp.mean(x, axis=1, keepdims=True)
    mx = jnp.max(x, axis=1, keepdims=True)
    cat = jnp.concatenate([avg, mx], axis=1)
    out = jax.lax.conv_general_dilated(
        cat, weight, window_strides=(1, 1),
        padding=[(PAD, PAD), (PAD, PAD)],
        dimension_numbers=("NCHW", "OIHW", "NCHW"))
    return jax.nn.sigmoid(out)


if __name__ == "__main__":
    key = jax.random.PRNGKey(0)
    k_x, k_w = jax.random.split(key)

    N, C, H, W = 2, 4, 16, 16
    x = jax.random.normal(k_x, (N, C, H, W), dtype=jnp.float32)

    # Deterministic conv1 weight (shape (1, 2, 7, 7), bias=False), mimicking
    # PyTorch's default uniform(-1/sqrt(fan_in), 1/sqrt(fan_in)) init.
    fan_in = 2 * KSIZE * KSIZE
    bound = 1.0 / (fan_in ** 0.5)
    weight = jax.random.uniform(k_w, (1, 2, KSIZE, KSIZE),
                                minval=-bound, maxval=bound, dtype=jnp.float32)

    out = spatial_attention(x, weight)
    out = jax.block_until_ready(out)

    ref = spatial_attention_ref(x, weight)
    assert out.shape == (N, 1, H, W)
    assert jnp.allclose(out, ref, atol=1e-5, rtol=1e-5), \
        float(jnp.max(jnp.abs(out - ref)))

    print("KERNEL_OK")
</pallas_src>

<mosaic_0001>
module attributes {stable_mosaic.version = 11 : i64} {
  func.func @_sa_kernel(%arg0: i32, %arg1: memref<1x4x16x16xf32, #tpu.memory_space<vmem>>, %arg2: memref<98xf32, #tpu.memory_space<smem>>, %arg3: memref<1x1x16x128xf32, #tpu.memory_space<vmem>>, %arg4: memref<1x2x24x256xf32, #tpu.memory_space<vmem>>) attributes {dimension_semantics = [#tpu.dimension_semantics<parallel>], iteration_bounds = array<i64: 2>, scalar_prefetch = 0 : i64, scratch_operands = 1 : i64, tpu.core_type = #tpu.core_type<tc>, window_params = [{transform_indices = @transform_0, window_bounds = array<i64: 1, 4, 16, 16>}, {transform_indices = @transform_1, window_bounds = array<i64: 98>}, {transform_indices = @transform_2, window_bounds = array<i64: 1, 1, 16, 128>}]} {
    %cst = arith.constant 0.000000e+00 : f32
    %0 = vector.broadcast %cst : f32 to vector<1x2x24x256xf32>
    %c0 = arith.constant 0 : index
    %c0_0 = arith.constant 0 : index
    %c0_1 = arith.constant 0 : index
    %c0_2 = arith.constant 0 : index
    %1 = vector.load %arg4[%c0, %c0_0, %c0_1, %c0_2] : memref<1x2x24x256xf32, #tpu.memory_space<vmem>>, vector<1x2x24x256xf32>
    tpu.vector_store %arg4[%c0, %c0_0, %c0_1, %c0_2], %0 {strides = array<i32>} : memref<1x2x24x256xf32, #tpu.memory_space<vmem>>, vector<1x2x24x256xf32>,
    %c0_3 = arith.constant 0 : index
    %c0_4 = arith.constant 0 : index
    %c0_5 = arith.constant 0 : index
    %c0_6 = arith.constant 0 : index
    %2 = vector.load %arg1[%c0_3, %c0_4, %c0_5, %c0_6] : memref<1x4x16x16xf32, #tpu.memory_space<vmem>>, vector<1x1x16x16xf32>
    %3 = vector.shape_cast %2 : vector<1x1x16x16xf32> to vector<16x16xf32>
    %c0_7 = arith.constant 0 : index
    %c1 = arith.constant 1 : index
    %c0_8 = arith.constant 0 : index
    %c0_9 = arith.constant 0 : index
    %4 = vector.load %arg1[%c0_7, %c1, %c0_8, %c0_9] : memref<1x4x16x16xf32, #tpu.memory_space<vmem>>, vector<1x1x16x16xf32>
    %5 = vector.shape_cast %4 : vector<1x1x16x16xf32> to vector<16x16xf32>
    %6 = arith.addf %3, %5 : vector<16x16xf32>
    %7 = arith.maximumf %3, %5 : vector<16x16xf32>
    %c0_10 = arith.constant 0 : index
    %c2 = arith.constant 2 : index
    %c0_11 = arith.constant 0 : index
    %c0_12 = arith.constant 0 : index
    %8 = vector.load %arg1[%c0_10, %c2, %c0_11, %c0_12] : memref<1x4x16x16xf32, #tpu.memory_space<vmem>>, vector<1x1x16x16xf32>
    %9 = vector.shape_cast %8 : vector<1x1x16x16xf32> to vector<16x16xf32>
    %10 = arith.addf %6, %9 : vector<16x16xf32>
    %11 = arith.maximumf %7, %9 : vector<16x16xf32>
    %c0_13 = arith.constant 0 : index
    %c3 = arith.constant 3 : index
    %c0_14 = arith.constant 0 : index
    %c0_15 = arith.constant 0 : index
    %12 = vector.load %arg1[%c0_13, %c3, %c0_14, %c0_15] : memref<1x4x16x16xf32, #tpu.memory_space<vmem>>, vector<1x1x16x16xf32>
    %13 = vector.shape_cast %12 : vector<1x1x16x16xf32> to vector<16x16xf32>
    %14 = arith.addf %10, %13 : vector<16x16xf32>
    %15 = arith.maximumf %11, %13 : vector<16x16xf32>
    %cst_16 = arith.constant 2.500000e-01 : f32
    %16 = vector.broadcast %cst_16 : f32 to vector<16x16xf32>
    %17 = arith.mulf %14, %16 : vector<16x16xf32>
    %c0_17 = arith.constant 0 : index
    %c0_18 = arith.constant 0 : index
    %c3_19 = arith.constant 3 : index
    %c3_20 = arith.constant 3 : index
    %18 = vector.load %arg4[%c0_17, %c0_18, %c3_19, %c3_20] : memref<1x2x24x256xf32, #tpu.memory_space<vmem>>, vector<1x1x16x16xf32>
    %19 = vector.shape_cast %18 : vector<1x1x16x16xf32> to vector<16x16xf32>
    %20 = vector.shape_cast %17 : vector<16x16xf32> to vector<1x1x16x16xf32>
    tpu.vector_store %arg4[%c0_17, %c0_18, %c3_19, %c3_20], %20 {strides = array<i32>} : memref<1x2x24x256xf32, #tpu.memory_space<vmem>>, vector<1x1x16x16xf32>,
    %c0_21 = arith.constant 0 : index
    %c1_22 = arith.constant 1 : index
    %c3_23 = arith.constant 3 : index
    %c3_24 = arith.constant 3 : index
    %21 = vector.load %arg4[%c0_21, %c1_22, %c3_23, %c3_24] : memref<1x2x24x256xf32, #tpu.memory_space<vmem>>, vector<1x1x16x16xf32>
    %22 = vector.shape_cast %21 : vector<1x1x16x16xf32> to vector<16x16xf32>
    %23 = vector.shape_cast %15 : vector<16x16xf32> to vector<1x1x16x16xf32>
    tpu.vector_store %arg4[%c0_21, %c1_22, %c3_23, %c3_24], %23 {strides = array<i32>} : memref<1x2x24x256xf32, #tpu.memory_space<vmem>>, vector<1x1x16x16xf32>,
    %cst_25 = arith.constant 0.000000e+00 : f32
    %24 = vector.broadcast %cst_25 : f32 to vector<16x128xf32>
    %c0_26 = arith.constant 0 : index
    %c0_27 = arith.constant 0 : index
    %c0_28 = arith.constant 0 : index
    %c0_29 = arith.constant 0 : index
    %25 = vector.load %arg4[%c0_26, %c0_27, %c0_28, %c0_29] : memref<1x2x24x256xf32, #tpu.memory_space<vmem>>, vector<1x1x24x128xf32>
    %26 = vector.shape_cast %25 : vector<1x1x24x128xf32> to vector<24x128xf32>
    %c0_30 = arith.constant 0 : index
    %27 = memref.load %arg2[%c0_30] : memref<98xf32, #tpu.memory_space<smem>>
    %28 = vector.extract_strided_slice %26 {offsets = [0, 0], sizes = [16, 128], strides = [1, 1]} : vector<24x128xf32> to vector<16x128xf32>
    %29 = vector.broadcast %27 : f32 to vector<16x128xf32>
    %30 = arith.mulf %28, %29 : vector<16x128xf32>
    %31 = arith.addf %24, %30 : vector<16x128xf32>
    %c7 = arith.constant 7 : index
    %32 = memref.load %arg2[%c7] : memref<98xf32, #tpu.memory_space<smem>>
    %33 = vector.extract_strided_slice %26 {offsets = [1, 0], sizes = [16, 128], strides = [1, 1]} : vector<24x128xf32> to vector<16x128xf32>
    %34 = vector.broadcast %32 : f32 to vector<16x128xf32>
    %35 = arith.mulf %33, %34 : vector<16x128xf32>
    %36 = arith.addf %31, %35 : vector<16x128xf32>
    %c14 = arith.constant 14 : index
    %37 = memref.load %arg2[%c14] : memref<98xf32, #tpu.memory_space<smem>>
    %38 = vector.extract_strided_slice %26 {offsets = [2, 0], sizes = [16, 128], strides = [1, 1]} : vector<24x128xf32> to vector<16x128xf32>
    %39 = vector.broadcast %37 : f32 to vector<16x128xf32>
    %40 = arith.mulf %38, %39 : vector<16x128xf32>
    %41 = arith.addf %36, %40 : vector<16x128xf32>
    %c21 = arith.constant 21 : index
    %42 = memref.load %arg2[%c21] : memref<98xf32, #tpu.memory_space<smem>>
    %43 = vector.extract_strided_slice %26 {offsets = [3, 0], sizes = [16, 128], strides = [1, 1]} : vector<24x128xf32> to vector<16x128xf32>
    %44 = vector.broadcast %42 : f32 to vector<16x128xf32>
    %45 = arith.mulf %43, %44 : vector<16x128xf32>
    %46 = arith.addf %41, %45 : vector<16x128xf32>
    %c28 = arith.constant 28 : index
    %47 = memref.load %arg2[%c28] : memref<98xf32, #tpu.memory_space<smem>>
    %48 = vector.extract_strided_slice %26 {offsets = [4, 0], sizes = [16, 128], strides = [1, 1]} : vector<24x128xf32> to vector<16x128xf32>
    %49 = vector.broadcast %47 : f32 to vector<16x128xf32>
    %50 = arith.mulf %48, %49 : vector<16x128xf32>
    %51 = arith.addf %46, %50 : vector<16x128xf32>
    %c35 = arith.constant 35 : index
    %52 = memref.load %arg2[%c35] : memref<98xf32, #tpu.memory_space<smem>>
    %53 = vector.extract_strided_slice %26 {offsets = [5, 0], sizes = [16, 128], strides = [1, 1]} : vector<24x128xf32> to vector<16x128xf32>
    %54 = vector.broadcast %52 : f32 to vector<16x128xf32>
    %55 = arith.mulf %53, %54 : vector<16x128xf32>
    %56 = arith.addf %51, %55 : vector<16x128xf32>
    %c42 = arith.constant 42 : index
    %57 = memref.load %arg2[%c42] : memref<98xf32, #tpu.memory_space<smem>>
    %58 = vector.extract_strided_slice %26 {offsets = [6, 0], sizes = [16, 128], strides = [1, 1]} : vector<24x128xf32> to vector<16x128xf32>
    %59 = vector.broadcast %57 : f32 to vector<16x128xf32>
    %60 = arith.mulf %58, %59 : vector<16x128xf32>
    %61 = arith.addf %56, %60 : vector<16x128xf32>
    %c0_31 = arith.constant 0 : index
    %c0_32 = arith.constant 0 : index
    %c0_33 = arith.constant 0 : index
    %c1_34 = arith.constant 1 : index
    %62 = vector.load %arg4[%c0_31, %c0_32, %c0_33, %c1_34] : memref<1x2x24x256xf32, #tpu.memory_space<vmem>>, vector<1x1x24x128xf32>
    %63 = vector.shape_cast %62 : vector<1x1x24x128xf32> to vector<24x128xf32>
    %c1_35 = arith.constant 1 : index
    %64 = memref.load %arg2[%c1_35] : memref<98xf32, #tpu.memory_space<smem>>
    %65 = vector.extract_strided_slice %63 {offsets = [0, 0], sizes = [16, 128], strides = [1, 1]} : vector<24x128xf32> to vector<16x128xf32>
    %66 = vector.broadcast %64 : f32 to vector<16x128xf32>
    %67 = arith.mulf %65, %66 : vector<16x128xf32>
    %68 = arith.addf %61, %67 : vector<16x128xf32>
    %c8 = arith.constant 8 : index
    %69 = memref.load %arg2[%c8] : memref<98xf32, #tpu.memory_space<smem>>
    %70 = vector.extract_strided_slice %63 {offsets = [1, 0], sizes = [16, 128], strides = [1, 1]} : vector<24x128xf32> to vector<16x128xf32>
    %71 = vector.broadcast %69 : f32 to vector<16x128xf32>
    %72 = arith.mulf %70, %71 : vector<16x128xf32>
    %73 = arith.addf %68, %72 : vector<16x128xf32>
    %c15 = arith.constant 15 : index
    %74 = memref.load %arg2[%c15] : memref<98xf32, #tpu.memory_space<smem>>
    %75 = vector.extract_strided_slice %63 {offsets = [2, 0], sizes = [16, 128], strides = [1, 1]} : vector<24x128xf32> to vector<16x128xf32>
    %76 = vector.broadcast %74 : f32 to vector<16x128xf32>
    %77 = arith.mulf %75, %76 : vector<16x128xf32>
    %78 = arith.addf %73, %77 : vector<16x128xf32>
    %c22 = arith.constant 22 : index
    %79 = memref.load %arg2[%c22] : memref<98xf32, #tpu.memory_space<smem>>
    %80 = vector.extract_strided_slice %63 {offsets = [3, 0], sizes = [16, 128], strides = [1, 1]} : vector<24x128xf32> to vector<16x128xf32>
    %81 = vector.broadcast %79 : f32 to vector<16x128xf32>
    %82 = arith.mulf %80, %81 : vector<16x128xf32>
    %83 = arith.addf %78, %82 : vector<16x128xf32>
    %c29 = arith.constant 29 : index
    %84 = memref.load %arg2[%c29] : memref<98xf32, #tpu.memory_space<smem>>
    %85 = vector.extract_strided_slice %63 {offsets = [4, 0], sizes = [16, 128], strides = [1, 1]} : vector<24x128xf32> to vector<16x128xf32>
    %86 = vector.broadcast %84 : f32 to vector<16x128xf32>
    %87 = arith.mulf %85, %86 : vector<16x128xf32>
    %88 = arith.addf %83, %87 : vector<16x128xf32>
    %c36 = arith.constant 36 : index
    %89 = memref.load %arg2[%c36] : memref<98xf32, #tpu.memory_space<smem>>
    %90 = vector.extract_strided_slice %63 {offsets = [5, 0], sizes = [16, 128], strides = [1, 1]} : vector<24x128xf32> to vector<16x128xf32>
    %91 = vector.broadcast %89 : f32 to vector<16x128xf32>
    %92 = arith.mulf %90, %91 : vector<16x128xf32>
    %93 = arith.addf %88, %92 : vector<16x128xf32>
    %c43 = arith.constant 43 : index
    %94 = memref.load %arg2[%c43] : memref<98xf32, #tpu.memory_space<smem>>
    %95 = vector.extract_strided_slice %63 {offsets = [6, 0], sizes = [16, 128], strides = [1, 1]} : vector<24x128xf32> to vector<16x128xf32>
    %96 = vector.broadcast %94 : f32 to vector<16x128xf32>
    %97 = arith.mulf %95, %96 : vector<16x128xf32>
    %98 = arith.addf %93, %97 : vector<16x128xf32>
    %c0_36 = arith.constant 0 : index
    %c0_37 = arith.constant 0 : index
    %c0_38 = arith.constant 0 : index
    %c2_39 = arith.constant 2 : index
    %99 = vector.load %arg4[%c0_36, %c0_37, %c0_38, %c2_39] : memref<1x2x24x256xf32, #tpu.memory_space<vmem>>, vector<1x1x24x128xf32>
    %100 = vector.shape_cast %99 : vector<1x1x24x128xf32> to vector<24x128xf32>
    %c2_40 = arith.constant 2 : index
    %101 = memref.load %arg2[%c2_40] : memref<98xf32, #tpu.memory_space<smem>>
    %102 = vector.extract_strided_slice %100 {offsets = [0, 0], sizes = [16, 128], strides = [1, 1]} : vector<24x128xf32> to vector<16x128xf32>
    %103 = vector.broadcast %101 : f32 to vector<16x128xf32>
    %104 = arith.mulf %102, %103 : vector<16x128xf32>
    %105 = arith.addf %98, %104 : vector<16x128xf32>
    %c9 = arith.constant 9 : index
    %106 = memref.load %arg2[%c9] : memref<98xf32, #tpu.memory_space<smem>>
    %107 = vector.extract_strided_slice %100 {offsets = [1, 0], sizes = [16, 128], strides = [1, 1]} : vector<24x128xf32> to vector<16x128xf32>
    %108 = vector.broadcast %106 : f32 to vector<16x128xf32>
    %109 = arith.mulf %107, %108 : vector<16x128xf32>
    %110 = arith.addf %105, %109 : vector<16x128xf32>
    %c16 = arith.constant 16 : index
    %111 = memref.load %arg2[%c16] : memref<98xf32, #tpu.memory_space<smem>>
    %112 = vector.extract_strided_slice %100 {offsets = [2, 0], sizes = [16, 128], strides = [1, 1]} : vector<24x128xf32> to vector<16x128xf32>
    %113 = vector.broadcast %111 : f32 to vector<16x128xf32>
    %114 = arith.mulf %112, %113 : vector<16x128xf32>
    %115 = arith.addf %110, %114 : vector<16x128xf32>
    %c23 = arith.constant 23 : index
    %116 = memref.load %arg2[%c23] : memref<98xf32, #tpu.memory_space<smem>>
    %117 = vector.extract_strided_slice %100 {offsets = [3, 0], sizes = [16, 128], strides = [1, 1]} : vector<24x128xf32> to vector<16x128xf32>
    %118 = vector.broadcast %116 : f32 to vector<16x128xf32>
    %119 = arith.mulf %117, %118 : vector<16x128xf32>
    %120 = arith.addf %115, %119 : vector<16x128xf32>
    %c30 = arith.constant 30 : index
    %121 = memref.load %arg2[%c30] : memref<98xf32, #tpu.memory_space<smem>>
    %122 = vector.extract_strided_slice %100 {offsets = [4, 0], sizes = [16, 128], strides = [1, 1]} : vector<24x128xf32> to vector<16x128xf32>
    %123 = vector.broadcast %121 : f32 to vector<16x128xf32>
    %124 = arith.mulf %122, %123 : vector<16x128xf32>
    %125 = arith.addf %120, %124 : vector<16x128xf32>
    %c37 = arith.constant 37 : index
    %126 = memref.load %arg2[%c37] : memref<98xf32, #tpu.memory_space<smem>>
    %127 = vector.extract_strided_slice %100 {offsets = [5, 0], sizes = [16, 128], strides = [1, 1]} : vector<24x128xf32> to vector<16x128xf32>
    %128 = vector.broadcast %126 : f32 to vector<16x128xf32>
    %129 = arith.mulf %127, %128 : vector<16x128xf32>
    %130 = arith.addf %125, %129 : vector<16x128xf32>
    %c44 = arith.constant 44 : index
    %131 = memref.load %arg2[%c44] : memref<98xf32, #tpu.memory_space<smem>>
    %132 = vector.extract_strided_slice %100 {offsets = [6, 0], sizes = [16, 128], strides = [1, 1]} : vector<24x128xf32> to vector<16x128xf32>
    %133 = vector.broadcast %131 : f32 to vector<16x128xf32>
    %134 = arith.mulf %132, %133 : vector<16x128xf32>
    %135 = arith.addf %130, %134 : vector<16x128xf32>
    %c0_41 = arith.constant 0 : index
    %c0_42 = arith.constant 0 : index
    %c0_43 = arith.constant 0 : index
    %c3_44 = arith.constant 3 : index
    %136 = vector.load %arg4[%c0_41, %c0_42, %c0_43, %c3_44] : memref<1x2x24x256xf32, #tpu.memory_space<vmem>>, vector<1x1x24x128xf32>
    %137 = vector.shape_cast %136 : vector<1x1x24x128xf32> to vector<24x128xf32>
    %c3_45 = arith.constant 3 : index
    %138 = memref.load %arg2[%c3_45] : memref<98xf32, #tpu.memory_space<smem>>
    %139 = vector.extract_strided_slice %137 {offsets = [0, 0], sizes = [16, 128], strides = [1, 1]} : vector<24x128xf32> to vector<16x128xf32>
    %140 = vector.broadcast %138 : f32 to vector<16x128xf32>
    %141 = arith.mulf %139, %140 : vector<16x128xf32>
    %142 = arith.addf %135, %141 : vector<16x128xf32>
    %c10 = arith.constant 10 : index
    %143 = memref.load %arg2[%c10] : memref<98xf32, #tpu.memory_space<smem>>
    %144 = vector.extract_strided_slice %137 {offsets = [1, 0], sizes = [16, 128], strides = [1, 1]} : vector<24x128xf32> to vector<16x128xf32>
    %145 = vector.broadcast %143 : f32 to vector<16x128xf32>
    %146 = arith.mulf %144, %145 : vector<16x128xf32>
    %147 = arith.addf %142, %146 : vector<16x128xf32>
    %c17 = arith.constant 17 : index
    %148 = memref.load %arg2[%c17] : memref<98xf32, #tpu.memory_space<smem>>
    %149 = vector.extract_strided_slice %137 {offsets = [2, 0], sizes = [16, 128], strides = [1, 1]} : vector<24x128xf32> to vector<16x128xf32>
    %150 = vector.broadcast %148 : f32 to vector<16x128xf32>
    %151 = arith.mulf %149, %150 : vector<16x128xf32>
    %152 = arith.addf %147, %151 : vector<16x128xf32>
    %c24 = arith.constant 24 : index
    %153 = memref.load %arg2[%c24] : memref<98xf32, #tpu.memory_space<smem>>
    %154 = vector.extract_strided_slice %137 {offsets = [3, 0], sizes = [16, 128], strides = [1, 1]} : vector<24x128xf32> to vector<16x128xf32>
    %155 = vector.broadcast %153 : f32 to vector<16x128xf32>
    %156 = arith.mulf %154, %155 : vector<16x128xf32>
    %157 = arith.addf %152, %156 : vector<16x128xf32>
    %c31 = arith.constant 31 : index
    %158 = memref.load %arg2[%c31] : memref<98xf32, #tpu.memory_space<smem>>
    %159 = vector.extract_strided_slice %137 {offsets = [4, 0], sizes = [16, 128], strides = [1, 1]} : vector<24x128xf32> to vector<16x128xf32>
    %160 = vector.broadcast %158 : f32 to vector<16x128xf32>
    %161 = arith.mulf %159, %160 : vector<16x128xf32>
    %162 = arith.addf %157, %161 : vector<16x128xf32>
    %c38 = arith.constant 38 : index
    %163 = memref.load %arg2[%c38] : memref<98xf32, #tpu.memory_space<smem>>
    %164 = vector.extract_strided_slice %137 {offsets = [5, 0], sizes = [16, 128], strides = [1, 1]} : vector<24x128xf32> to vector<16x128xf32>
    %165 = vector.broadcast %163 : f32 to vector<16x128xf32>
    %166 = arith.mulf %164, %165 : vector<16x128xf32>
    %167 = arith.addf %162, %166 : vector<16x128xf32>
    %c45 = arith.constant 45 : index
    %168 = memref.load %arg2[%c45] : memref<98xf32, #tpu.memory_space<smem>>
    %169 = vector.extract_strided_slice %137 {offsets = [6, 0], sizes = [16, 128], strides = [1, 1]} : vector<24x128xf32> to vector<16x128xf32>
    %170 = vector.broadcast %168 : f32 to vector<16x128xf32>
    %171 = arith.mulf %169, %170 : vector<16x128xf32>
    %172 = arith.addf %167, %171 : vector<16x128xf32>
    %c0_46 = arith.constant 0 : index
    %c0_47 = arith.constant 0 : index
    %c0_48 = arith.constant 0 : index
    %c4 = arith.constant 4 : index
    %173 = vector.load %arg4[%c0_46, %c0_47, %c0_48, %c4] : memref<1x2x24x256xf32, #tpu.memory_space<vmem>>, vector<1x1x24x128xf32>
    %174 = vector.shape_cast %173 : vector<1x1x24x128xf32> to vector<24x128xf32>
    %c4_49 = arith.constant 4 : index
    %175 = memref.load %arg2[%c4_49] : memref<98xf32, #tpu.memory_space<smem>>
    %176 = vector.extract_strided_slice %174 {offsets = [0, 0], sizes = [16, 128], strides = [1, 1]} : vector<24x128xf32> to vector<16x128xf32>
    %177 = vector.broadcast %175 : f32 to vector<16x128xf32>
    %178 = arith.mulf %176, %177 : vector<16x128xf32>
    %179 = arith.addf %172, %178 : vector<16x128xf32>
    %c11 = arith.constant 11 : index
    %180 = memref.load %arg2[%c11] : memref<98xf32, #tpu.memory_space<smem>>
    %181 = vector.extract_strided_slice %174 {offsets = [1, 0], sizes = [16, 128], strides = [1, 1]} : vector<24x128xf32> to vector<16x128xf32>
    %182 = vector.broadcast %180 : f32 to vector<16x128xf32>
    %183 = arith.mulf %181, %182 : vector<16x128xf32>
    %184 = arith.addf %179, %183 : vector<16x128xf32>
    %c18 = arith.constant 18 : index
    %185 = memref.load %arg2[%c18] : memref<98xf32, #tpu.memory_space<smem>>
    %186 = vector.extract_strided_slice %174 {offsets = [2, 0], sizes = [16, 128], strides = [1, 1]} : vector<24x128xf32> to vector<16x128xf32>
    %187 = vector.broadcast %185 : f32 to vector<16x128xf32>
    %188 = arith.mulf %186, %187 : vector<16x128xf32>
    %189 = arith.addf %184, %188 : vector<16x128xf32>
    %c25 = arith.constant 25 : index
    %190 = memref.load %arg2[%c25] : memref<98xf32, #tpu.memory_space<smem>>
    %191 = vector.extract_strided_slice %174 {offsets = [3, 0], sizes = [16, 128], strides = [1, 1]} : vector<24x128xf32> to vector<16x128xf32>
    %192 = vector.broadcast %190 : f32 to vector<16x128xf32>
    %193 = arith.mulf %191, %192 : vector<16x128xf32>
    %194 = arith.addf %189, %193 : vector<16x128xf32>
    %c32 = arith.constant 32 : index
    %195 = memref.load %arg2[%c32] : memref<98xf32, #tpu.memory_space<smem>>
    %196 = vector.extract_strided_slice %174 {offsets = [4, 0], sizes = [16, 128], strides = [1, 1]} : vector<24x128xf32> to vector<16x128xf32>
    %197 = vector.broadcast %195 : f32 to vector<16x128xf32>
    %198 = arith.mulf %196, %197 : vector<16x128xf32>
    %199 = arith.addf %194, %198 : vector<16x128xf32>
    %c39 = arith.constant 39 : index
    %200 = memref.load %arg2[%c39] : memref<98xf32, #tpu.memory_space<smem>>
    %201 = vector.extract_strided_slice %174 {offsets = [5, 0], sizes = [16, 128], strides = [1, 1]} : vector<24x128xf32> to vector<16x128xf32>
    %202 = vector.broadcast %200 : f32 to vector<16x128xf32>
    %203 = arith.mulf %201, %202 : vector<16x128xf32>
    %204 = arith.addf %199, %203 : vector<16x128xf32>
    %c46 = arith.constant 46 : index
    %205 = memref.load %arg2[%c46] : memref<98xf32, #tpu.memory_space<smem>>
    %206 = vector.extract_strided_slice %174 {offsets = [6, 0], sizes = [16, 128], strides = [1, 1]} : vector<24x128xf32> to vector<16x128xf32>
    %207 = vector.broadcast %205 : f32 to vector<16x128xf32>
    %208 = arith.mulf %206, %207 : vector<16x128xf32>
    %209 = arith.addf %204, %208 : vector<16x128xf32>
    %c0_50 = arith.constant 0 : index
    %c0_51 = arith.constant 0 : index
    %c0_52 = arith.constant 0 : index
    %c5 = arith.constant 5 : index
    %210 = vector.load %arg4[%c0_50, %c0_51, %c0_52, %c5] : memref<1x2x24x256xf32, #tpu.memory_space<vmem>>, vector<1x1x24x128xf32>
    %211 = vector.shape_cast %210 : vector<1x1x24x128xf32> to vector<24x128xf32>
    %c5_53 = arith.constant 5 : index
    %212 = memref.load %arg2[%c5_53] : memref<98xf32, #tpu.memory_space<smem>>
    %213 = vector.extract_strided_slice %211 {offsets = [0, 0], sizes = [16, 128], strides = [1, 1]} : vector<24x128xf32> to vector<16x128xf32>
    %214 = vector.broadcast %212 : f32 to vector<16x128xf32>
    %215 = arith.mulf %213, %214 : vector<16x128xf32>
    %216 = arith.addf %209, %215 : vector<16x128xf32>
    %c12 = arith.constant 12 : index
    %217 = memref.load %arg2[%c12] : memref<98xf32, #tpu.memory_space<smem>>
    %218 = vector.extract_strided_slice %211 {offsets = [1, 0], sizes = [16, 128], strides = [1, 1]} : vector<24x128xf32> to vector<16x128xf32>
    %219 = vector.broadcast %217 : f32 to vector<16x128xf32>
    %220 = arith.mulf %218, %219 : vector<16x128xf32>
    %221 = arith.addf %216, %220 : vector<16x128xf32>
    %c19 = arith.constant 19 : index
    %222 = memref.load %arg2[%c19] : memref<98xf32, #tpu.memory_space<smem>>
    %223 = vector.extract_strided_slice %211 {offsets = [2, 0], sizes = [16, 128], strides = [1, 1]} : vector<24x128xf32> to vector<16x128xf32>
    %224 = vector.broadcast %222 : f32 to vector<16x128xf32>
    %225 = arith.mulf %223, %224 : vector<16x128xf32>
    %226 = arith.addf %221, %225 : vector<16x128xf32>
    %c26 = arith.constant 26 : index
    %227 = memref.load %arg2[%c26] : memref<98xf32, #tpu.memory_space<smem>>
    %228 = vector.extract_strided_slice %211 {offsets = [3, 0], sizes = [16, 128], strides = [1, 1]} : vector<24x128xf32> to vector<16x128xf32>
    %229 = vector.broadcast %227 : f32 to vector<16x128xf32>
    %230 = arith.mulf %228, %229 : vector<16x128xf32>
    %231 = arith.addf %226, %230 : vector<16x128xf32>
    %c33 = arith.constant 33 : index
    %232 = memref.load %arg2[%c33] : memref<98xf32, #tpu.memory_space<smem>>
    %233 = vector.extract_strided_slice %211 {offsets = [4, 0], sizes = [16, 128], strides = [1, 1]} : vector<24x128xf32> to vector<16x128xf32>
    %234 = vector.broadcast %232 : f32 to vector<16x128xf32>
    %235 = arith.mulf %233, %234 : vector<16x128xf32>
    %236 = arith.addf %231, %235 : vector<16x128xf32>
    %c40 = arith.constant 40 : index
    %237 = memref.load %arg2[%c40] : memref<98xf32, #tpu.memory_space<smem>>
    %238 = vector.extract_strided_slice %211 {offsets = [5, 0], sizes = [16, 128], strides = [1, 1]} : vector<24x128xf32> to vector<16x128xf32>
    %239 = vector.broadcast %237 : f32 to vector<16x128xf32>
    %240 = arith.mulf %238, %239 : vector<16x128xf32>
    %241 = arith.addf %236, %240 : vector<16x128xf32>
    %c47 = arith.constant 47 : index
    %242 = memref.load %arg2[%c47] : memref<98xf32, #tpu.memory_space<smem>>
    %243 = vector.extract_strided_slice %211 {offsets = [6, 0], sizes = [16, 128], strides = [1, 1]} : vector<24x128xf32> to vector<16x128xf32>
    %244 = vector.broadcast %242 : f32 to vector<16x128xf32>
    %245 = arith.mulf %243, %244 : vector<16x128xf32>
    %246 = arith.addf %241, %245 : vector<16x128xf32>
    %c0_54 = arith.constant 0 : index
    %c0_55 = arith.constant 0 : index
    %c0_56 = arith.constant 0 : index
    %c6 = arith.constant 6 : index
    %247 = vector.load %arg4[%c0_54, %c0_55, %c0_56, %c6] : memref<1x2x24x256xf32, #tpu.memory_space<vmem>>, vector<1x1x24x128xf32>
    %248 = vector.shape_cast %247 : vector<1x1x24x128xf32> to vector<24x128xf32>
    %c6_57 = arith.constant 6 : index
    %249 = memref.load %arg2[%c6_57] : memref<98xf32, #tpu.memory_space<smem>>
    %250 = vector.extract_strided_slice %248 {offsets = [0, 0], sizes = [16, 128], strides = [1, 1]} : vector<24x128xf32> to vector<16x128xf32>
    %251 = vector.broadcast %249 : f32 to vector<16x128xf32>
    %252 = arith.mulf %250, %251 : vector<16x128xf32>
    %253 = arith.addf %246, %252 : vector<16x128xf32>
    %c13 = arith.constant 13 : index
    %254 = memref.load %arg2[%c13] : memref<98xf32, #tpu.memory_space<smem>>
    %255 = vector.extract_strided_slice %248 {offsets = [1, 0], sizes = [16, 128], strides = [1, 1]} : vector<24x128xf32> to vector<16x128xf32>
    %256 = vector.broadcast %254 : f32 to vector<16x128xf32>
    %257 = arith.mulf %255, %256 : vector<16x128xf32>
    %258 = arith.addf %253, %257 : vector<16x128xf32>
    %c20 = arith.constant 20 : index
    %259 = memref.load %arg2[%c20] : memref<98xf32, #tpu.memory_space<smem>>
    %260 = vector.extract_strided_slice %248 {offsets = [2, 0], sizes = [16, 128], strides = [1, 1]} : vector<24x128xf32> to vector<16x128xf32>
    %261 = vector.broadcast %259 : f32 to vector<16x128xf32>
    %262 = arith.mulf %260, %261 : vector<16x128xf32>
    %263 = arith.addf %258, %262 : vector<16x128xf32>
    %c27 = arith.constant 27 : index
    %264 = memref.load %arg2[%c27] : memref<98xf32, #tpu.memory_space<smem>>
    %265 = vector.extract_strided_slice %248 {offsets = [3, 0], sizes = [16, 128], strides = [1, 1]} : vector<24x128xf32> to vector<16x128xf32>
    %266 = vector.broadcast %264 : f32 to vector<16x128xf32>
    %267 = arith.mulf %265, %266 : vector<16x128xf32>
    %268 = arith.addf %263, %267 : vector<16x128xf32>
    %c34 = arith.constant 34 : index
    %269 = memref.load %arg2[%c34] : memref<98xf32, #tpu.memory_space<smem>>
    %270 = vector.extract_strided_slice %248 {offsets = [4, 0], sizes = [16, 128], strides = [1, 1]} : vector<24x128xf32> to vector<16x128xf32>
    %271 = vector.broadcast %269 : f32 to vector<16x128xf32>
    %272 = arith.mulf %270, %271 : vector<16x128xf32>
    %273 = arith.addf %268, %272 : vector<16x128xf32>
    %c41 = arith.constant 41 : index
    %274 = memref.load %arg2[%c41] : memref<98xf32, #tpu.memory_space<smem>>
    %275 = vector.extract_strided_slice %248 {offsets = [5, 0], sizes = [16, 128], strides = [1, 1]} : vector<24x128xf32> to vector<16x128xf32>
    %276 = vector.broadcast %274 : f32 to vector<16x128xf32>
    %277 = arith.mulf %275, %276 : vector<16x128xf32>
    %278 = arith.addf %273, %277 : vector<16x128xf32>
    %c48 = arith.constant 48 : index
    %279 = memref.load %arg2[%c48] : memref<98xf32, #tpu.memory_space<smem>>
    %280 = vector.extract_strided_slice %248 {offsets = [6, 0], sizes = [16, 128], strides = [1, 1]} : vector<24x128xf32> to vector<16x128xf32>
    %281 = vector.broadcast %279 : f32 to vector<16x128xf32>
    %282 = arith.mulf %280, %281 : vector<16x128xf32>
    %283 = arith.addf %278, %282 : vector<16x128xf32>
    %c0_58 = arith.constant 0 : index
    %c1_59 = arith.constant 1 : index
    %c0_60 = arith.constant 0 : index
    %c0_61 = arith.constant 0 : index
    %284 = vector.load %arg4[%c0_58, %c1_59, %c0_60, %c0_61] : memref<1x2x24x256xf32, #tpu.memory_space<vmem>>, vector<1x1x24x128xf32>
    %285 = vector.shape_cast %284 : vector<1x1x24x128xf32> to vector<24x128xf32>
    %c49 = arith.constant 49 : index
    %286 = memref.load %arg2[%c49] : memref<98xf32, #tpu.memory_space<smem>>
    %287 = vector.extract_strided_slice %285 {offsets = [0, 0], sizes = [16, 128], strides = [1, 1]} : vector<24x128xf32> to vector<16x128xf32>
    %288 = vector.broadcast %286 : f32 to vector<16x128xf32>
    %289 = arith.mulf %287, %288 : vector<16x128xf32>
    %290 = arith.addf %283, %289 : vector<16x128xf32>
    %c56 = arith.constant 56 : index
    %291 = memref.load %arg2[%c56] : memref<98xf32, #tpu.memory_space<smem>>
    %292 = vector.extract_strided_slice %285 {offsets = [1, 0], sizes = [16, 128], strides = [1, 1]} : vector<24x128xf32> to vector<16x128xf32>
    %293 = vector.broadcast %291 : f32 to vector<16x128xf32>
    %294 = arith.mulf %292, %293 : vector<16x128xf32>
    %295 = arith.addf %290, %294 : vector<16x128xf32>
    %c63 = arith.constant 63 : index
    %296 = memref.load %arg2[%c63] : memref<98xf32, #tpu.memory_space<smem>>
    %297 = vector.extract_strided_slice %285 {offsets = [2, 0], sizes = [16, 128], strides = [1, 1]} : vector<24x128xf32> to vector<16x128xf32>
    %298 = vector.broadcast %296 : f32 to vector<16x128xf32>
    %299 = arith.mulf %297, %298 : vector<16x128xf32>
    %300 = arith.addf %295, %299 : vector<16x128xf32>
    %c70 = arith.constant 70 : index
    %301 = memref.load %arg2[%c70] : memref<98xf32, #tpu.memory_space<smem>>
    %302 = vector.extract_strided_slice %285 {offsets = [3, 0], sizes = [16, 128], strides = [1, 1]} : vector<24x128xf32> to vector<16x128xf32>
    %303 = vector.broadcast %301 : f32 to vector<16x128xf32>
    %304 = arith.mulf %302, %303 : vector<16x128xf32>
    %305 = arith.addf %300, %304 : vector<16x128xf32>
    %c77 = arith.constant 77 : index
    %306 = memref.load %arg2[%c77] : memref<98xf32, #tpu.memory_space<smem>>
    %307 = vector.extract_strided_slice %285 {offsets = [4, 0], sizes = [16, 128], strides = [1, 1]} : vector<24x128xf32> to vector<16x128xf32>
    %308 = vector.broadcast %306 : f32 to vector<16x128xf32>
    %309 = arith.mulf %307, %308 : vector<16x128xf32>
    %310 = arith.addf %305, %309 : vector<16x128xf32>
    %c84 = arith.constant 84 : index
    %311 = memref.load %arg2[%c84] : memref<98xf32, #tpu.memory_space<smem>>
    %312 = vector.extract_strided_slice %285 {offsets = [5, 0], sizes = [16, 128], strides = [1, 1]} : vector<24x128xf32> to vector<16x128xf32>
    %313 = vector.broadcast %311 : f32 to vector<16x128xf32>
    %314 = arith.mulf %312, %313 : vector<16x128xf32>
    %315 = arith.addf %310, %314 : vector<16x128xf32>
    %c91 = arith.constant 91 : index
    %316 = memref.load %arg2[%c91] : memref<98xf32, #tpu.memory_space<smem>>
    %317 = vector.extract_strided_slice %285 {offsets = [6, 0], sizes = [16, 128], strides = [1, 1]} : vector<24x128xf32> to vector<16x128xf32>
    %318 = vector.broadcast %316 : f32 to vector<16x128xf32>
    %319 = arith.mulf %317, %318 : vector<16x128xf32>
    %320 = arith.addf %315, %319 : vector<16x128xf32>
    %c0_62 = arith.constant 0 : index
    %c1_63 = arith.constant 1 : index
    %c0_64 = arith.constant 0 : index
    %c1_65 = arith.constant 1 : index
    %321 = vector.load %arg4[%c0_62, %c1_63, %c0_64, %c1_65] : memref<1x2x24x256xf32, #tpu.memory_space<vmem>>, vector<1x1x24x128xf32>
    %322 = vector.shape_cast %321 : vector<1x1x24x128xf32> to vector<24x128xf32>
    %c50 = arith.constant 50 : index
    %323 = memref.load %arg2[%c50] : memref<98xf32, #tpu.memory_space<smem>>
    %324 = vector.extract_strided_slice %322 {offsets = [0, 0], sizes = [16, 128], strides = [1, 1]} : vector<24x128xf32> to vector<16x128xf32>
    %325 = vector.broadcast %323 : f32 to vector<16x128xf32>
    %326 = arith.mulf %324, %325 : vector<16x128xf32>
    %327 = arith.addf %320, %326 : vector<16x128xf32>
    %c57 = arith.constant 57 : index
    %328 = memref.load %arg2[%c57] : memref<98xf32, #tpu.memory_space<smem>>
    %329 = vector.extract_strided_slice %322 {offsets = [1, 0], sizes = [16, 128], strides = [1, 1]} : vector<24x128xf32> to vector<16x128xf32>
    %330 = vector.broadcast %328 : f32 to vector<16x128xf32>
    %331 = arith.mulf %329, %330 : vector<16x128xf32>
    %332 = arith.addf %327, %331 : vector<16x128xf32>
    %c64 = arith.constant 64 : index
    %333 = memref.load %arg2[%c64] : memref<98xf32, #tpu.memory_space<smem>>
    %334 = vector.extract_strided_slice %322 {offsets = [2, 0], sizes = [16, 128], strides = [1, 1]} : vector<24x128xf32> to vector<16x128xf32>
    %335 = vector.broadcast %333 : f32 to vector<16x128xf32>
    %336 = arith.mulf %334, %335 : vector<16x128xf32>
    %337 = arith.addf %332, %336 : vector<16x128xf32>
    %c71 = arith.constant 71 : index
    %338 = memref.load %arg2[%c71] : memref<98xf32, #tpu.memory_space<smem>>
    %339 = vector.extract_strided_slice %322 {offsets = [3, 0], sizes = [16, 128], strides = [1, 1]} : vector<24x128xf32> to vector<16x128xf32>
    %340 = vector.broadcast %338 : f32 to vector<16x128xf32>
    %341 = arith.mulf %339, %340 : vector<16x128xf32>
    %342 = arith.addf %337, %341 : vector<16x128xf32>
    %c78 = arith.constant 78 : index
    %343 = memref.load %arg2[%c78] : memref<98xf32, #tpu.memory_space<smem>>
    %344 = vector.extract_strided_slice %322 {offsets = [4, 0], sizes = [16, 128], strides = [1, 1]} : vector<24x128xf32> to vector<16x128xf32>
    %345 = vector.broadcast %343 : f32 to vector<16x128xf32>
    %346 = arith.mulf %344, %345 : vector<16x128xf32>
    %347 = arith.addf %342, %346 : vector<16x128xf32>
    %c85 = arith.constant 85 : index
    %348 = memref.load %arg2[%c85] : memref<98xf32, #tpu.memory_space<smem>>
    %349 = vector.extract_strided_slice %322 {offsets = [5, 0], sizes = [16, 128], strides = [1, 1]} : vector<24x128xf32> to vector<16x128xf32>
    %350 = vector.broadcast %348 : f32 to vector<16x128xf32>
    %351 = arith.mulf %349, %350 : vector<16x128xf32>
    %352 = arith.addf %347, %351 : vector<16x128xf32>
    %c92 = arith.constant 92 : index
    %353 = memref.load %arg2[%c92] : memref<98xf32, #tpu.memory_space<smem>>
    %354 = vector.extract_strided_slice %322 {offsets = [6, 0], sizes = [16, 128], strides = [1, 1]} : vector<24x128xf32> to vector<16x128xf32>
    %355 = vector.broadcast %353 : f32 to vector<16x128xf32>
    %356 = arith.mulf %354, %355 : vector<16x128xf32>
    %357 = arith.addf %352, %356 : vector<16x128xf32>
    %c0_66 = arith.constant 0 : index
    %c1_67 = arith.constant 1 : index
    %c0_68 = arith.constant 0 : index
    %c2_69 = arith.constant 2 : index
    %358 = vector.load %arg4[%c0_66, %c1_67, %c0_68, %c2_69] : memref<1x2x24x256xf32, #tpu.memory_space<vmem>>, vector<1x1x24x128xf32>
    %359 = vector.shape_cast %358 : vector<1x1x24x128xf32> to vector<24x128xf32>
    %c51 = arith.constant 51 : index
    %360 = memref.load %arg2[%c51] : memref<98xf32, #tpu.memory_space<smem>>
    %361 = vector.extract_strided_slice %359 {offsets = [0, 0], sizes = [16, 128], strides = [1, 1]} : vector<24x128xf32> to vector<16x128xf32>
    %362 = vector.broadcast %360 : f32 to vector<16x128xf32>
    %363 = arith.mulf %361, %362 : vector<16x128xf32>
    %364 = arith.addf %357, %363 : vector<16x128xf32>
    %c58 = arith.constant 58 : index
    %365 = memref.load %arg2[%c58] : memref<98xf32, #tpu.memory_space<smem>>
    %366 = vector.extract_strided_slice %359 {offsets = [1, 0], sizes = [16, 128], strides = [1, 1]} : vector<24x128xf32> to vector<16x128xf32>
    %367 = vector.broadcast %365 : f32 to vector<16x128xf32>
    %368 = arith.mulf %366, %367 : vector<16x128xf32>
    %369 = arith.addf %364, %368 : vector<16x128xf32>
    %c65 = arith.constant 65 : index
    %370 = memref.load %arg2[%c65] : memref<98xf32, #tpu.memory_space<smem>>
    %371 = vector.extract_strided_slice %359 {offsets = [2, 0], sizes = [16, 128], strides = [1, 1]} : vector<24x128xf32> to vector<16x128xf32>
    %372 = vector.broadcast %370 : f32 to vector<16x128xf32>
    %373 = arith.mulf %371, %372 : vector<16x128xf32>
    %374 = arith.addf %369, %373 : vector<16x128xf32>
    %c72 = arith.constant 72 : index
    %375 = memref.load %arg2[%c72] : memref<98xf32, #tpu.memory_space<smem>>
    %376 = vector.extract_strided_slice %359 {offsets = [3, 0], sizes = [16, 128], strides = [1, 1]} : vector<24x128xf32> to vector<16x128xf32>
    %377 = vector.broadcast %375 : f32 to vector<16x128xf32>
    %378 = arith.mulf %376, %377 : vector<16x128xf32>
    %379 = arith.addf %374, %378 : vector<16x128xf32>
    %c79 = arith.constant 79 : index
    %380 = memref.load %arg2[%c79] : memref<98xf32, #tpu.memory_space<smem>>
    %381 = vector.extract_strided_slice %359 {offsets = [4, 0], sizes = [16, 128], strides = [1, 1]} : vector<24x128xf32> to vector<16x128xf32>
    %382 = vector.broadcast %380 : f32 to vector<16x128xf32>
    %383 = arith.mulf %381, %382 : vector<16x128xf32>
    %384 = arith.addf %379, %383 : vector<16x128xf32>
    %c86 = arith.constant 86 : index
    %385 = memref.load %arg2[%c86] : memref<98xf32, #tpu.memory_space<smem>>
    %386 = vector.extract_strided_slice %359 {offsets = [5, 0], sizes = [16, 128], strides = [1, 1]} : vector<24x128xf32> to vector<16x128xf32>
    %387 = vector.broadcast %385 : f32 to vector<16x128xf32>
    %388 = arith.mulf %386, %387 : vector<16x128xf32>
    %389 = arith.addf %384, %388 : vector<16x128xf32>
    %c93 = arith.constant 93 : index
    %390 = memref.load %arg2[%c93] : memref<98xf32, #tpu.memory_space<smem>>
    %391 = vector.extract_strided_slice %359 {offsets = [6, 0], sizes = [16, 128], strides = [1, 1]} : vector<24x128xf32> to vector<16x128xf32>
    %392 = vector.broadcast %390 : f32 to vector<16x128xf32>
    %393 = arith.mulf %391, %392 : vector<16x128xf32>
    %394 = arith.addf %389, %393 : vector<16x128xf32>
    %c0_70 = arith.constant 0 : index
    %c1_71 = arith.constant 1 : index
    %c0_72 = arith.constant 0 : index
    %c3_73 = arith.constant 3 : index
    %395 = vector.load %arg4[%c0_70, %c1_71, %c0_72, %c3_73] : memref<1x2x24x256xf32, #tpu.memory_space<vmem>>, vector<1x1x24x128xf32>
    %396 = vector.shape_cast %395 : vector<1x1x24x128xf32> to vector<24x128xf32>
    %c52 = arith.constant 52 : index
    %397 = memref.load %arg2[%c52] : memref<98xf32, #tpu.memory_space<smem>>
    %398 = vector.extract_strided_slice %396 {offsets = [0, 0], sizes = [16, 128], strides = [1, 1]} : vector<24x128xf32> to vector<16x128xf32>
    %399 = vector.broadcast %397 : f32 to vector<16x128xf32>
    %400 = arith.mulf %398, %399 : vector<16x128xf32>
    %401 = arith.addf %394, %400 : vector<16x128xf32>
    %c59 = arith.constant 59 : index
    %402 = memref.load %arg2[%c59] : memref<98xf32, #tpu.memory_space<smem>>
    %403 = vector.extract_strided_slice %396 {offsets = [1, 0], sizes = [16, 128], strides = [1, 1]} : vector<24x128xf32> to vector<16x128xf32>
    %404 = vector.broadcast %402 : f32 to vector<16x128xf32>
    %405 = arith.mulf %403, %404 : vector<16x128xf32>
    %406 = arith.addf %401, %405 : vector<16x128xf32>
    %c66 = arith.constant 66 : index
    %407 = memref.load %arg2[%c66] : memref<98xf32, #tpu.memory_space<smem>>
    %408 = vector.extract_strided_slice %396 {offsets = [2, 0], sizes = [16, 128], strides = [1, 1]} : vector<24x128xf32> to vector<16x128xf32>
    %409 = vector.broadcast %407 : f32 to vector<16x128xf32>
    %410 = arith.mulf %408, %409 : vector<16x128xf32>
    %411 = arith.addf %406, %410 : vector<16x128xf32>
    %c73 = arith.constant 73 : index
    %412 = memref.load %arg2[%c73] : memref<98xf32, #tpu.memory_space<smem>>
    %413 = vector.extract_strided_slice %396 {offsets = [3, 0], sizes = [16, 128], strides = [1, 1]} : vector<24x128xf32> to vector<16x128xf32>
    %414 = vector.broadcast %412 : f32 to vector<16x128xf32>
    %415 = arith.mulf %413, %414 : vector<16x128xf32>
    %416 = arith.addf %411, %415 : vector<16x128xf32>
    %c80 = arith.constant 80 : index
    %417 = memref.load %arg2[%c80] : memref<98xf32, #tpu.memory_space<smem>>
    %418 = vector.extract_strided_slice %396 {offsets = [4, 0], sizes = [16, 128], strides = [1, 1]} : vector<24x128xf32> to vector<16x128xf32>
    %419 = vector.broadcast %417 : f32 to vector<16x128xf32>
    %420 = arith.mulf %418, %419 : vector<16x128xf32>
    %421 = arith.addf %416, %420 : vector<16x128xf32>
    %c87 = arith.constant 87 : index
    %422 = memref.load %arg2[%c87] : memref<98xf32, #tpu.memory_space<smem>>
    %423 = vector.extract_strided_slice %396 {offsets = [5, 0], sizes = [16, 128], strides = [1, 1]} : vector<24x128xf32> to vector<16x128xf32>
    %424 = vector.broadcast %422 : f32 to vector<16x128xf32>
    %425 = arith.mulf %423, %424 : vector<16x128xf32>
    %426 = arith.addf %421, %425 : vector<16x128xf32>
    %c94 = arith.constant 94 : index
    %427 = memref.load %arg2[%c94] : memref<98xf32, #tpu.memory_space<smem>>
    %428 = vector.extract_strided_slice %396 {offsets = [6, 0], sizes = [16, 128], strides = [1, 1]} : vector<24x128xf32> to vector<16x128xf32>
    %429 = vector.broadcast %427 : f32 to vector<16x128xf32>
    %430 = arith.mulf %428, %429 : vector<16x128xf32>
    %431 = arith.addf %426, %430 : vector<16x128xf32>
    %c0_74 = arith.constant 0 : index
    %c1_75 = arith.constant 1 : index
    %c0_76 = arith.constant 0 : index
    %c4_77 = arith.constant 4 : index
    %432 = vector.load %arg4[%c0_74, %c1_75, %c0_76, %c4_77] : memref<1x2x24x256xf32, #tpu.memory_space<vmem>>, vector<1x1x24x128xf32>
    %433 = vector.shape_cast %432 : vector<1x1x24x128xf32> to vector<24x128xf32>
    %c53 = arith.constant 53 : index
    %434 = memref.load %arg2[%c53] : memref<98xf32, #tpu.memory_space<smem>>
    %435 = vector.extract_strided_slice %433 {offsets = [0, 0], sizes = [16, 128], strides = [1, 1]} : vector<24x128xf32> to vector<16x128xf32>
    %436 = vector.broadcast %434 : f32 to vector<16x128xf32>
    %437 = arith.mulf %435, %436 : vector<16x128xf32>
    %438 = arith.addf %431, %437 : vector<16x128xf32>
    %c60 = arith.constant 60 : index
    %439 = memref.load %arg2[%c60] : memref<98xf32, #tpu.memory_space<smem>>
    %440 = vector.extract_strided_slice %433 {offsets = [1, 0], sizes = [16, 128], strides = [1, 1]} : vector<24x128xf32> to vector<16x128xf32>
    %441 = vector.broadcast %439 : f32 to vector<16x128xf32>
    %442 = arith.mulf %440, %441 : vector<16x128xf32>
    %443 = arith.addf %438, %442 : vector<16x128xf32>
    %c67 = arith.constant 67 : index
    %444 = memref.load %arg2[%c67] : memref<98xf32, #tpu.memory_space<smem>>
    %445 = vector.extract_strided_slice %433 {offsets = [2, 0], sizes = [16, 128], strides = [1, 1]} : vector<24x128xf32> to vector<16x128xf32>
    %446 = vector.broadcast %444 : f32 to vector<16x128xf32>
    %447 = arith.mulf %445, %446 : vector<16x128xf32>
    %448 = arith.addf %443, %447 : vector<16x128xf32>
    %c74 = arith.constant 74 : index
    %449 = memref.load %arg2[%c74] : memref<98xf32, #tpu.memory_space<smem>>
    %450 = vector.extract_strided_slice %433 {offsets = [3, 0], sizes = [16, 128], strides = [1, 1]} : vector<24x128xf32> to vector<16x128xf32>
    %451 = vector.broadcast %449 : f32 to vector<16x128xf32>
    %452 = arith.mulf %450, %451 : vector<16x128xf32>
    %453 = arith.addf %448, %452 : vector<16x128xf32>
    %c81 = arith.constant 81 : index
    %454 = memref.load %arg2[%c81] : memref<98xf32, #tpu.memory_space<smem>>
    %455 = vector.extract_strided_slice %433 {offsets = [4, 0], sizes = [16, 128], strides = [1, 1]} : vector<24x128xf32> to vector<16x128xf32>
    %456 = vector.broadcast %454 : f32 to vector<16x128xf32>
    %457 = arith.mulf %455, %456 : vector<16x128xf32>
    %458 = arith.addf %453, %457 : vector<16x128xf32>
    %c88 = arith.constant 88 : index
    %459 = memref.load %arg2[%c88] : memref<98xf32, #tpu.memory_space<smem>>
    %460 = vector.extract_strided_slice %433 {offsets = [5, 0], sizes = [16, 128], strides = [1, 1]} : vector<24x128xf32> to vector<16x128xf32>
    %461 = vector.broadcast %459 : f32 to vector<16x128xf32>
    %462 = arith.mulf %460, %461 : vector<16x128xf32>
    %463 = arith.addf %458, %462 : vector<16x128xf32>
    %c95 = arith.constant 95 : index
    %464 = memref.load %arg2[%c95] : memref<98xf32, #tpu.memory_space<smem>>
    %465 = vector.extract_strided_slice %433 {offsets = [6, 0], sizes = [16, 128], strides = [1, 1]} : vector<24x128xf32> to vector<16x128xf32>
    %466 = vector.broadcast %464 : f32 to vector<16x128xf32>
    %467 = arith.mulf %465, %466 : vector<16x128xf32>
    %468 = arith.addf %463, %467 : vector<16x128xf32>
    %c0_78 = arith.constant 0 : index
    %c1_79 = arith.constant 1 : index
    %c0_80 = arith.constant 0 : index
    %c5_81 = arith.constant 5 : index
    %469 = vector.load %arg4[%c0_78, %c1_79, %c0_80, %c5_81] : memref<1x2x24x256xf32, #tpu.memory_space<vmem>>, vector<1x1x24x128xf32>
    %470 = vector.shape_cast %469 : vector<1x1x24x128xf32> to vector<24x128xf32>
    %c54 = arith.constant 54 : index
    %471 = memref.load %arg2[%c54] : memref<98xf32, #tpu.memory_space<smem>>
    %472 = vector.extract_strided_slice %470 {offsets = [0, 0], sizes = [16, 128], strides = [1, 1]} : vector<24x128xf32> to vector<16x128xf32>
    %473 = vector.broadcast %471 : f32 to vector<16x128xf32>
    %474 = arith.mulf %472, %473 : vector<16x128xf32>
    %475 = arith.addf %468, %474 : vector<16x128xf32>
    %c61 = arith.constant 61 : index
    %476 = memref.load %arg2[%c61] : memref<98xf32, #tpu.memory_space<smem>>
    %477 = vector.extract_strided_slice %470 {offsets = [1, 0], sizes = [16, 128], strides = [1, 1]} : vector<24x128xf32> to vector<16x128xf32>
    %478 = vector.broadcast %476 : f32 to vector<16x128xf32>
    %479 = arith.mulf %477, %478 : vector<16x128xf32>
    %480 = arith.addf %475, %479 : vector<16x128xf32>
    %c68 = arith.constant 68 : index
    %481 = memref.load %arg2[%c68] : memref<98xf32, #tpu.memory_space<smem>>
    %482 = vector.extract_strided_slice %470 {offsets = [2, 0], sizes = [16, 128], strides = [1, 1]} : vector<24x128xf32> to vector<16x128xf32>
    %483 = vector.broadcast %481 : f32 to vector<16x128xf32>
    %484 = arith.mulf %482, %483 : vector<16x128xf32>
    %485 = arith.addf %480, %484 : vector<16x128xf32>
    %c75 = arith.constant 75 : index
    %486 = memref.load %arg2[%c75] : memref<98xf32, #tpu.memory_space<smem>>
    %487 = vector.extract_strided_slice %470 {offsets = [3, 0], sizes = [16, 128], strides = [1, 1]} : vector<24x128xf32> to vector<16x128xf32>
    %488 = vector.broadcast %486 : f32 to vector<16x128xf32>
    %489 = arith.mulf %487, %488 : vector<16x128xf32>
    %490 = arith.addf %485, %489 : vector<16x128xf32>
    %c82 = arith.constant 82 : index
    %491 = memref.load %arg2[%c82] : memref<98xf32, #tpu.memory_space<smem>>
    %492 = vector.extract_strided_slice %470 {offsets = [4, 0], sizes = [16, 128], strides = [1, 1]} : vector<24x128xf32> to vector<16x128xf32>
    %493 = vector.broadcast %491 : f32 to vector<16x128xf32>
    %494 = arith.mulf %492, %493 : vector<16x128xf32>
    %495 = arith.addf %490, %494 : vector<16x128xf32>
    %c89 = arith.constant 89 : index
    %496 = memref.load %arg2[%c89] : memref<98xf32, #tpu.memory_space<smem>>
    %497 = vector.extract_strided_slice %470 {offsets = [5, 0], sizes = [16, 128], strides = [1, 1]} : vector<24x128xf32> to vector<16x128xf32>
    %498 = vector.broadcast %496 : f32 to vector<16x128xf32>
    %499 = arith.mulf %497, %498 : vector<16x128xf32>
    %500 = arith.addf %495, %499 : vector<16x128xf32>
    %c96 = arith.constant 96 : index
    %501 = memref.load %arg2[%c96] : memref<98xf32, #tpu.memory_space<smem>>
    %502 = vector.extract_strided_slice %470 {offsets = [6, 0], sizes = [16, 128], strides = [1, 1]} : vector<24x128xf32> to vector<16x128xf32>
    %503 = vector.broadcast %501 : f32 to vector<16x128xf32>
    %504 = arith.mulf %502, %503 : vector<16x128xf32>
    %505 = arith.addf %500, %504 : vector<16x128xf32>
    %c0_82 = arith.constant 0 : index
    %c1_83 = arith.constant 1 : index
    %c0_84 = arith.constant 0 : index
    %c6_85 = arith.constant 6 : index
    %506 = vector.load %arg4[%c0_82, %c1_83, %c0_84, %c6_85] : memref<1x2x24x256xf32, #tpu.memory_space<vmem>>, vector<1x1x24x128xf32>
    %507 = vector.shape_cast %506 : vector<1x1x24x128xf32> to vector<24x128xf32>
    %c55 = arith.constant 55 : index
    %508 = memref.load %arg2[%c55] : memref<98xf32, #tpu.memory_space<smem>>
    %509 = vector.extract_strided_slice %507 {offsets = [0, 0], sizes = [16, 128], strides = [1, 1]} : vector<24x128xf32> to vector<16x128xf32>
    %510 = vector.broadcast %508 : f32 to vector<16x128xf32>
    %511 = arith.mulf %509, %510 : vector<16x128xf32>
    %512 = arith.addf %505, %511 : vector<16x128xf32>
    %c62 = arith.constant 62 : index
    %513 = memref.load %arg2[%c62] : memref<98xf32, #tpu.memory_space<smem>>
    %514 = vector.extract_strided_slice %507 {offsets = [1, 0], sizes = [16, 128], strides = [1, 1]} : vector<24x128xf32> to vector<16x128xf32>
    %515 = vector.broadcast %513 : f32 to vector<16x128xf32>
    %516 = arith.mulf %514, %515 : vector<16x128xf32>
    %517 = arith.addf %512, %516 : vector<16x128xf32>
    %c69 = arith.constant 69 : index
    %518 = memref.load %arg2[%c69] : memref<98xf32, #tpu.memory_space<smem>>
    %519 = vector.extract_strided_slice %507 {offsets = [2, 0], sizes = [16, 128], strides = [1, 1]} : vector<24x128xf32> to vector<16x128xf32>
    %520 = vector.broadcast %518 : f32 to vector<16x128xf32>
    %521 = arith.mulf %519, %520 : vector<16x128xf32>
    %522 = arith.addf %517, %521 : vector<16x128xf32>
    %c76 = arith.constant 76 : index
    %523 = memref.load %arg2[%c76] : memref<98xf32, #tpu.memory_space<smem>>
    %524 = vector.extract_strided_slice %507 {offsets = [3, 0], sizes = [16, 128], strides = [1, 1]} : vector<24x128xf32> to vector<16x128xf32>
    %525 = vector.broadcast %523 : f32 to vector<16x128xf32>
    %526 = arith.mulf %524, %525 : vector<16x128xf32>
    %527 = arith.addf %522, %526 : vector<16x128xf32>
    %c83 = arith.constant 83 : index
    %528 = memref.load %arg2[%c83] : memref<98xf32, #tpu.memory_space<smem>>
    %529 = vector.extract_strided_slice %507 {offsets = [4, 0], sizes = [16, 128], strides = [1, 1]} : vector<24x128xf32> to vector<16x128xf32>
    %530 = vector.broadcast %528 : f32 to vector<16x128xf32>
    %531 = arith.mulf %529, %530 : vector<16x128xf32>
    %532 = arith.addf %527, %531 : vector<16x128xf32>
    %c90 = arith.constant 90 : index
    %533 = memref.load %arg2[%c90] : memref<98xf32, #tpu.memory_space<smem>>
    %534 = vector.extract_strided_slice %507 {offsets = [5, 0], sizes = [16, 128], strides = [1, 1]} : vector<24x128xf32> to vector<16x128xf32>
    %535 = vector.broadcast %533 : f32 to vector<16x128xf32>
    %536 = arith.mulf %534, %535 : vector<16x128xf32>
    %537 = arith.addf %532, %536 : vector<16x128xf32>
    %c97 = arith.constant 97 : index
    %538 = memref.load %arg2[%c97] : memref<98xf32, #tpu.memory_space<smem>>
    %539 = vector.extract_strided_slice %507 {offsets = [6, 0], sizes = [16, 128], strides = [1, 1]} : vector<24x128xf32> to vector<16x128xf32>
    %540 = vector.broadcast %538 : f32 to vector<16x128xf32>
    %541 = arith.mulf %539, %540 : vector<16x128xf32>
    %542 = arith.addf %537, %541 : vector<16x128xf32>
    %543 = arith.negf %542 : vector<16x128xf32>
    %544 = math.exp %543 : vector<16x128xf32>
    %cst_86 = arith.constant 1.000000e+00 : f32
    %545 = vector.broadcast %cst_86 : f32 to vector<16x128xf32>
    %546 = arith.addf %545, %544 : vector<16x128xf32>
    %547 = arith.divf %545, %546 : vector<16x128xf32>
    %c0_87 = arith.constant 0 : index
    %c0_88 = arith.constant 0 : index
    %c0_89 = arith.constant 0 : index
    %c0_90 = arith.constant 0 : index
    %548 = vector.load %arg3[%c0_87, %c0_88, %c0_89, %c0_90] : memref<1x1x16x128xf32, #tpu.memory_space<vmem>>, vector<1x1x16x128xf32>
    %549 = vector.shape_cast %548 : vector<1x1x16x128xf32> to vector<16x128xf32>
    %550 = vector.shape_cast %547 : vector<16x128xf32> to vector<1x1x16x128xf32>
    tpu.vector_store %arg3[%c0_87, %c0_88, %c0_89, %c0_90], %550 {strides = array<i32>} : memref<1x1x16x128xf32, #tpu.memory_space<vmem>>, vector<1x1x16x128xf32>,
    return
  }
  func.func @transform_0(%arg0: i32) -> (i32, i32, i32, i32) {
    %c0_i32 = arith.constant 0 : i32
    %c0_i32_0 = arith.constant 0 : i32
    %c0_i32_1 = arith.constant 0 : i32
    %c0_i32_2 = arith.constant 0 : i32
    return %arg0, %c0_i32, %c0_i32_0, %c0_i32_1 : i32, i32, i32, i32
  }
  func.func @transform_1(%arg0: i32) -> i32 {
    %c0_i32 = arith.constant 0 : i32
    %c0_i32_0 = arith.constant 0 : i32
    return %c0_i32 : i32
  }
  func.func @transform_2(%arg0: i32) -> (i32, i32, i32, i32) {
    %c0_i32 = arith.constant 0 : i32
    %c0_i32_0 = arith.constant 0 : i32
    %c0_i32_1 = arith.constant 0 : i32
    %c0_i32_2 = arith.constant 0 : i32
    return %arg0, %c0_i32, %c0_i32_0, %c0_i32_1 : i32, i32, i32, i32
  }
}

</mosaic_0001>

<llo_original>
// kernel: tpu_custom_call.1
$region0: #{tpu_custom_call.1}
  #allocation0 [shape = 'u32[]', space=smem, size = 0x4, offset = 0x4, fixed_abs, tag = 'smem constant byte address 0x4 - core index']
  #allocation1 [shape = 'u32[144,128]{1,0:T(1,128)}', space=vmem, size = 0x12000, scoped, tag = 'internal scratch']
  #allocation2 [shape = 'f32[1,2,24,256]{3,2,1,0:T(8,128)}', space=vmem, size = 0xc000, scoped, tag = 'scratch operand']
  %s0 = inlined_call_operand.hbm [shape: f32[2,4,16,16], index: 0, kind: input, shape index: {}]
  %s1 = inlined_call_operand.vmem [shape: f32[98], index: 1, kind: input, shape index: {}]
  %s2 = inlined_call_operand.hbm [shape: f32[2,1,16,128], index: 2, kind: output, shape index: {}]
  %s3 = sld [smem:[#allocation0]]
  $region49: #{tpu_custom_call.1} parent=0
    _
  %s5 = ssub.s32 1, %s3
  %s6 = scalar_select 0, %s5, %s3
  $region1: #{tpu_custom_call.1} parent=0
    #allocation3 [shape = 'u8[65536]{0}', space=vmem, size = 0x10000, scoped, tag = 'input window, operand 0']
    #allocation4 [shape = 's32[2]{0}', space=sflag, size = 0x8, scoped, tag = 'scoped memory for tpu_custom_call.1']
    #allocation5 [shape = 's32[2]{0}', space=sflag, size = 0x8, scoped, tag = 'scoped memory for tpu_custom_call.1']
    #allocation6 [shape = 's32[2]{0}', space=sflag, size = 0x8, scoped, tag = 'scoped memory for tpu_custom_call.1']
    #allocation7 [shape = 'u8[512]{0}', space=smem, size = 0x200, scoped, tag = 'input window, operand 1, single buffered']
    #allocation8 [shape = 'u8[16384]{0}', space=vmem, size = 0x4000, scoped, tag = 'output window, operand 0']
    %7 = vsyncpa [#allocation4], 0
    %s8 = scalar_lea.sflag [#allocation4], 1
    %9 = vsyncpa %s8, 0
    %10 = vsyncpa [#allocation6], 0
    %11 = vsyncpa [#allocation5], 0
    %s12 = scalar_lea.sflag [#allocation5], 1
    %13 = vsyncpa %s12, 0
    loop: start=0, step=1, limit=4
    $region2: #{tpu_custom_call.1} parent=1 // loop_pre_header
      _
    $region3: #{tpu_custom_call.1} parent=1 // loop_header
      %s15 = sphi 0, %s19
      %p16 = scmp.ge.s32.totalorder %s15, 4
      %s25 = sphi 0, %s27
      %s28 = sphi 0, %s25
      %s29 = sphi 0, %s28
      %s45 = sphi 0, %s29
      %s49 = sphi 0, %s49
      %s51 = sphi 0, %s49
      %s52 = sphi 0, %s51
      %s66 = sphi 0, %s52
      %s72 = sphi 0, %s74
      %s75 = sphi 0, %s72
      %s76 = sphi 0, %s75
      %s92 = sphi 0, %s76
    $region4: #{tpu_custom_call.1} parent=1 // loop_header_branch
      %18 = sbr.rel (%p16) target = $region8
    $region5: #{tpu_custom_call.1} parent=1 // loop_body
      %s20 = ssub.s32 %s15, 1
      %s21 = ssub.s32 %s15, 2
      %s22 = sadd.s32 %s15, 1
      %s23 = ssub.s32 %s15, %s22
      %p24 = scmp.eq.s32.totalorder %s23, 0
      %s26 = sadd.s32 %s25, 1
      %s27 = scalar_select %p24, %s25, %s26
      %p30 = pneg %p24
      %p31 = scmp.eq.s32.totalorder %s15, 1
      %p32 = por %p30, %p31
      %p33 = scmp.ne.s32.totalorder %s25, %s28
      %p34 = scmp.eq.s32.totalorder %s15, 0
      %p35 = por %p33, %p34
      %p36 = scmp.ne.s32.totalorder %s25, %s28
      %p37 = scmp.eq.s32.totalorder %s20, 1
      %p38 = por %p36, %p37
      %p39 = scmp.ne.s32.totalorder %s28, %s29
      %p40 = scmp.eq.s32.totalorder %s20, 0
      %p41 = por %p39, %p40
      %p42 = scmp.ne.s32.totalorder %s28, %s29
      %p43 = scmp.eq.s32.totalorder %s21, 1
      %p44 = por %p42, %p43
      %p46 = scmp.ne.s32.totalorder %s29, %s45
      %p47 = scmp.eq.s32.totalorder %s21, 0
      %p48 = por %p46, %p47
      %s50 = sadd.s32 %s49, 1
      %p53 = scmp.eq.s32.totalorder %s15, 1
      %p54 = scmp.ne.s32.totalorder %s49, %s51
      %p55 = scmp.eq.s32.totalorder %s15, 0
      %p56 = por %p54, %p55
      %p57 = scmp.ne.s32.totalorder %s49, %s51
      %p58 = scmp.eq.s32.totalorder %s20, 1
      %p59 = por %p57, %p58
      %p60 = scmp.ne.s32.totalorder %s51, %s52
      %p61 = scmp.eq.s32.totalorder %s20, 0
      %p62 = por %p60, %p61
      %p63 = scmp.ne.s32.totalorder %s51, %s52
      %p64 = scmp.eq.s32.totalorder %s21, 1
      %p65 = por %p63, %p64
      %p67 = scmp.ne.s32.totalorder %s52, %s66
      %p68 = scmp.eq.s32.totalorder %s21, 0
      %p69 = por %p67, %p68
      %s70 = ssub.s32 %s15, %s22
      %p71 = scmp.eq.s32.totalorder %s70, 0
      %s73 = sadd.s32 %s72, 1
      %s74 = scalar_select %p71, %s72, %s73
      %p77 = pneg %p71
      %p78 = scmp.eq.s32.totalorder %s15, 1
      %p79 = por %p77, %p78
      %p80 = scmp.ne.s32.totalorder %s72, %s75
      %p81 = scmp.eq.s32.totalorder %s15, 0
      %p82 = por %p80, %p81
      %p83 = scmp.ne.s32.totalorder %s72, %s75
      %p84 = scmp.eq.s32.totalorder %s20, 1
      %p85 = por %p83, %p84
      %p86 = scmp.ne.s32.totalorder %s75, %s76
      %p87 = scmp.eq.s32.totalorder %s20, 0
      %p88 = por %p86, %p87
      %p89 = scmp.ne.s32.totalorder %s75, %s76
      %p90 = scmp.eq.s32.totalorder %s21, 1
      %p91 = por %p89, %p90
      %p93 = scmp.ne.s32.totalorder %s76, %s92
      %p94 = scmp.eq.s32.totalorder %s21, 0
      %p95 = por %p93, %p94
      %p96 = scmp.le.s32.totalorder 1, %s15
      %p97 = scmp.lt.s32.totalorder %s15, 3
      %p98 = pnand %p96, %p97
      %p99 = pneg %p98
      // Predicated region
      $region9: #{tpu_custom_call.1} parent=5 // pred_check
        _
      $region10: #{tpu_custom_call.1} parent=5 // pred_check_branch
        %101 = sbr.rel (%p98) target = $region12
      $region11: #{tpu_custom_call.1} parent=5 // pred_region
        %s102 = ssub.s32 %s15, 1
        // Predicated region
        $region13: #{tpu_custom_call.1} parent=11 // pred_check
          %p103 = pneg %p62
        $region14: #{tpu_custom_call.1} parent=11 // pred_check_branch
          %105 = sbr.rel (%p103) target = $region16
        $region15: #{tpu_custom_call.1} parent=11 // pred_region
          %s107 = ssub.s32 16, 16
          %108 = vsyncadd [#allocation6], %s107
          %s110 = sshll.u32 %s1, 4
          %s111 = int_to_ptr.vmem [resolvable:$true] %s110
          %113 = dma.vmem_to_smem %s111, 16, [#allocation7], [#allocation6]
        $region16: #{tpu_custom_call.1} parent=11 // pred_fallthru
          _
      $region12: #{tpu_custom_call.1} parent=5 // pred_fallthru
        _
      %p114 = scmp.lt.s32.totalorder %s15, 2
      // Predicated region
      $region17: #{tpu_custom_call.1} parent=5 // pred_check
        %p115 = pneg %p114
      $region18: #{tpu_custom_call.1} parent=5 // pred_check_branch
        %117 = sbr.rel (%p115) target = $region20
      $region19: #{tpu_custom_call.1} parent=5 // pred_region
        // Predicated region
        $region21: #{tpu_custom_call.1} parent=19 // pred_check
          %p118 = pneg %p35
        $region22: #{tpu_custom_call.1} parent=19 // pred_check_branch
          %120 = sbr.rel (%p118) target = $region24
        $region23: #{tpu_custom_call.1} parent=19 // pred_region
          %s121 = sand.u32 %s25, 1
          %s122 = scalar_lea.sflag [#allocation4], %s121
          %s123 = sand.u32 %s25, 1
          %s124 = smul.addr %s123, 64
          %s125 = scalar_lea.vmem [#allocation3], %s124
          %s127 = ssub.s32 1024, 1024
          %128 = vsyncadd %s122, %s127
          %s129 = smul.addr %s15, 8
          %s130 = smul.addr %s129, 128
          %s131 = scalar_lea.hbm %s0, %s130
          %s132 = sshll.u32 %s125, 4
          %s133 = int_to_ptr.vmem [resolvable:$true] %s132
          %138 = dma.hbm_to_vmem [thread:$0]  %s131, 1024, %s133, %s122, 128, 128, 8
        $region24: #{tpu_custom_call.1} parent=19 // pred_fallthru
          _
      $region20: #{tpu_custom_call.1} parent=5 // pred_fallthru
        _
      %p139 = scmp.le.s32.totalorder 1, %s15
      %p140 = scmp.lt.s32.totalorder %s15, 3
      %p141 = pnand %p139, %p140
      %p142 = pneg %p141
      // Predicated region
      $region25: #{tpu_custom_call.1} parent=5 // pred_check
        _
      $region26: #{tpu_custom_call.1} parent=5 // pred_check_branch
        %144 = sbr.rel (%p141) target = $region28
      $region27: #{tpu_custom_call.1} parent=5 // pred_region
        %s145 = ssub.s32 %s15, 1
        %s146 = sand.u32 %s28, 1
        %s147 = scalar_lea.sflag [#allocation4], %s146
        %s148 = sand.u32 %s28, 1
        %s149 = smul.addr %s148, 64
        %s150 = scalar_lea.vmem [#allocation3], %s149
        // Predicated region
        $region29: #{tpu_custom_call.1} parent=27 // pred_check
          %p151 = pneg %p41
        $region30: #{tpu_custom_call.1} parent=27 // pred_check_branch
          %153 = sbr.rel (%p151) target = $region32
        $region31: #{tpu_custom_call.1} parent=27 // pred_region
          %154 = dma.done %s147, 1024
        $region32: #{tpu_custom_call.1} parent=27 // pred_fallthru
          _
        // Predicated region
        $region33: #{tpu_custom_call.1} parent=27 // pred_check
          %p155 = pneg %p62
        $region34: #{tpu_custom_call.1} parent=27 // pred_check_branch
          %157 = sbr.rel (%p155) target = $region36
        $region35: #{tpu_custom_call.1} parent=27 // pred_region
          %158 = dma.done [#allocation6], 16
        $region36: #{tpu_custom_call.1} parent=27 // pred_fallthru
          _
        %159 = sfence
        %s160 = sand.u32 %s28, 1
        %s161 = scalar_lea.sflag [#allocation4], %s160
        %s162 = sand.u32 %s28, 1
        %s163 = smul.addr %s162, 64
        %s164 = scalar_lea.vmem [#allocation3], %s163
        %p165 = pneg %p41
        %p166 = pneg %p38
        %p167 = pneg %p62
        %p168 = pneg %p59
        %p169 = pneg %p88
        %p170 = pneg %p85
        %s171 = sand.u32 %s75, 1
        %s172 = scalar_lea.sflag [#allocation5], %s171
        %s173 = sand.u32 %s75, 1
        %s174 = smul.addr %s173, 16
        %s175 = scalar_lea.vmem [#allocation8], %s174
        %176 = vst [vmem:[#allocation2] sm:$0xff] 0.0
        %177 = vst [vmem:[#allocation2 + $0x8] sm:$0xff] 0.0
        %178 = vst [vmem:[#allocation2 + $0x10] sm:$0xff] 0.0
        %179 = vst [vmem:[#allocation2 + $0x18] sm:$0xff] 0.0
        %180 = vst [vmem:[#allocation2 + $0x20] sm:$0xff] 0.0
        %181 = vst [vmem:[#allocation2 + $0x28] sm:$0xff] 0.0
        %182 = vst [vmem:[#allocation2 + $0x30] sm:$0xff] 0.0
        %183 = vst [vmem:[#allocation2 + $0x38] sm:$0xff] 0.0
        %184 = vst [vmem:[#allocation2 + $0x40] sm:$0xff] 0.0
        %185 = vst [vmem:[#allocation2 + $0x48] sm:$0xff] 0.0
        %186 = vst [vmem:[#allocation2 + $0x50] sm:$0xff] 0.0
        %187 = vst [vmem:[#allocation2 + $0x58] sm:$0xff] 0.0
        %v188 = vld [vmem:[%s150] sm:$0xff]
        %v189 = vld [vmem:[%s150 + $0x8] sm:$0xff]
        %s190 = scalar_lea.vmem %s150, 16 [#allocation3]
        %v191 = vld [vmem:[%s190] sm:$0xff]
        %v192 = vld [vmem:[%s190 + $0x8] sm:$0xff]
        %v193 = vadd.f32 %v188, %v191
        %v194 = vadd.f32 %v189, %v192
        %v195 = vmax.f32 %v188, %v191
        %v196 = vmax.f32 %v189, %v192
        %s197 = scalar_lea.vmem %s150, 32 [#allocation3]
        %v198 = vld [vmem:[%s197] sm:$0xff]
        %v199 = vld [vmem:[%s197 + $0x8] sm:$0xff]
        %v200 = vadd.f32 %v193, %v198
        %v201 = vadd.f32 %v194, %v199
        %v202 = vmax.f32 %v195, %v198
        %v203 = vmax.f32 %v196, %v199
        %s204 = scalar_lea.vmem %s150, 48 [#allocation3]
        %v205 = vld [vmem:[%s204] sm:$0xff]
        %v206 = vld [vmem:[%s204 + $0x8] sm:$0xff]
        %v207 = vadd.f32 %v200, %v205
        %v208 = vadd.f32 %v201, %v206
        %v209 = vmax.f32 %v202, %v205
        %v210 = vmax.f32 %v203, %v206
        %v211 = vmul.f32 %v207, 0.25
        %v212 = vmul.f32 %v208, 0.25
        %vm215 = vcmask 1042432
        %v216 = vrot.slane %v211, 5
        %v217 = vrot.slane %v212, 5
        %v218 = vsel %vm215, %v216, %v217
        %219 = vrot.lane.b32.xlu0 %v216, 3
        %v220 = vpop.permute.xlu0 %219
        %221 = vrot.lane.b32.xlu0 %v218, 3
        %v222 = vpop.permute.xlu0 %221
        %223 = vrot.lane.b32.xlu0 %v217, 3
        %v224 = vpop.permute.xlu0 %223
        %vm228 = vcmask 154651
        %229 = vst.msk [vmem:[#allocation2] sm:$0xf8] %vm228, %v220
        %vm230 = vcmask 154648
        %231 = vst.msk [vmem:[#allocation2 + $0x10] sm:$0xff] %vm230, %v222
        %vm232 = vcmask 149528
        %233 = vst.msk [vmem:[#allocation2 + $0x20] sm:$0x7] %vm232, %v224
        %v236 = vrot.slane %v209, 5
        %v237 = vrot.slane %v210, 5
        %v238 = vsel %vm215, %v236, %v237
        %239 = vrot.lane.b32.xlu0 %v236, 3
        %v240 = vpop.permute.xlu0 %239
        %241 = vrot.lane.b32.xlu0 %v238, 3
        %v242 = vpop.permute.xlu0 %241
        %243 = vrot.lane.b32.xlu0 %v237, 3
        %v244 = vpop.permute.xlu0 %243
        %s248 = scalar_lea.vmem [#allocation2], 48
        %249 = vst.msk [vmem:[%s248] sm:$0xf8] %vm228, %v240
        %250 = vst.msk [vmem:[%s248 + $0x10] sm:$0xff] %vm230, %v242
        %251 = vst.msk [vmem:[%s248 + $0x20] sm:$0x7] %vm232, %v244
        %v252 = vld [vmem:[#allocation2] sm:$0xff]
        %v253 = vld [vmem:[#allocation2 + $0x10] sm:$0xff]
        %v254 = vld [vmem:[#allocation2 + $0x20] sm:$0xff]
        %s255 = sld [smem:[#allocation7]]
        %v256 = vstv %s255
        %v257 = vmul.f32 %v252, %v256
        %v258 = vmul.f32 %v253, %v256
        %v259 = vadd.f32 %v257, 0.0
        %v260 = vadd.f32 %v258, 0.0
        %s261 = sld [smem:[#allocation7 + $0x7]]
        %v262 = vstv %s261
        %v263 = vmul.f32 %v252, %v262
        %v264 = vmul.f32 %v253, %v262
        %v265 = vmul.f32 %v254, %v262
        %vm269 = vcmask 1046528
        %v270 = vrot.slane %v263, 1
        %v271 = vrot.slane %v264, 1
        %v272 = vsel %vm269, %v270, %v271
        %v273 = vrot.slane %v265, 1
        %v274 = vsel %vm269, %v271, %v273
        %v277 = vadd.f32 %v259, %v272
        %v278 = vadd.f32 %v260, %v274
        %s279 = sld [smem:[#allocation7 + $0xe]]
        %v280 = vstv %s279
        %v281 = vmul.f32 %v252, %v280
        %v282 = vmul.f32 %v253, %v280
        %v283 = vmul.f32 %v254, %v280
        %vm287 = vcmask 1045504
        %v288 = vrot.slane %v281, 2
        %v289 = vrot.slane %v282, 2
        %v290 = vsel %vm287, %v288, %v289
        %v291 = vrot.slane %v283, 2
        %v292 = vsel %vm287, %v289, %v291
        %v295 = vadd.f32 %v277, %v290
        %v296 = vadd.f32 %v278, %v292
        %s297 = sld [smem:[#allocation7 + $0x15]]
        %v298 = vstv %s297
        %v299 = vmul.f32 %v252, %v298
        %v300 = vmul.f32 %v253, %v298
        %v301 = vmul.f32 %v254, %v298
        %vm305 = vcmask 1044480
        %v306 = vrot.slane %v299, 3
        %v307 = vrot.slane %v300, 3
        %v308 = vsel %vm305, %v306, %v307
        %v309 = vrot.slane %v301, 3
        %v310 = vsel %vm305, %v307, %v309
        %v313 = vadd.f32 %v295, %v308
        %v314 = vadd.f32 %v296, %v310
        %s315 = sld [smem:[#allocation7 + $0x1c]]
        %v316 = vstv %s315
        %v317 = vmul.f32 %v252, %v316
        %v318 = vmul.f32 %v253, %v316
        %v319 = vmul.f32 %v254, %v316
        %vm323 = vcmask 1043456
        %v324 = vrot.slane %v317, 4
        %v325 = vrot.slane %v318, 4
        %v326 = vsel %vm323, %v324, %v325
        %v327 = vrot.slane %v319, 4
        %v328 = vsel %vm323, %v325, %v327
        %v331 = vadd.f32 %v313, %v326
        %v332 = vadd.f32 %v314, %v328
        %s333 = sld [smem:[#allocation7 + $0x23]]
        %v334 = vstv %s333
        %v335 = vmul.f32 %v252, %v334
        %v336 = vmul.f32 %v253, %v334
        %v337 = vmul.f32 %v254, %v334
        %v341 = vrot.slane %v335, 5
        %v342 = vrot.slane %v336, 5
        %v343 = vsel %vm215, %v341, %v342
        %v344 = vrot.slane %v337, 5
        %v345 = vsel %vm215, %v342, %v344
        %v348 = vadd.f32 %v331, %v343
        %v349 = vadd.f32 %v332, %v345
        %s350 = sld [smem:[#allocation7 + $0x2a]]
        %v351 = vstv %s350
        %v352 = vmul.f32 %v252, %v351
        %v353 = vmul.f32 %v253, %v351
        %v354 = vmul.f32 %v254, %v351
        %vm358 = vcmask 1041408
        %v359 = vrot.slane %v352, 6
        %v360 = vrot.slane %v353, 6
        %v361 = vsel %vm358, %v359, %v360
        %v362 = vrot.slane %v354, 6
        %v363 = vsel %vm358, %v360, %v362
        %v366 = vadd.f32 %v348, %v361
        %v367 = vadd.f32 %v349, %v363
        %v368 = vld [vmem:[#allocation2] sm:$0xff]
        %v369 = vld [vmem:[#allocation2 + $0x8] sm:$0xff]
        %v370 = vld [vmem:[#allocation2 + $0x10] sm:$0xff]
        %v371 = vld [vmem:[#allocation2 + $0x18] sm:$0xff]
        %v372 = vld [vmem:[#allocation2 + $0x20] sm:$0xff]
        %v373 = vld [vmem:[#allocation2 + $0x28] sm:$0xff]
        %s374 = sld [smem:[#allocation7 + $0x1]]
        %v375 = vstv %s374
        %v376 = vmul.f32 %v368, %v375
        %v377 = vmul.f32 %v369, %v375
        %v378 = vmul.f32 %v370, %v375
        %v379 = vmul.f32 %v371, %v375
        %384 = vrot.lane.b32.xlu0 %v376, 127
        %v385 = vpop.permute.xlu0 %384
        %386 = vrot.lane.b32.xlu0 %v377, 127
        %v387 = vpop.permute.xlu0 %386
        %388 = vrot.lane.b32.xlu0 %v378, 127
        %v389 = vpop.permute.xlu0 %388
        %390 = vrot.lane.b32.xlu0 %v379, 127
        %v391 = vpop.permute.xlu0 %390
        %vm392 = vcmask 1039360
        %v393 = vsel %vm392, %v385, %v387
        %v394 = vsel %vm392, %v389, %v391
        %v397 = vadd.f32 %v366, %v393
        %v398 = vadd.f32 %v367, %v394
        %s399 = sld [smem:[#allocation7 + $0x8]]
        %v400 = vstv %s399
        %v401 = vmul.f32 %v368, %v400
        %v402 = vmul.f32 %v369, %v400
        %v403 = vmul.f32 %v370, %v400
        %v404 = vmul.f32 %v371, %v400
        %v405 = vmul.f32 %v372, %v400
        %v406 = vmul.f32 %v373, %v400
        %v413 = vrot.slane %v401, 1
        %v414 = vrot.slane %v403, 1
        %v415 = vsel %vm269, %v413, %v414
        %v416 = vrot.slane %v402, 1
        %v417 = vrot.slane %v404, 1
        %v418 = vsel %vm269, %v416, %v417
        %v419 = vrot.slane %v405, 1
        %v420 = vsel %vm269, %v414, %v419
        %v421 = vrot.slane %v406, 1
        %v422 = vsel %vm269, %v417, %v421
        %423 = vrot.lane.b32.xlu0 %v415, 127
        %v424 = vpop.permute.xlu0 %423
        %425 = vrot.lane.b32.xlu0 %v418, 127
        %v426 = vpop.permute.xlu0 %425
        %427 = vrot.lane.b32.xlu0 %v420, 127
        %v428 = vpop.permute.xlu0 %427
        %429 = vrot.lane.b32.xlu0 %v422, 127
        %v430 = vpop.permute.xlu0 %429
        %v431 = vsel %vm392, %v424, %v426
        %v432 = vsel %vm392, %v428, %v430
        %v435 = vadd.f32 %v397, %v431
        %v436 = vadd.f32 %v398, %v432
        %s437 = sld [smem:[#allocation7 + $0xf]]
        %v438 = vstv %s437
        %v439 = vmul.f32 %v368, %v438
        %v440 = vmul.f32 %v369, %v438
        %v441 = vmul.f32 %v370, %v438
        %v442 = vmul.f32 %v371, %v438
        %v443 = vmul.f32 %v372, %v438
        %v444 = vmul.f32 %v373, %v438
        %v451 = vrot.slane %v439, 2
        %v452 = vrot.slane %v441, 2
        %v453 = vsel %vm287, %v451, %v452
        %v454 = vrot.slane %v440, 2
        %v455 = vrot.slane %v442, 2
        %v456 = vsel %vm287, %v454, %v455
        %v457 = vrot.slane %v443, 2
        %v458 = vsel %vm287, %v452, %v457
        %v459 = vrot.slane %v444, 2
        %v460 = vsel %vm287, %v455, %v459
        %461 = vrot.lane.b32.xlu0 %v453, 127
        %v462 = vpop.permute.xlu0 %461
        %463 = vrot.lane.b32.xlu0 %v456, 127
        %v464 = vpop.permute.xlu0 %463
        %465 = vrot.lane.b32.xlu0 %v458, 127
        %v466 = vpop.permute.xlu0 %465
        %467 = vrot.lane.b32.xlu0 %v460, 127
        %v468 = vpop.permute.xlu0 %467
        %v469 = vsel %vm392, %v462, %v464
        %v470 = vsel %vm392, %v466, %v468
        %v473 = vadd.f32 %v435, %v469
        %v474 = vadd.f32 %v436, %v470
        %s475 = sld [smem:[#allocation7 + $0x16]]
        %v476 = vstv %s475
        %v477 = vmul.f32 %v368, %v476
        %v478 = vmul.f32 %v369, %v476
        %v479 = vmul.f32 %v370, %v476
        %v480 = vmul.f32 %v371, %v476
        %v481 = vmul.f32 %v372, %v476
        %v482 = vmul.f32 %v373, %v476
        %v489 = vrot.slane %v477, 3
        %v490 = vrot.slane %v479, 3
        %v491 = vsel %vm305, %v489, %v490
        %v492 = vrot.slane %v478, 3
        %v493 = vrot.slane %v480, 3
        %v494 = vsel %vm305, %v492, %v493
        %v495 = vrot.slane %v481, 3
        %v496 = vsel %vm305, %v490, %v495
        %v497 = vrot.slane %v482, 3
        %v498 = vsel %vm305, %v493, %v497
        %499 = vrot.lane.b32.xlu0 %v491, 127
        %v500 = vpop.permute.xlu0 %499
        %501 = vrot.lane.b32.xlu0 %v494, 127
        %v502 = vpop.permute.xlu0 %501
        %503 = vrot.lane.b32.xlu0 %v496, 127
        %v504 = vpop.permute.xlu0 %503
        %505 = vrot.lane.b32.xlu0 %v498, 127
        %v506 = vpop.permute.xlu0 %505
        %v507 = vsel %vm392, %v500, %v502
        %v508 = vsel %vm392, %v504, %v506
        %v511 = vadd.f32 %v473, %v507
        %v512 = vadd.f32 %v474, %v508
        %s513 = sld [smem:[#allocation7 + $0x1d]]
        %v514 = vstv %s513
        %v515 = vmul.f32 %v368, %v514
        %v516 = vmul.f32 %v369, %v514
        %v517 = vmul.f32 %v370, %v514
        %v518 = vmul.f32 %v371, %v514
        %v519 = vmul.f32 %v372, %v514
        %v520 = vmul.f32 %v373, %v514
        %v527 = vrot.slane %v515, 4
        %v528 = vrot.slane %v517, 4
        %v529 = vsel %vm323, %v527, %v528
        %v530 = vrot.slane %v516, 4
        %v531 = vrot.slane %v518, 4
        %v532 = vsel %vm323, %v530, %v531
        %v533 = vrot.slane %v519, 4
        %v534 = vsel %vm323, %v528, %v533
        %v535 = vrot.slane %v520, 4
        %v536 = vsel %vm323, %v531, %v535
        %537 = vrot.lane.b32.xlu0 %v529, 127
        %v538 = vpop.permute.xlu0 %537
        %539 = vrot.lane.b32.xlu0 %v532, 127
        %v540 = vpop.permute.xlu0 %539
        %541 = vrot.lane.b32.xlu0 %v534, 127
        %v542 = vpop.permute.xlu0 %541
        %543 = vrot.lane.b32.xlu0 %v536, 127
        %v544 = vpop.permute.xlu0 %543
        %v545 = vsel %vm392, %v538, %v540
        %v546 = vsel %vm392, %v542, %v544
        %v549 = vadd.f32 %v511, %v545
        %v550 = vadd.f32 %v512, %v546
        %s551 = sld [smem:[#allocation7 + $0x24]]
        %v552 = vstv %s551
        %v553 = vmul.f32 %v368, %v552
        %v554 = vmul.f32 %v369, %v552
        %v555 = vmul.f32 %v370, %v552
        %v556 = vmul.f32 %v371, %v552
        %v557 = vmul.f32 %v372, %v552
        %v558 = vmul.f32 %v373, %v552
        %v565 = vrot.slane %v553, 5
        %v566 = vrot.slane %v555, 5
        %v567 = vsel %vm215, %v565, %v566
        %v568 = vrot.slane %v554, 5
        %v569 = vrot.slane %v556, 5
        %v570 = vsel %vm215, %v568, %v569
        %v571 = vrot.slane %v557, 5
        %v572 = vsel %vm215, %v566, %v571
        %v573 = vrot.slane %v558, 5
        %v574 = vsel %vm215, %v569, %v573
        %575 = vrot.lane.b32.xlu0 %v567, 127
        %v576 = vpop.permute.xlu0 %575
        %577 = vrot.lane.b32.xlu0 %v570, 127
        %v578 = vpop.permute.xlu0 %577
        %579 = vrot.lane.b32.xlu0 %v572, 127
        %v580 = vpop.permute.xlu0 %579
        %581 = vrot.lane.b32.xlu0 %v574, 127
        %v582 = vpop.permute.xlu0 %581
        %v583 = vsel %vm392, %v576, %v578
        %v584 = vsel %vm392, %v580, %v582
        %v587 = vadd.f32 %v549, %v583
        %v588 = vadd.f32 %v550, %v584
        %s589 = sld [smem:[#allocation7 + $0x2b]]
        %v590 = vstv %s589
        %v591 = vmul.f32 %v368, %v590
        %v592 = vmul.f32 %v369, %v590
        %v593 = vmul.f32 %v370, %v590
        %v594 = vmul.f32 %v371, %v590
        %v595 = vmul.f32 %v372, %v590
        %v596 = vmul.f32 %v373, %v590
        %v603 = vrot.slane %v591, 6
        %v604 = vrot.slane %v593, 6
        %v605 = vsel %vm358, %v603, %v604
        %v606 = vrot.slane %v592, 6
        %v607 = vrot.slane %v594, 6
        %v608 = vsel %vm358, %v606, %v607
        %v609 = vrot.slane %v595, 6
        %v610 = vsel %vm358, %v604, %v609
        %v611 = vrot.slane %v596, 6
        %v612 = vsel %vm358, %v607, %v611
        %613 = vrot.lane.b32.xlu0 %v605, 127
        %v614 = vpop.permute.xlu0 %613
        %615 = vrot.lane.b32.xlu0 %v608, 127
        %v616 = vpop.permute.xlu0 %615
        %617 = vrot.lane.b32.xlu0 %v610, 127
        %v618 = vpop.permute.xlu0 %617
        %619 = vrot.lane.b32.xlu0 %v612, 127
        %v620 = vpop.permute.xlu0 %619
        %v621 = vsel %vm392, %v614, %v616
        %v622 = vsel %vm392, %v618, %v620
        %v625 = vadd.f32 %v587, %v621
        %v626 = vadd.f32 %v588, %v622
        %s627 = sld [smem:[#allocation7 + $0x2]]
        %v628 = vstv %s627
        %v629 = vmul.f32 %v368, %v628
        %v630 = vmul.f32 %v369, %v628
        %v631 = vmul.f32 %v370, %v628
        %v632 = vmul.f32 %v371, %v628
        %637 = vrot.lane.b32.xlu0 %v629, 126
        %v638 = vpop.permute.xlu0 %637
        %639 = vrot.lane.b32.xlu0 %v630, 126
        %v640 = vpop.permute.xlu0 %639
        %641 = vrot.lane.b32.xlu0 %v631, 126
        %v642 = vpop.permute.xlu0 %641
        %643 = vrot.lane.b32.xlu0 %v632, 126
        %v644 = vpop.permute.xlu0 %643
        %vm645 = vcmask 1031168
        %v646 = vsel %vm645, %v638, %v640
        %v647 = vsel %vm645, %v642, %v644
        %v650 = vadd.f32 %v625, %v646
        %v651 = vadd.f32 %v626, %v647
        %s652 = sld [smem:[#allocation7 + $0x9]]
        %v653 = vstv %s652
        %v654 = vmul.f32 %v368, %v653
        %v655 = vmul.f32 %v369, %v653
        %v656 = vmul.f32 %v370, %v653
        %v657 = vmul.f32 %v371, %v653
        %v658 = vmul.f32 %v372, %v653
        %v659 = vmul.f32 %v373, %v653
        %v666 = vrot.slane %v654, 1
        %v667 = vrot.slane %v656, 1
        %v668 = vsel %vm269, %v666, %v667
        %v669 = vrot.slane %v655, 1
        %v670 = vrot.slane %v657, 1
        %v671 = vsel %vm269, %v669, %v670
        %v672 = vrot.slane %v658, 1
        %v673 = vsel %vm269, %v667, %v672
        %v674 = vrot.slane %v659, 1
        %v675 = vsel %vm269, %v670, %v674
        %676 = vrot.lane.b32.xlu0 %v668, 126
        %v677 = vpop.permute.xlu0 %676
        %678 = vrot.lane.b32.xlu0 %v671, 126
        %v679 = vpop.permute.xlu0 %678
        %680 = vrot.lane.b32.xlu0 %v673, 126
        %v681 = vpop.permute.xlu0 %680
        %682 = vrot.lane.b32.xlu0 %v675, 126
        %v683 = vpop.permute.xlu0 %682
        %v684 = vsel %vm645, %v677, %v679
        %v685 = vsel %vm645, %v681, %v683
        %v688 = vadd.f32 %v650, %v684
        %v689 = vadd.f32 %v651, %v685
        %s690 = sld [smem:[#allocation7 + $0x10]]
        %v691 = vstv %s690
        %v692 = vmul.f32 %v368, %v691
        %v693 = vmul.f32 %v369, %v691
        %v694 = vmul.f32 %v370, %v691
        %v695 = vmul.f32 %v371, %v691
        %v696 = vmul.f32 %v372, %v691
        %v697 = vmul.f32 %v373, %v691
        %v704 = vrot.slane %v692, 2
        %v705 = vrot.slane %v694, 2
        %v706 = vsel %vm287, %v704, %v705
        %v707 = vrot.slane %v693, 2
        %v708 = vrot.slane %v695, 2
        %v709 = vsel %vm287, %v707, %v708
        %v710 = vrot.slane %v696, 2
        %v711 = vsel %vm287, %v705, %v710
        %v712 = vrot.slane %v697, 2
        %v713 = vsel %vm287, %v708, %v712
        %714 = vrot.lane.b32.xlu0 %v706, 126
        %v715 = vpop.permute.xlu0 %714
        %716 = vrot.lane.b32.xlu0 %v709, 126
        %v717 = vpop.permute.xlu0 %716
        %718 = vrot.lane.b32.xlu0 %v711, 126
        %v719 = vpop.permute.xlu0 %718
        %720 = vrot.lane.b32.xlu0 %v713, 126
        %v721 = vpop.permute.xlu0 %720
        %v722 = vsel %vm645, %v715, %v717
        %v723 = vsel %vm645, %v719, %v721
        %v726 = vadd.f32 %v688, %v722
        %v727 = vadd.f32 %v689, %v723
        %s728 = sld [smem:[#allocation7 + $0x17]]
        %v729 = vstv %s728
        %v730 = vmul.f32 %v368, %v729
        %v731 = vmul.f32 %v369, %v729
        %v732 = vmul.f32 %v370, %v729
        %v733 = vmul.f32 %v371, %v729
        %v734 = vmul.f32 %v372, %v729
        %v735 = vmul.f32 %v373, %v729
        %v742 = vrot.slane %v730, 3
        %v743 = vrot.slane %v732, 3
        %v744 = vsel %vm305, %v742, %v743
        %v745 = vrot.slane %v731, 3
        %v746 = vrot.slane %v733, 3
        %v747 = vsel %vm305, %v745, %v746
        %v748 = vrot.slane %v734, 3
        %v749 = vsel %vm305, %v743, %v748
        %v750 = vrot.slane %v735, 3
        %v751 = vsel %vm305, %v746, %v750
        %752 = vrot.lane.b32.xlu0 %v744, 126
        %v753 = vpop.permute.xlu0 %752
        %754 = vrot.lane.b32.xlu0 %v747, 126
        %v755 = vpop.permute.xlu0 %754
        %756 = vrot.lane.b32.xlu0 %v749, 126
        %v757 = vpop.permute.xlu0 %756
        %758 = vrot.lane.b32.xlu0 %v751, 126
        %v759 = vpop.permute.xlu0 %758
        %v760 = vsel %vm645, %v753, %v755
        %v761 = vsel %vm645, %v757, %v759
        %v764 = vadd.f32 %v726, %v760
        %v765 = vadd.f32 %v727, %v761
        %s766 = sld [smem:[#allocation7 + $0x1e]]
        %v767 = vstv %s766
        %v768 = vmul.f32 %v368, %v767
        %v769 = vmul.f32 %v369, %v767
        %v770 = vmul.f32 %v370, %v767
        %v771 = vmul.f32 %v371, %v767
        %v772 = vmul.f32 %v372, %v767
        %v773 = vmul.f32 %v373, %v767
        %v780 = vrot.slane %v768, 4
        %v781 = vrot.slane %v770, 4
        %v782 = vsel %vm323, %v780, %v781
        %v783 = vrot.slane %v769, 4
        %v784 = vrot.slane %v771, 4
        %v785 = vsel %vm323, %v783, %v784
        %v786 = vrot.slane %v772, 4
        %v787 = vsel %vm323, %v781, %v786
        %v788 = vrot.slane %v773, 4
        %v789 = vsel %vm323, %v784, %v788
        %790 = vrot.lane.b32.xlu0 %v782, 126
        %v791 = vpop.permute.xlu0 %790
        %792 = vrot.lane.b32.xlu0 %v785, 126
        %v793 = vpop.permute.xlu0 %792
        %794 = vrot.lane.b32.xlu0 %v787, 126
        %v795 = vpop.permute.xlu0 %794
        %796 = vrot.lane.b32.xlu0 %v789, 126
        %v797 = vpop.permute.xlu0 %796
        %v798 = vsel %vm645, %v791, %v793
        %v799 = vsel %vm645, %v795, %v797
        %v802 = vadd.f32 %v764, %v798
        %v803 = vadd.f32 %v765, %v799
        %s804 = sld [smem:[#allocation7 + $0x25]]
        %v805 = vstv %s804
        %v806 = vmul.f32 %v368, %v805
        %v807 = vmul.f32 %v369, %v805
        %v808 = vmul.f32 %v370, %v805
        %v809 = vmul.f32 %v371, %v805
        %v810 = vmul.f32 %v372, %v805
        %v811 = vmul.f32 %v373, %v805
        %v818 = vrot.slane %v806, 5
        %v819 = vrot.slane %v808, 5
        %v820 = vsel %vm215, %v818, %v819
        %v821 = vrot.slane %v807, 5
        %v822 = vrot.slane %v809, 5
        %v823 = vsel %vm215, %v821, %v822
        %v824 = vrot.slane %v810, 5
        %v825 = vsel %vm215, %v819, %v824
        %v826 = vrot.slane %v811, 5
        %v827 = vsel %vm215, %v822, %v826
        %828 = vrot.lane.b32.xlu0 %v820, 126
        %v829 = vpop.permute.xlu0 %828
        %830 = vrot.lane.b32.xlu0 %v823, 126
        %v831 = vpop.permute.xlu0 %830
        %832 = vrot.lane.b32.xlu0 %v825, 126
        %v833 = vpop.permute.xlu0 %832
        %834 = vrot.lane.b32.xlu0 %v827, 126
        %v835 = vpop.permute.xlu0 %834
        %v836 = vsel %vm645, %v829, %v831
        %v837 = vsel %vm645, %v833, %v835
        %v840 = vadd.f32 %v802, %v836
        %v841 = vadd.f32 %v803, %v837
        %s842 = sld [smem:[#allocation7 + $0x2c]]
        %v843 = vstv %s842
        %v844 = vmul.f32 %v368, %v843
        %v845 = vmul.f32 %v369, %v843
        %v846 = vmul.f32 %v370, %v843
        %v847 = vmul.f32 %v371, %v843
        %v848 = vmul.f32 %v372, %v843
        %v849 = vmul.f32 %v373, %v843
        %v856 = vrot.slane %v844, 6
        %v857 = vrot.slane %v846, 6
        %v858 = vsel %vm358, %v856, %v857
        %v859 = vrot.slane %v845, 6
        %v860 = vrot.slane %v847, 6
        %v861 = vsel %vm358, %v859, %v860
        %v862 = vrot.slane %v848, 6
        %v863 = vsel %vm358, %v857, %v862
        %v864 = vrot.slane %v849, 6
        %v865 = vsel %vm358, %v860, %v864
        %866 = vrot.lane.b32.xlu0 %v858, 126
        %v867 = vpop.permute.xlu0 %866
        %868 = vrot.lane.b32.xlu0 %v861, 126
        %v869 = vpop.permute.xlu0 %868
        %870 = vrot.lane.b32.xlu0 %v863, 126
        %v871 = vpop.permute.xlu0 %870
        %872 = vrot.lane.b32.xlu0 %v865, 126
        %v873 = vpop.permute.xlu0 %872
        %v874 = vsel %vm645, %v867, %v869
        %v875 = vsel %vm645, %v871, %v873
        %v878 = vadd.f32 %v840, %v874
        %v879 = vadd.f32 %v841, %v875
        %s880 = sld [smem:[#allocation7 + $0x3]]
        %v881 = vstv %s880
        %v882 = vmul.f32 %v368, %v881
        %v883 = vmul.f32 %v369, %v881
        %v884 = vmul.f32 %v370, %v881
        %v885 = vmul.f32 %v371, %v881
        %890 = vrot.lane.b32.xlu0 %v882, 125
        %v891 = vpop.permute.xlu0 %890
        %892 = vrot.lane.b32.xlu0 %v883, 125
        %v893 = vpop.permute.xlu0 %892
        %894 = vrot.lane.b32.xlu0 %v884, 125
        %v895 = vpop.permute.xlu0 %894
        %896 = vrot.lane.b32.xlu0 %v885, 125
        %v897 = vpop.permute.xlu0 %896
        %vm898 = vcmask 1022976
        %v899 = vsel %vm898, %v891, %v893
        %v900 = vsel %vm898, %v895, %v897
        %v903 = vadd.f32 %v878, %v899
        %v904 = vadd.f32 %v879, %v900
        %s905 = sld [smem:[#allocation7 + $0xa]]
        %v906 = vstv %s905
        %v907 = vmul.f32 %v368, %v906
        %v908 = vmul.f32 %v369, %v906
        %v909 = vmul.f32 %v370, %v906
        %v910 = vmul.f32 %v371, %v906
        %v911 = vmul.f32 %v372, %v906
        %v912 = vmul.f32 %v373, %v906
        %v919 = vrot.slane %v907, 1
        %v920 = vrot.slane %v909, 1
        %v921 = vsel %vm269, %v919, %v920
        %v922 = vrot.slane %v908, 1
        %v923 = vrot.slane %v910, 1
        %v924 = vsel %vm269, %v922, %v923
        %v925 = vrot.slane %v911, 1
        %v926 = vsel %vm269, %v920, %v925
        %v927 = vrot.slane %v912, 1
        %v928 = vsel %vm269, %v923, %v927
        %929 = vrot.lane.b32.xlu0 %v921, 125
        %v930 = vpop.permute.xlu0 %929
        %931 = vrot.lane.b32.xlu0 %v924, 125
        %v932 = vpop.permute.xlu0 %931
        %933 = vrot.lane.b32.xlu0 %v926, 125
        %v934 = vpop.permute.xlu0 %933
        %935 = vrot.lane.b32.xlu0 %v928, 125
        %v936 = vpop.permute.xlu0 %935
        %v937 = vsel %vm898, %v930, %v932
        %v938 = vsel %vm898, %v934, %v936
        %v941 = vadd.f32 %v903, %v937
        %v942 = vadd.f32 %v904, %v938
        %s943 = sld [smem:[#allocation7 + $0x11]]
        %v944 = vstv %s943
        %v945 = vmul.f32 %v368, %v944
        %v946 = vmul.f32 %v369, %v944
        %v947 = vmul.f32 %v370, %v944
        %v948 = vmul.f32 %v371, %v944
        %v949 = vmul.f32 %v372, %v944
        %v950 = vmul.f32 %v373, %v944
        %v957 = vrot.slane %v945, 2
        %v958 = vrot.slane %v947, 2
        %v959 = vsel %vm287, %v957, %v958
        %v960 = vrot.slane %v946, 2
        %v961 = vrot.slane %v948, 2
        %v962 = vsel %vm287, %v960, %v961
        %v963 = vrot.slane %v949, 2
        %v964 = vsel %vm287, %v958, %v963
        %v965 = vrot.slane %v950, 2
        %v966 = vsel %vm287, %v961, %v965
        %967 = vrot.lane.b32.xlu0 %v959, 125
        %v968 = vpop.permute.xlu0 %967
        %969 = vrot.lane.b32.xlu0 %v962, 125
        %v970 = vpop.permute.xlu0 %969
        %971 = vrot.lane.b32.xlu0 %v964, 125
        %v972 = vpop.permute.xlu0 %971
        %973 = vrot.lane.b32.xlu0 %v966, 125
        %v974 = vpop.permute.xlu0 %973
        %v975 = vsel %vm898, %v968, %v970
        %v976 = vsel %vm898, %v972, %v974
        %v979 = vadd.f32 %v941, %v975
        %v980 = vadd.f32 %v942, %v976
        %s981 = sld [smem:[#allocation7 + $0x18]]
        %v982 = vstv %s981
        %v983 = vmul.f32 %v368, %v982
        %v984 = vmul.f32 %v369, %v982
        %v985 = vmul.f32 %v370, %v982
        %v986 = vmul.f32 %v371, %v982
        %v987 = vmul.f32 %v372, %v982
        %v988 = vmul.f32 %v373, %v982
        %v995 = vrot.slane %v983, 3
        %v996 = vrot.slane %v985, 3
        %v997 = vsel %vm305, %v995, %v996
        %v998 = vrot.slane %v984, 3
        %v999 = vrot.slane %v986, 3
        %v1000 = vsel %vm305, %v998, %v999
        %v1001 = vrot.slane %v987, 3
        %v1002 = vsel %vm305, %v996, %v1001
        %v1003 = vrot.slane %v988, 3
        %v1004 = vsel %vm305, %v999, %v1003
        %1005 = vrot.lane.b32.xlu0 %v997, 125
        %v1006 = vpop.permute.xlu0 %1005
        %1007 = vrot.lane.b32.xlu0 %v1000, 125
        %v1008 = vpop.permute.xlu0 %1007
        %1009 = vrot.lane.b32.xlu0 %v1002, 125
        %v1010 = vpop.permute.xlu0 %1009
        %1011 = vrot.lane.b32.xlu0 %v1004, 125
        %v1012 = vpop.permute.xlu0 %1011
        %v1013 = vsel %vm898, %v1006, %v1008
        %v1014 = vsel %vm898, %v1010, %v1012
        %v1017 = vadd.f32 %v979, %v1013
        %v1018 = vadd.f32 %v980, %v1014
        %s1019 = sld [smem:[#allocation7 + $0x1f]]
        %v1020 = vstv %s1019
        %v1021 = vmul.f32 %v368, %v1020
        %v1022 = vmul.f32 %v369, %v1020
        %v1023 = vmul.f32 %v370, %v1020
        %v1024 = vmul.f32 %v371, %v1020
        %v1025 = vmul.f32 %v372, %v1020
        %v1026 = vmul.f32 %v373, %v1020
        %v1033 = vrot.slane %v1021, 4
        %v1034 = vrot.slane %v1023, 4
        %v1035 = vsel %vm323, %v1033, %v1034
        %v1036 = vrot.slane %v1022, 4
        %v1037 = vrot.slane %v1024, 4
        %v1038 = vsel %vm323, %v1036, %v1037
        %v1039 = vrot.slane %v1025, 4
        %v1040 = vsel %vm323, %v1034, %v1039
        %v1041 = vrot.slane %v1026, 4
        %v1042 = vsel %vm323, %v1037, %v1041
        %1043 = vrot.lane.b32.xlu0 %v1035, 125
        %v1044 = vpop.permute.xlu0 %1043
        %1045 = vrot.lane.b32.xlu0 %v1038, 125
        %v1046 = vpop.permute.xlu0 %1045
        %1047 = vrot.lane.b32.xlu0 %v1040, 125
        %v1048 = vpop.permute.xlu0 %1047
        %1049 = vrot.lane.b32.xlu0 %v1042, 125
        %v1050 = vpop.permute.xlu0 %1049
        %v1051 = vsel %vm898, %v1044, %v1046
        %v1052 = vsel %vm898, %v1048, %v1050
        %v1055 = vadd.f32 %v1017, %v1051
        %v1056 = vadd.f32 %v1018, %v1052
        %s1057 = sld [smem:[#allocation7 + $0x26]]
        %v1058 = vstv %s1057
        %v1059 = vmul.f32 %v368, %v1058
        %v1060 = vmul.f32 %v369, %v1058
        %v1061 = vmul.f32 %v370, %v1058
        %v1062 = vmul.f32 %v371, %v1058
        %v1063 = vmul.f32 %v372, %v1058
        %v1064 = vmul.f32 %v373, %v1058
        %v1071 = vrot.slane %v1059, 5
        %v1072 = vrot.slane %v1061, 5
        %v1073 = vsel %vm215, %v1071, %v1072
        %v1074 = vrot.slane %v1060, 5
        %v1075 = vrot.slane %v1062, 5
        %v1076 = vsel %vm215, %v1074, %v1075
        %v1077 = vrot.slane %v1063, 5
        %v1078 = vsel %vm215, %v1072, %v1077
        %v1079 = vrot.slane %v1064, 5
        %v1080 = vsel %vm215, %v1075, %v1079
        %1081 = vrot.lane.b32.xlu0 %v1073, 125
        %v1082 = vpop.permute.xlu0 %1081
        %1083 = vrot.lane.b32.xlu0 %v1076, 125
        %v1084 = vpop.permute.xlu0 %1083
        %1085 = vrot.lane.b32.xlu0 %v1078, 125
        %v1086 = vpop.permute.xlu0 %1085
        %1087 = vrot.lane.b32.xlu0 %v1080, 125
        %v1088 = vpop.permute.xlu0 %1087
        %v1089 = vsel %vm898, %v1082, %v1084
        %v1090 = vsel %vm898, %v1086, %v1088
        %v1093 = vadd.f32 %v1055, %v1089
        %v1094 = vadd.f32 %v1056, %v1090
        %s1095 = sld [smem:[#allocation7 + $0x2d]]
        %v1096 = vstv %s1095
        %v1097 = vmul.f32 %v368, %v1096
        %v1098 = vmul.f32 %v369, %v1096
        %v1099 = vmul.f32 %v370, %v1096
        %v1100 = vmul.f32 %v371, %v1096
        %v1101 = vmul.f32 %v372, %v1096
        %v1102 = vmul.f32 %v373, %v1096
        %v1109 = vrot.slane %v1097, 6
        %v1110 = vrot.slane %v1099, 6
        %v1111 = vsel %vm358, %v1109, %v1110
        %v1112 = vrot.slane %v1098, 6
        %v1113 = vrot.slane %v1100, 6
        %v1114 = vsel %vm358, %v1112, %v1113
        %v1115 = vrot.slane %v1101, 6
        %v1116 = vsel %vm358, %v1110, %v1115
        %v1117 = vrot.slane %v1102, 6
        %v1118 = vsel %vm358, %v1113, %v1117
        %1119 = vrot.lane.b32.xlu0 %v1111, 125
        %v1120 = vpop.permute.xlu0 %1119
        %1121 = vrot.lane.b32.xlu0 %v1114, 125
        %v1122 = vpop.permute.xlu0 %1121
        %1123 = vrot.lane.b32.xlu0 %v1116, 125
        %v1124 = vpop.permute.xlu0 %1123
        %1125 = vrot.lane.b32.xlu0 %v1118, 125
        %v1126 = vpop.permute.xlu0 %1125
        %v1127 = vsel %vm898, %v1120, %v1122
        %v1128 = vsel %vm898, %v1124, %v1126
        %v1131 = vadd.f32 %v1093, %v1127
        %v1132 = vadd.f32 %v1094, %v1128
        %s1133 = sld [smem:[#allocation7 + $0x4]]
        %v1134 = vstv %s1133
        %v1135 = vmul.f32 %v368, %v1134
        %v1136 = vmul.f32 %v369, %v1134
        %v1137 = vmul.f32 %v370, %v1134
        %v1138 = vmul.f32 %v371, %v1134
        %1143 = vrot.lane.b32.xlu0 %v1135, 124
        %v1144 = vpop.permute.xlu0 %1143
        %1145 = vrot.lane.b32.xlu0 %v1136, 124
        %v1146 = vpop.permute.xlu0 %1145
        %1147 = vrot.lane.b32.xlu0 %v1137, 124
        %v1148 = vpop.permute.xlu0 %1147
        %1149 = vrot.lane.b32.xlu0 %v1138, 124
        %v1150 = vpop.permute.xlu0 %1149
        %vm1151 = vcmask 1014784
        %v1152 = vsel %vm1151, %v1144, %v1146
        %v1153 = vsel %vm1151, %v1148, %v1150
        %v1156 = vadd.f32 %v1131, %v1152
        %v1157 = vadd.f32 %v1132, %v1153
        %s1158 = sld [smem:[#allocation7 + $0xb]]
        %v1159 = vstv %s1158
        %v1160 = vmul.f32 %v368, %v1159
        %v1161 = vmul.f32 %v369, %v1159
        %v1162 = vmul.f32 %v370, %v1159
        %v1163 = vmul.f32 %v371, %v1159
        %v1164 = vmul.f32 %v372, %v1159
        %v1165 = vmul.f32 %v373, %v1159
        %v1172 = vrot.slane %v1160, 1
        %v1173 = vrot.slane %v1162, 1
        %v1174 = vsel %vm269, %v1172, %v1173
        %v1175 = vrot.slane %v1161, 1
        %v1176 = vrot.slane %v1163, 1
        %v1177 = vsel %vm269, %v1175, %v1176
        %v1178 = vrot.slane %v1164, 1
        %v1179 = vsel %vm269, %v1173, %v1178
        %v1180 = vrot.slane %v1165, 1
        %v1181 = vsel %vm269, %v1176, %v1180
        %1182 = vrot.lane.b32.xlu0 %v1174, 124
        %v1183 = vpop.permute.xlu0 %1182
        %1184 = vrot.lane.b32.xlu0 %v1177, 124
        %v1185 = vpop.permute.xlu0 %1184
        %1186 = vrot.lane.b32.xlu0 %v1179, 124
        %v1187 = vpop.permute.xlu0 %1186
        %1188 = vrot.lane.b32.xlu0 %v1181, 124
        %v1189 = vpop.permute.xlu0 %1188
        %v1190 = vsel %vm1151, %v1183, %v1185
        %v1191 = vsel %vm1151, %v1187, %v1189
        %v1194 = vadd.f32 %v1156, %v1190
        %v1195 = vadd.f32 %v1157, %v1191
        %s1196 = sld [smem:[#allocation7 + $0x12]]
        %v1197 = vstv %s1196
        %v1198 = vmul.f32 %v368, %v1197
        %v1199 = vmul.f32 %v369, %v1197
        %v1200 = vmul.f32 %v370, %v1197
        %v1201 = vmul.f32 %v371, %v1197
        %v1202 = vmul.f32 %v372, %v1197
        %v1203 = vmul.f32 %v373, %v1197
        %v1210 = vrot.slane %v1198, 2
        %v1211 = vrot.slane %v1200, 2
        %v1212 = vsel %vm287, %v1210, %v1211
        %v1213 = vrot.slane %v1199, 2
        %v1214 = vrot.slane %v1201, 2
        %v1215 = vsel %vm287, %v1213, %v1214
        %v1216 = vrot.slane %v1202, 2
        %v1217 = vsel %vm287, %v1211, %v1216
        %v1218 = vrot.slane %v1203, 2
        %v1219 = vsel %vm287, %v1214, %v1218
        %1220 = vrot.lane.b32.xlu0 %v1212, 124
        %v1221 = vpop.permute.xlu0 %1220
        %1222 = vrot.lane.b32.xlu0 %v1215, 124
        %v1223 = vpop.permute.xlu0 %1222
        %1224 = vrot.lane.b32.xlu0 %v1217, 124
        %v1225 = vpop.permute.xlu0 %1224
        %1226 = vrot.lane.b32.xlu0 %v1219, 124
        %v1227 = vpop.permute.xlu0 %1226
        %v1228 = vsel %vm1151, %v1221, %v1223
        %v1229 = vsel %vm1151, %v1225, %v1227
        %v1232 = vadd.f32 %v1194, %v1228
        %v1233 = vadd.f32 %v1195, %v1229
        %s1234 = sld [smem:[#allocation7 + $0x19]]
        %v1235 = vstv %s1234
        %v1236 = vmul.f32 %v368, %v1235
        %v1237 = vmul.f32 %v369, %v1235
        %v1238 = vmul.f32 %v370, %v1235
        %v1239 = vmul.f32 %v371, %v1235
        %v1240 = vmul.f32 %v372, %v1235
        %v1241 = vmul.f32 %v373, %v1235
        %v1248 = vrot.slane %v1236, 3
        %v1249 = vrot.slane %v1238, 3
        %v1250 = vsel %vm305, %v1248, %v1249
        %v1251 = vrot.slane %v1237, 3
        %v1252 = vrot.slane %v1239, 3
        %v1253 = vsel %vm305, %v1251, %v1252
        %v1254 = vrot.slane %v1240, 3
        %v1255 = vsel %vm305, %v1249, %v1254
        %v1256 = vrot.slane %v1241, 3
        %v1257 = vsel %vm305, %v1252, %v1256
        %1258 = vrot.lane.b32.xlu0 %v1250, 124
        %v1259 = vpop.permute.xlu0 %1258
        %1260 = vrot.lane.b32.xlu0 %v1253, 124
        %v1261 = vpop.permute.xlu0 %1260
        %1262 = vrot.lane.b32.xlu0 %v1255, 124
        %v1263 = vpop.permute.xlu0 %1262
        %1264 = vrot.lane.b32.xlu0 %v1257, 124
        %v1265 = vpop.permute.xlu0 %1264
        %v1266 = vsel %vm1151, %v1259, %v1261
        %v1267 = vsel %vm1151, %v1263, %v1265
        %v1270 = vadd.f32 %v1232, %v1266
        %v1271 = vadd.f32 %v1233, %v1267
        %s1272 = sld [smem:[#allocation7 + $0x20]]
        %v1273 = vstv %s1272
        %v1274 = vmul.f32 %v368, %v1273
        %v1275 = vmul.f32 %v369, %v1273
        %v1276 = vmul.f32 %v370, %v1273
        %v1277 = vmul.f32 %v371, %v1273
        %v1278 = vmul.f32 %v372, %v1273
        %v1279 = vmul.f32 %v373, %v1273
        %v1286 = vrot.slane %v1274, 4
        %v1287 = vrot.slane %v1276, 4
        %v1288 = vsel %vm323, %v1286, %v1287
        %v1289 = vrot.slane %v1275, 4
        %v1290 = vrot.slane %v1277, 4
        %v1291 = vsel %vm323, %v1289, %v1290
        %v1292 = vrot.slane %v1278, 4
        %v1293 = vsel %vm323, %v1287, %v1292
        %v1294 = vrot.slane %v1279, 4
        %v1295 = vsel %vm323, %v1290, %v1294
        %1296 = vrot.lane.b32.xlu0 %v1288, 124
        %v1297 = vpop.permute.xlu0 %1296
        %1298 = vrot.lane.b32.xlu0 %v1291, 124
        %v1299 = vpop.permute.xlu0 %1298
        %1300 = vrot.lane.b32.xlu0 %v1293, 124
        %v1301 = vpop.permute.xlu0 %1300
        %1302 = vrot.lane.b32.xlu0 %v1295, 124
        %v1303 = vpop.permute.xlu0 %1302
        %v1304 = vsel %vm1151, %v1297, %v1299
        %v1305 = vsel %vm1151, %v1301, %v1303
        %v1308 = vadd.f32 %v1270, %v1304
        %v1309 = vadd.f32 %v1271, %v1305
        %s1310 = sld [smem:[#allocation7 + $0x27]]
        %v1311 = vstv %s1310
        %v1312 = vmul.f32 %v368, %v1311
        %v1313 = vmul.f32 %v369, %v1311
        %v1314 = vmul.f32 %v370, %v1311
        %v1315 = vmul.f32 %v371, %v1311
        %v1316 = vmul.f32 %v372, %v1311
        %v1317 = vmul.f32 %v373, %v1311
        %v1324 = vrot.slane %v1312, 5
        %v1325 = vrot.slane %v1314, 5
        %v1326 = vsel %vm215, %v1324, %v1325
        %v1327 = vrot.slane %v1313, 5
        %v1328 = vrot.slane %v1315, 5
        %v1329 = vsel %vm215, %v1327, %v1328
        %v1330 = vrot.slane %v1316, 5
        %v1331 = vsel %vm215, %v1325, %v1330
        %v1332 = vrot.slane %v1317, 5
        %v1333 = vsel %vm215, %v1328, %v1332
        %1334 = vrot.lane.b32.xlu0 %v1326, 124
        %v1335 = vpop.permute.xlu0 %1334
        %1336 = vrot.lane.b32.xlu0 %v1329, 124
        %v1337 = vpop.permute.xlu0 %1336
        %1338 = vrot.lane.b32.xlu0 %v1331, 124
        %v1339 = vpop.permute.xlu0 %1338
        %1340 = vrot.lane.b32.xlu0 %v1333, 124
        %v1341 = vpop.permute.xlu0 %1340
        %v1342 = vsel %vm1151, %v1335, %v1337
        %v1343 = vsel %vm1151, %v1339, %v1341
        %v1346 = vadd.f32 %v1308, %v1342
        %v1347 = vadd.f32 %v1309, %v1343
        %s1348 = sld [smem:[#allocation7 + $0x2e]]
        %v1349 = vstv %s1348
        %v1350 = vmul.f32 %v368, %v1349
        %v1351 = vmul.f32 %v369, %v1349
        %v1352 = vmul.f32 %v370, %v1349
        %v1353 = vmul.f32 %v371, %v1349
        %v1354 = vmul.f32 %v372, %v1349
        %v1355 = vmul.f32 %v373, %v1349
        %v1362 = vrot.slane %v1350, 6
        %v1363 = vrot.slane %v1352, 6
        %v1364 = vsel %vm358, %v1362, %v1363
        %v1365 = vrot.slane %v1351, 6
        %v1366 = vrot.slane %v1353, 6
        %v1367 = vsel %vm358, %v1365, %v1366
        %v1368 = vrot.slane %v1354, 6
        %v1369 = vsel %vm358, %v1363, %v1368
        %v1370 = vrot.slane %v1355, 6
        %v1371 = vsel %vm358, %v1366, %v1370
        %1372 = vrot.lane.b32.xlu0 %v1364, 124
        %v1373 = vpop.permute.xlu0 %1372
        %1374 = vrot.lane.b32.xlu0 %v1367, 124
        %v1375 = vpop.permute.xlu0 %1374
        %1376 = vrot.lane.b32.xlu0 %v1369, 124
        %v1377 = vpop.permute.xlu0 %1376
        %1378 = vrot.lane.b32.xlu0 %v1371, 124
        %v1379 = vpop.permute.xlu0 %1378
        %v1380 = vsel %vm1151, %v1373, %v1375
        %v1381 = vsel %vm1151, %v1377, %v1379
        %v1384 = vadd.f32 %v1346, %v1380
        %v1385 = vadd.f32 %v1347, %v1381
        %s1386 = sld [smem:[#allocation7 + $0x5]]
        %v1387 = vstv %s1386
        %v1388 = vmul.f32 %v368, %v1387
        %v1389 = vmul.f32 %v369, %v1387
        %v1390 = vmul.f32 %v370, %v1387
        %v1391 = vmul.f32 %v371, %v1387
        %1396 = vrot.lane.b32.xlu0 %v1388, 123
        %v1397 = vpop.permute.xlu0 %1396
        %1398 = vrot.lane.b32.xlu0 %v1389, 123
        %v1399 = vpop.permute.xlu0 %1398
        %1400 = vrot.lane.b32.xlu0 %v1390, 123
        %v1401 = vpop.permute.xlu0 %1400
        %1402 = vrot.lane.b32.xlu0 %v1391, 123
        %v1403 = vpop.permute.xlu0 %1402
        %vm1404 = vcmask 1006592
        %v1405 = vsel %vm1404, %v1397, %v1399
        %v1406 = vsel %vm1404, %v1401, %v1403
        %v1409 = vadd.f32 %v1384, %v1405
        %v1410 = vadd.f32 %v1385, %v1406
        %s1411 = sld [smem:[#allocation7 + $0xc]]
        %v1412 = vstv %s1411
        %v1413 = vmul.f32 %v368, %v1412
        %v1414 = vmul.f32 %v369, %v1412
        %v1415 = vmul.f32 %v370, %v1412
        %v1416 = vmul.f32 %v371, %v1412
        %v1417 = vmul.f32 %v372, %v1412
        %v1418 = vmul.f32 %v373, %v1412
        %v1425 = vrot.slane %v1413, 1
        %v1426 = vrot.slane %v1415, 1
        %v1427 = vsel %vm269, %v1425, %v1426
        %v1428 = vrot.slane %v1414, 1
        %v1429 = vrot.slane %v1416, 1
        %v1430 = vsel %vm269, %v1428, %v1429
        %v1431 = vrot.slane %v1417, 1
        %v1432 = vsel %vm269, %v1426, %v1431
        %v1433 = vrot.slane %v1418, 1
        %v1434 = vsel %vm269, %v1429, %v1433
        %1435 = vrot.lane.b32.xlu0 %v1427, 123
        %v1436 = vpop.permute.xlu0 %1435
        %1437 = vrot.lane.b32.xlu0 %v1430, 123
        %v1438 = vpop.permute.xlu0 %1437
        %1439 = vrot.lane.b32.xlu0 %v1432, 123
        %v1440 = vpop.permute.xlu0 %1439
        %1441 = vrot.lane.b32.xlu0 %v1434, 123
        %v1442 = vpop.permute.xlu0 %1441
        %v1443 = vsel %vm1404, %v1436, %v1438
        %v1444 = vsel %vm1404, %v1440, %v1442
        %v1447 = vadd.f32 %v1409, %v1443
        %v1448 = vadd.f32 %v1410, %v1444
        %s1449 = sld [smem:[#allocation7 + $0x13]]
        %v1450 = vstv %s1449
        %v1451 = vmul.f32 %v368, %v1450
        %v1452 = vmul.f32 %v369, %v1450
        %v1453 = vmul.f32 %v370, %v1450
        %v1454 = vmul.f32 %v371, %v1450
        %v1455 = vmul.f32 %v372, %v1450
        %v1456 = vmul.f32 %v373, %v1450
        %v1463 = vrot.slane %v1451, 2
        %v1464 = vrot.slane %v1453, 2
        %v1465 = vsel %vm287, %v1463, %v1464
        %v1466 = vrot.slane %v1452, 2
        %v1467 = vrot.slane %v1454, 2
        %v1468 = vsel %vm287, %v1466, %v1467
        %v1469 = vrot.slane %v1455, 2
        %v1470 = vsel %vm287, %v1464, %v1469
        %v1471 = vrot.slane %v1456, 2
        %v1472 = vsel %vm287, %v1467, %v1471
        %1473 = vrot.lane.b32.xlu0 %v1465, 123
        %v1474 = vpop.permute.xlu0 %1473
        %1475 = vrot.lane.b32.xlu0 %v1468, 123
        %v1476 = vpop.permute.xlu0 %1475
        %1477 = vrot.lane.b32.xlu0 %v1470, 123
        %v1478 = vpop.permute.xlu0 %1477
        %1479 = vrot.lane.b32.xlu0 %v1472, 123
        %v1480 = vpop.permute.xlu0 %1479
        %v1481 = vsel %vm1404, %v1474, %v1476
        %v1482 = vsel %vm1404, %v1478, %v1480
        %v1485 = vadd.f32 %v1447, %v1481
        %v1486 = vadd.f32 %v1448, %v1482
        %s1487 = sld [smem:[#allocation7 + $0x1a]]
        %v1488 = vstv %s1487
        %v1489 = vmul.f32 %v368, %v1488
        %v1490 = vmul.f32 %v369, %v1488
        %v1491 = vmul.f32 %v370, %v1488
        %v1492 = vmul.f32 %v371, %v1488
        %v1493 = vmul.f32 %v372, %v1488
        %v1494 = vmul.f32 %v373, %v1488
        %v1501 = vrot.slane %v1489, 3
        %v1502 = vrot.slane %v1491, 3
        %v1503 = vsel %vm305, %v1501, %v1502
        %v1504 = vrot.slane %v1490, 3
        %v1505 = vrot.slane %v1492, 3
        %v1506 = vsel %vm305, %v1504, %v1505
        %v1507 = vrot.slane %v1493, 3
        %v1508 = vsel %vm305, %v1502, %v1507
        %v1509 = vrot.slane %v1494, 3
        %v1510 = vsel %vm305, %v1505, %v1509
        %1511 = vrot.lane.b32.xlu0 %v1503, 123
        %v1512 = vpop.permute.xlu0 %1511
        %1513 = vrot.lane.b32.xlu0 %v1506, 123
        %v1514 = vpop.permute.xlu0 %1513
        %1515 = vrot.lane.b32.xlu0 %v1508, 123
        %v1516 = vpop.permute.xlu0 %1515
        %1517 = vrot.lane.b32.xlu0 %v1510, 123
        %v1518 = vpop.permute.xlu0 %1517
        %v1519 = vsel %vm1404, %v1512, %v1514
        %v1520 = vsel %vm1404, %v1516, %v1518
        %v1523 = vadd.f32 %v1485, %v1519
        %v1524 = vadd.f32 %v1486, %v1520
        %s1525 = sld [smem:[#allocation7 + $0x21]]
        %v1526 = vstv %s1525
        %v1527 = vmul.f32 %v368, %v1526
        %v1528 = vmul.f32 %v369, %v1526
        %v1529 = vmul.f32 %v370, %v1526
        %v1530 = vmul.f32 %v371, %v1526
        %v1531 = vmul.f32 %v372, %v1526
        %v1532 = vmul.f32 %v373, %v1526
        %v1539 = vrot.slane %v1527, 4
        %v1540 = vrot.slane %v1529, 4
        %v1541 = vsel %vm323, %v1539, %v1540
        %v1542 = vrot.slane %v1528, 4
        %v1543 = vrot.slane %v1530, 4
        %v1544 = vsel %vm323, %v1542, %v1543
        %v1545 = vrot.slane %v1531, 4
        %v1546 = vsel %vm323, %v1540, %v1545
        %v1547 = vrot.slane %v1532, 4
        %v1548 = vsel %vm323, %v1543, %v1547
        %1549 = vrot.lane.b32.xlu0 %v1541, 123
        %v1550 = vpop.permute.xlu0 %1549
        %1551 = vrot.lane.b32.xlu0 %v1544, 123
        %v1552 = vpop.permute.xlu0 %1551
        %1553 = vrot.lane.b32.xlu0 %v1546, 123
        %v1554 = vpop.permute.xlu0 %1553
        %1555 = vrot.lane.b32.xlu0 %v1548, 123
        %v1556 = vpop.permute.xlu0 %1555
        %v1557 = vsel %vm1404, %v1550, %v1552
        %v1558 = vsel %vm1404, %v1554, %v1556
        %v1561 = vadd.f32 %v1523, %v1557
        %v1562 = vadd.f32 %v1524, %v1558
        %s1563 = sld [smem:[#allocation7 + $0x28]]
        %v1564 = vstv %s1563
        %v1565 = vmul.f32 %v368, %v1564
        %v1566 = vmul.f32 %v369, %v1564
        %v1567 = vmul.f32 %v370, %v1564
        %v1568 = vmul.f32 %v371, %v1564
        %v1569 = vmul.f32 %v372, %v1564
        %v1570 = vmul.f32 %v373, %v1564
        %v1577 = vrot.slane %v1565, 5
        %v1578 = vrot.slane %v1567, 5
        %v1579 = vsel %vm215, %v1577, %v1578
        %v1580 = vrot.slane %v1566, 5
        %v1581 = vrot.slane %v1568, 5
        %v1582 = vsel %vm215, %v1580, %v1581
        %v1583 = vrot.slane %v1569, 5
        %v1584 = vsel %vm215, %v1578, %v1583
        %v1585 = vrot.slane %v1570, 5
        %v1586 = vsel %vm215, %v1581, %v1585
        %1587 = vrot.lane.b32.xlu0 %v1579, 123
        %v1588 = vpop.permute.xlu0 %1587
        %1589 = vrot.lane.b32.xlu0 %v1582, 123
        %v1590 = vpop.permute.xlu0 %1589
        %1591 = vrot.lane.b32.xlu0 %v1584, 123
        %v1592 = vpop.permute.xlu0 %1591
        %1593 = vrot.lane.b32.xlu0 %v1586, 123
        %v1594 = vpop.permute.xlu0 %1593
        %v1595 = vsel %vm1404, %v1588, %v1590
        %v1596 = vsel %vm1404, %v1592, %v1594
        %v1599 = vadd.f32 %v1561, %v1595
        %v1600 = vadd.f32 %v1562, %v1596
        %s1601 = sld [smem:[#allocation7 + $0x2f]]
        %v1602 = vstv %s1601
        %v1603 = vmul.f32 %v368, %v1602
        %v1604 = vmul.f32 %v369, %v1602
        %v1605 = vmul.f32 %v370, %v1602
        %v1606 = vmul.f32 %v371, %v1602
        %v1607 = vmul.f32 %v372, %v1602
        %v1608 = vmul.f32 %v373, %v1602
        %v1615 = vrot.slane %v1603, 6
        %v1616 = vrot.slane %v1605, 6
        %v1617 = vsel %vm358, %v1615, %v1616
        %v1618 = vrot.slane %v1604, 6
        %v1619 = vrot.slane %v1606, 6
        %v1620 = vsel %vm358, %v1618, %v1619
        %v1621 = vrot.slane %v1607, 6
        %v1622 = vsel %vm358, %v1616, %v1621
        %v1623 = vrot.slane %v1608, 6
        %v1624 = vsel %vm358, %v1619, %v1623
        %1625 = vrot.lane.b32.xlu0 %v1617, 123
        %v1626 = vpop.permute.xlu0 %1625
        %1627 = vrot.lane.b32.xlu0 %v1620, 123
        %v1628 = vpop.permute.xlu0 %1627
        %1629 = vrot.lane.b32.xlu0 %v1622, 123
        %v1630 = vpop.permute.xlu0 %1629
        %1631 = vrot.lane.b32.xlu0 %v1624, 123
        %v1632 = vpop.permute.xlu0 %1631
        %v1633 = vsel %vm1404, %v1626, %v1628
        %v1634 = vsel %vm1404, %v1630, %v1632
        %v1637 = vadd.f32 %v1599, %v1633
        %v1638 = vadd.f32 %v1600, %v1634
        %s1639 = sld [smem:[#allocation7 + $0x6]]
        %v1640 = vstv %s1639
        %v1641 = vmul.f32 %v368, %v1640
        %v1642 = vmul.f32 %v369, %v1640
        %v1643 = vmul.f32 %v370, %v1640
        %v1644 = vmul.f32 %v371, %v1640
        %1649 = vrot.lane.b32.xlu0 %v1641, 122
        %v1650 = vpop.permute.xlu0 %1649
        %1651 = vrot.lane.b32.xlu0 %v1642, 122
        %v1652 = vpop.permute.xlu0 %1651
        %1653 = vrot.lane.b32.xlu0 %v1643, 122
        %v1654 = vpop.permute.xlu0 %1653
        %1655 = vrot.lane.b32.xlu0 %v1644, 122
        %v1656 = vpop.permute.xlu0 %1655
        %vm1657 = vcmask 998400
        %v1658 = vsel %vm1657, %v1650, %v1652
        %v1659 = vsel %vm1657, %v1654, %v1656
        %v1662 = vadd.f32 %v1637, %v1658
        %v1663 = vadd.f32 %v1638, %v1659
        %s1664 = sld [smem:[#allocation7 + $0xd]]
        %v1665 = vstv %s1664
        %v1666 = vmul.f32 %v368, %v1665
        %v1667 = vmul.f32 %v369, %v1665
        %v1668 = vmul.f32 %v370, %v1665
        %v1669 = vmul.f32 %v371, %v1665
        %v1670 = vmul.f32 %v372, %v1665
        %v1671 = vmul.f32 %v373, %v1665
        %v1678 = vrot.slane %v1666, 1
        %v1679 = vrot.slane %v1668, 1
        %v1680 = vsel %vm269, %v1678, %v1679
        %v1681 = vrot.slane %v1667, 1
        %v1682 = vrot.slane %v1669, 1
        %v1683 = vsel %vm269, %v1681, %v1682
        %v1684 = vrot.slane %v1670, 1
        %v1685 = vsel %vm269, %v1679, %v1684
        %v1686 = vrot.slane %v1671, 1
        %v1687 = vsel %vm269, %v1682, %v1686
        %1688 = vrot.lane.b32.xlu0 %v1680, 122
        %v1689 = vpop.permute.xlu0 %1688
        %1690 = vrot.lane.b32.xlu0 %v1683, 122
        %v1691 = vpop.permute.xlu0 %1690
        %1692 = vrot.lane.b32.xlu0 %v1685, 122
        %v1693 = vpop.permute.xlu0 %1692
        %1694 = vrot.lane.b32.xlu0 %v1687, 122
        %v1695 = vpop.permute.xlu0 %1694
        %v1696 = vsel %vm1657, %v1689, %v1691
        %v1697 = vsel %vm1657, %v1693, %v1695
        %v1700 = vadd.f32 %v1662, %v1696
        %v1701 = vadd.f32 %v1663, %v1697
        %s1702 = sld [smem:[#allocation7 + $0x14]]
        %v1703 = vstv %s1702
        %v1704 = vmul.f32 %v368, %v1703
        %v1705 = vmul.f32 %v369, %v1703
        %v1706 = vmul.f32 %v370, %v1703
        %v1707 = vmul.f32 %v371, %v1703
        %v1708 = vmul.f32 %v372, %v1703
        %v1709 = vmul.f32 %v373, %v1703
        %v1716 = vrot.slane %v1704, 2
        %v1717 = vrot.slane %v1706, 2
        %v1718 = vsel %vm287, %v1716, %v1717
        %v1719 = vrot.slane %v1705, 2
        %v1720 = vrot.slane %v1707, 2
        %v1721 = vsel %vm287, %v1719, %v1720
        %v1722 = vrot.slane %v1708, 2
        %v1723 = vsel %vm287, %v1717, %v1722
        %v1724 = vrot.slane %v1709, 2
        %v1725 = vsel %vm287, %v1720, %v1724
        %1726 = vrot.lane.b32.xlu0 %v1718, 122
        %v1727 = vpop.permute.xlu0 %1726
        %1728 = vrot.lane.b32.xlu0 %v1721, 122
        %v1729 = vpop.permute.xlu0 %1728
        %1730 = vrot.lane.b32.xlu0 %v1723, 122
        %v1731 = vpop.permute.xlu0 %1730
        %1732 = vrot.lane.b32.xlu0 %v1725, 122
        %v1733 = vpop.permute.xlu0 %1732
        %v1734 = vsel %vm1657, %v1727, %v1729
        %v1735 = vsel %vm1657, %v1731, %v1733
        %v1738 = vadd.f32 %v1700, %v1734
        %v1739 = vadd.f32 %v1701, %v1735
        %s1740 = sld [smem:[#allocation7 + $0x1b]]
        %v1741 = vstv %s1740
        %v1742 = vmul.f32 %v368, %v1741
        %v1743 = vmul.f32 %v369, %v1741
        %v1744 = vmul.f32 %v370, %v1741
        %v1745 = vmul.f32 %v371, %v1741
        %v1746 = vmul.f32 %v372, %v1741
        %v1747 = vmul.f32 %v373, %v1741
        %v1754 = vrot.slane %v1742, 3
        %v1755 = vrot.slane %v1744, 3
        %v1756 = vsel %vm305, %v1754, %v1755
        %v1757 = vrot.slane %v1743, 3
        %v1758 = vrot.slane %v1745, 3
        %v1759 = vsel %vm305, %v1757, %v1758
        %v1760 = vrot.slane %v1746, 3
        %v1761 = vsel %vm305, %v1755, %v1760
        %v1762 = vrot.slane %v1747, 3
        %v1763 = vsel %vm305, %v1758, %v1762
        %1764 = vrot.lane.b32.xlu0 %v1756, 122
        %v1765 = vpop.permute.xlu0 %1764
        %1766 = vrot.lane.b32.xlu0 %v1759, 122
        %v1767 = vpop.permute.xlu0 %1766
        %1768 = vrot.lane.b32.xlu0 %v1761, 122
        %v1769 = vpop.permute.xlu0 %1768
        %1770 = vrot.lane.b32.xlu0 %v1763, 122
        %v1771 = vpop.permute.xlu0 %1770
        %v1772 = vsel %vm1657, %v1765, %v1767
        %v1773 = vsel %vm1657, %v1769, %v1771
        %v1776 = vadd.f32 %v1738, %v1772
        %v1777 = vadd.f32 %v1739, %v1773
        %s1778 = sld [smem:[#allocation7 + $0x22]]
        %v1779 = vstv %s1778
        %v1780 = vmul.f32 %v368, %v1779
        %v1781 = vmul.f32 %v369, %v1779
        %v1782 = vmul.f32 %v370, %v1779
        %v1783 = vmul.f32 %v371, %v1779
        %v1784 = vmul.f32 %v372, %v1779
        %v1785 = vmul.f32 %v373, %v1779
        %v1792 = vrot.slane %v1780, 4
        %v1793 = vrot.slane %v1782, 4
        %v1794 = vsel %vm323, %v1792, %v1793
        %v1795 = vrot.slane %v1781, 4
        %v1796 = vrot.slane %v1783, 4
        %v1797 = vsel %vm323, %v1795, %v1796
        %v1798 = vrot.slane %v1784, 4
        %v1799 = vsel %vm323, %v1793, %v1798
        %v1800 = vrot.slane %v1785, 4
        %v1801 = vsel %vm323, %v1796, %v1800
        %1802 = vrot.lane.b32.xlu0 %v1794, 122
        %v1803 = vpop.permute.xlu0 %1802
        %1804 = vrot.lane.b32.xlu0 %v1797, 122
        %v1805 = vpop.permute.xlu0 %1804
        %1806 = vrot.lane.b32.xlu0 %v1799, 122
        %v1807 = vpop.permute.xlu0 %1806
        %1808 = vrot.lane.b32.xlu0 %v1801, 122
        %v1809 = vpop.permute.xlu0 %1808
        %v1810 = vsel %vm1657, %v1803, %v1805
        %v1811 = vsel %vm1657, %v1807, %v1809
        %v1814 = vadd.f32 %v1776, %v1810
        %v1815 = vadd.f32 %v1777, %v1811
        %s1816 = sld [smem:[#allocation7 + $0x29]]
        %v1817 = vstv %s1816
        %v1818 = vmul.f32 %v368, %v1817
        %v1819 = vmul.f32 %v369, %v1817
        %v1820 = vmul.f32 %v370, %v1817
        %v1821 = vmul.f32 %v371, %v1817
        %v1822 = vmul.f32 %v372, %v1817
        %v1823 = vmul.f32 %v373, %v1817
        %v1830 = vrot.slane %v1818, 5
        %v1831 = vrot.slane %v1820, 5
        %v1832 = vsel %vm215, %v1830, %v1831
        %v1833 = vrot.slane %v1819, 5
        %v1834 = vrot.slane %v1821, 5
        %v1835 = vsel %vm215, %v1833, %v1834
        %v1836 = vrot.slane %v1822, 5
        %v1837 = vsel %vm215, %v1831, %v1836
        %v1838 = vrot.slane %v1823, 5
        %v1839 = vsel %vm215, %v1834, %v1838
        %1840 = vrot.lane.b32.xlu0 %v1832, 122
        %v1841 = vpop.permute.xlu0 %1840
        %1842 = vrot.lane.b32.xlu0 %v1835, 122
        %v1843 = vpop.permute.xlu0 %1842
        %1844 = vrot.lane.b32.xlu0 %v1837, 122
        %v1845 = vpop.permute.xlu0 %1844
        %1846 = vrot.lane.b32.xlu0 %v1839, 122
        %v1847 = vpop.permute.xlu0 %1846
        %v1848 = vsel %vm1657, %v1841, %v1843
        %v1849 = vsel %vm1657, %v1845, %v1847
        %v1852 = vadd.f32 %v1814, %v1848
        %v1853 = vadd.f32 %v1815, %v1849
        %s1854 = sld [smem:[#allocation7 + $0x30]]
        %v1855 = vstv %s1854
        %v1856 = vmul.f32 %v368, %v1855
        %v1857 = vmul.f32 %v369, %v1855
        %v1858 = vmul.f32 %v370, %v1855
        %v1859 = vmul.f32 %v371, %v1855
        %v1860 = vmul.f32 %v372, %v1855
        %v1861 = vmul.f32 %v373, %v1855
        %v1868 = vrot.slane %v1856, 6
        %v1869 = vrot.slane %v1858, 6
        %v1870 = vsel %vm358, %v1868, %v1869
        %v1871 = vrot.slane %v1857, 6
        %v1872 = vrot.slane %v1859, 6
        %v1873 = vsel %vm358, %v1871, %v1872
        %v1874 = vrot.slane %v1860, 6
        %v1875 = vsel %vm358, %v1869, %v1874
        %v1876 = vrot.slane %v1861, 6
        %v1877 = vsel %vm358, %v1872, %v1876
        %1878 = vrot.lane.b32.xlu0 %v1870, 122
        %v1879 = vpop.permute.xlu0 %1878
        %1880 = vrot.lane.b32.xlu0 %v1873, 122
        %v1881 = vpop.permute.xlu0 %1880
        %1882 = vrot.lane.b32.xlu0 %v1875, 122
        %v1883 = vpop.permute.xlu0 %1882
        %1884 = vrot.lane.b32.xlu0 %v1877, 122
        %v1885 = vpop.permute.xlu0 %1884
        %v1886 = vsel %vm1657, %v1879, %v1881
        %v1887 = vsel %vm1657, %v1883, %v1885
        %v1890 = vadd.f32 %v1852, %v1886
        %v1891 = vadd.f32 %v1853, %v1887
        %v1892 = vld [vmem:[%s248] sm:$0xff]
        %v1893 = vld [vmem:[%s248 + $0x10] sm:$0xff]
        %v1894 = vld [vmem:[%s248 + $0x20] sm:$0xff]
        %s1895 = sld [smem:[#allocation7 + $0x31]]
        %v1896 = vstv %s1895
        %v1897 = vmul.f32 %v1892, %v1896
        %v1898 = vmul.f32 %v1893, %v1896
        %v1899 = vadd.f32 %v1890, %v1897
        %v1900 = vadd.f32 %v1891, %v1898
        %s1901 = sld [smem:[#allocation7 + $0x38]]
        %v1902 = vstv %s1901
        %v1903 = vmul.f32 %v1892, %v1902
        %v1904 = vmul.f32 %v1893, %v1902
        %v1905 = vmul.f32 %v1894, %v1902
        %v1909 = vrot.slane %v1903, 1
        %v1910 = vrot.slane %v1904, 1
        %v1911 = vsel %vm269, %v1909, %v1910
        %v1912 = vrot.slane %v1905, 1
        %v1913 = vsel %vm269, %v1910, %v1912
        %v1916 = vadd.f32 %v1899, %v1911
        %v1917 = vadd.f32 %v1900, %v1913
        %s1918 = sld [smem:[#allocation7 + $0x3f]]
        %v1919 = vstv %s1918
        %v1920 = vmul.f32 %v1892, %v1919
        %v1921 = vmul.f32 %v1893, %v1919
        %v1922 = vmul.f32 %v1894, %v1919
        %v1926 = vrot.slane %v1920, 2
        %v1927 = vrot.slane %v1921, 2
        %v1928 = vsel %vm287, %v1926, %v1927
        %v1929 = vrot.slane %v1922, 2
        %v1930 = vsel %vm287, %v1927, %v1929
        %v1933 = vadd.f32 %v1916, %v1928
        %v1934 = vadd.f32 %v1917, %v1930
        %s1935 = sld [smem:[#allocation7 + $0x46]]
        %v1936 = vstv %s1935
        %v1937 = vmul.f32 %v1892, %v1936
        %v1938 = vmul.f32 %v1893, %v1936
        %v1939 = vmul.f32 %v1894, %v1936
        %v1943 = vrot.slane %v1937, 3
        %v1944 = vrot.slane %v1938, 3
        %v1945 = vsel %vm305, %v1943, %v1944
        %v1946 = vrot.slane %v1939, 3
        %v1947 = vsel %vm305, %v1944, %v1946
        %v1950 = vadd.f32 %v1933, %v1945
        %v1951 = vadd.f32 %v1934, %v1947
        %s1952 = sld [smem:[#allocation7 + $0x4d]]
        %v1953 = vstv %s1952
        %v1954 = vmul.f32 %v1892, %v1953
        %v1955 = vmul.f32 %v1893, %v1953
        %v1956 = vmul.f32 %v1894, %v1953
        %v1960 = vrot.slane %v1954, 4
        %v1961 = vrot.slane %v1955, 4
        %v1962 = vsel %vm323, %v1960, %v1961
        %v1963 = vrot.slane %v1956, 4
        %v1964 = vsel %vm323, %v1961, %v1963
        %v1967 = vadd.f32 %v1950, %v1962
        %v1968 = vadd.f32 %v1951, %v1964
        %s1969 = sld [smem:[#allocation7 + $0x54]]
        %v1970 = vstv %s1969
        %v1971 = vmul.f32 %v1892, %v1970
        %v1972 = vmul.f32 %v1893, %v1970
        %v1973 = vmul.f32 %v1894, %v1970
        %v1977 = vrot.slane %v1971, 5
        %v1978 = vrot.slane %v1972, 5
        %v1979 = vsel %vm215, %v1977, %v1978
        %v1980 = vrot.slane %v1973, 5
        %v1981 = vsel %vm215, %v1978, %v1980
        %v1984 = vadd.f32 %v1967, %v1979
        %v1985 = vadd.f32 %v1968, %v1981
        %s1986 = sld [smem:[#allocation7 + $0x5b]]
        %v1987 = vstv %s1986
        %v1988 = vmul.f32 %v1892, %v1987
        %v1989 = vmul.f32 %v1893, %v1987
        %v1990 = vmul.f32 %v1894, %v1987
        %v1994 = vrot.slane %v1988, 6
        %v1995 = vrot.slane %v1989, 6
        %v1996 = vsel %vm358, %v1994, %v1995
        %v1997 = vrot.slane %v1990, 6
        %v1998 = vsel %vm358, %v1995, %v1997
        %v2001 = vadd.f32 %v1984, %v1996
        %v2002 = vadd.f32 %v1985, %v1998
        %v2003 = vld [vmem:[%s248] sm:$0xff]
        %v2004 = vld [vmem:[%s248 + $0x8] sm:$0xff]
        %v2005 = vld [vmem:[%s248 + $0x10] sm:$0xff]
        %v2006 = vld [vmem:[%s248 + $0x18] sm:$0xff]
        %v2007 = vld [vmem:[%s248 + $0x20] sm:$0xff]
        %v2008 = vld [vmem:[%s248 + $0x28] sm:$0xff]
        %s2009 = sld [smem:[#allocation7 + $0x32]]
        %v2010 = vstv %s2009
        %v2011 = vmul.f32 %v2003, %v2010
        %v2012 = vmul.f32 %v2004, %v2010
        %v2013 = vmul.f32 %v2005, %v2010
        %v2014 = vmul.f32 %v2006, %v2010
        %2019 = vrot.lane.b32.xlu0 %v2011, 127
        %v2020 = vpop.permute.xlu0 %2019
        %2021 = vrot.lane.b32.xlu0 %v2012, 127
        %v2022 = vpop.permute.xlu0 %2021
        %2023 = vrot.lane.b32.xlu0 %v2013, 127
        %v2024 = vpop.permute.xlu0 %2023
        %2025 = vrot.lane.b32.xlu0 %v2014, 127
        %v2026 = vpop.permute.xlu0 %2025
        %v2027 = vsel %vm392, %v2020, %v2022
        %v2028 = vsel %vm392, %v2024, %v2026
        %v2031 = vadd.f32 %v2001, %v2027
        %v2032 = vadd.f32 %v2002, %v2028
        %s2033 = sld [smem:[#allocation7 + $0x39]]
        %v2034 = vstv %s2033
        %v2035 = vmul.f32 %v2003, %v2034
        %v2036 = vmul.f32 %v2004, %v2034
        %v2037 = vmul.f32 %v2005, %v2034
        %v2038 = vmul.f32 %v2006, %v2034
        %v2039 = vmul.f32 %v2007, %v2034
        %v2040 = vmul.f32 %v2008, %v2034
        %v2047 = vrot.slane %v2035, 1
        %v2048 = vrot.slane %v2037, 1
        %v2049 = vsel %vm269, %v2047, %v2048
        %v2050 = vrot.slane %v2036, 1
        %v2051 = vrot.slane %v2038, 1
        %v2052 = vsel %vm269, %v2050, %v2051
        %v2053 = vrot.slane %v2039, 1
        %v2054 = vsel %vm269, %v2048, %v2053
        %v2055 = vrot.slane %v2040, 1
        %v2056 = vsel %vm269, %v2051, %v2055
        %2057 = vrot.lane.b32.xlu0 %v2049, 127
        %v2058 = vpop.permute.xlu0 %2057
        %2059 = vrot.lane.b32.xlu0 %v2052, 127
        %v2060 = vpop.permute.xlu0 %2059
        %2061 = vrot.lane.b32.xlu0 %v2054, 127
        %v2062 = vpop.permute.xlu0 %2061
        %2063 = vrot.lane.b32.xlu0 %v2056, 127
        %v2064 = vpop.permute.xlu0 %2063
        %v2065 = vsel %vm392, %v2058, %v2060
        %v2066 = vsel %vm392, %v2062, %v2064
        %v2069 = vadd.f32 %v2031, %v2065
        %v2070 = vadd.f32 %v2032, %v2066
        %s2071 = sld [smem:[#allocation7 + $0x40]]
        %v2072 = vstv %s2071
        %v2073 = vmul.f32 %v2003, %v2072
        %v2074 = vmul.f32 %v2004, %v2072
        %v2075 = vmul.f32 %v2005, %v2072
        %v2076 = vmul.f32 %v2006, %v2072
        %v2077 = vmul.f32 %v2007, %v2072
        %v2078 = vmul.f32 %v2008, %v2072
        %v2085 = vrot.slane %v2073, 2
        %v2086 = vrot.slane %v2075, 2
        %v2087 = vsel %vm287, %v2085, %v2086
        %v2088 = vrot.slane %v2074, 2
        %v2089 = vrot.slane %v2076, 2
        %v2090 = vsel %vm287, %v2088, %v2089
        %v2091 = vrot.slane %v2077, 2
        %v2092 = vsel %vm287, %v2086, %v2091
        %v2093 = vrot.slane %v2078, 2
        %v2094 = vsel %vm287, %v2089, %v2093
        %2095 = vrot.lane.b32.xlu0 %v2087, 127
        %v2096 = vpop.permute.xlu0 %2095
        %2097 = vrot.lane.b32.xlu0 %v2090, 127
        %v2098 = vpop.permute.xlu0 %2097
        %2099 = vrot.lane.b32.xlu0 %v2092, 127
        %v2100 = vpop.permute.xlu0 %2099
        %2101 = vrot.lane.b32.xlu0 %v2094, 127
        %v2102 = vpop.permute.xlu0 %2101
        %v2103 = vsel %vm392, %v2096, %v2098
        %v2104 = vsel %vm392, %v2100, %v2102
        %v2107 = vadd.f32 %v2069, %v2103
        %v2108 = vadd.f32 %v2070, %v2104
        %s2109 = sld [smem:[#allocation7 + $0x47]]
        %v2110 = vstv %s2109
        %v2111 = vmul.f32 %v2003, %v2110
        %v2112 = vmul.f32 %v2004, %v2110
        %v2113 = vmul.f32 %v2005, %v2110
        %v2114 = vmul.f32 %v2006, %v2110
        %v2115 = vmul.f32 %v2007, %v2110
        %v2116 = vmul.f32 %v2008, %v2110
        %v2123 = vrot.slane %v2111, 3
        %v2124 = vrot.slane %v2113, 3
        %v2125 = vsel %vm305, %v2123, %v2124
        %v2126 = vrot.slane %v2112, 3
        %v2127 = vrot.slane %v2114, 3
        %v2128 = vsel %vm305, %v2126, %v2127
        %v2129 = vrot.slane %v2115, 3
        %v2130 = vsel %vm305, %v2124, %v2129
        %v2131 = vrot.slane %v2116, 3
        %v2132 = vsel %vm305, %v2127, %v2131
        %2133 = vrot.lane.b32.xlu0 %v2125, 127
        %v2134 = vpop.permute.xlu0 %2133
        %2135 = vrot.lane.b32.xlu0 %v2128, 127
        %v2136 = vpop.permute.xlu0 %2135
        %2137 = vrot.lane.b32.xlu0 %v2130, 127
        %v2138 = vpop.permute.xlu0 %2137
        %2139 = vrot.lane.b32.xlu0 %v2132, 127
        %v2140 = vpop.permute.xlu0 %2139
        %v2141 = vsel %vm392, %v2134, %v2136
        %v2142 = vsel %vm392, %v2138, %v2140
        %v2145 = vadd.f32 %v2107, %v2141
        %v2146 = vadd.f32 %v2108, %v2142
        %s2147 = sld [smem:[#allocation7 + $0x4e]]
        %v2148 = vstv %s2147
        %v2149 = vmul.f32 %v2003, %v2148
        %v2150 = vmul.f32 %v2004, %v2148
        %v2151 = vmul.f32 %v2005, %v2148
        %v2152 = vmul.f32 %v2006, %v2148
        %v2153 = vmul.f32 %v2007, %v2148
        %v2154 = vmul.f32 %v2008, %v2148
        %v2161 = vrot.slane %v2149, 4
        %v2162 = vrot.slane %v2151, 4
        %v2163 = vsel %vm323, %v2161, %v2162
        %v2164 = vrot.slane %v2150, 4
        %v2165 = vrot.slane %v2152, 4
        %v2166 = vsel %vm323, %v2164, %v2165
        %v2167 = vrot.slane %v2153, 4
        %v2168 = vsel %vm323, %v2162, %v2167
        %v2169 = vrot.slane %v2154, 4
        %v2170 = vsel %vm323, %v2165, %v2169
        %2171 = vrot.lane.b32.xlu0 %v2163, 127
        %v2172 = vpop.permute.xlu0 %2171
        %2173 = vrot.lane.b32.xlu0 %v2166, 127
        %v2174 = vpop.permute.xlu0 %2173
        %2175 = vrot.lane.b32.xlu0 %v2168, 127
        %v2176 = vpop.permute.xlu0 %2175
        %2177 = vrot.lane.b32.xlu0 %v2170, 127
        %v2178 = vpop.permute.xlu0 %2177
        %v2179 = vsel %vm392, %v2172, %v2174
        %v2180 = vsel %vm392, %v2176, %v2178
        %v2183 = vadd.f32 %v2145, %v2179
        %v2184 = vadd.f32 %v2146, %v2180
        %s2185 = sld [smem:[#allocation7 + $0x55]]
        %v2186 = vstv %s2185
        %v2187 = vmul.f32 %v2003, %v2186
        %v2188 = vmul.f32 %v2004, %v2186
        %v2189 = vmul.f32 %v2005, %v2186
        %v2190 = vmul.f32 %v2006, %v2186
        %v2191 = vmul.f32 %v2007, %v2186
        %v2192 = vmul.f32 %v2008, %v2186
        %v2199 = vrot.slane %v2187, 5
        %v2200 = vrot.slane %v2189, 5
        %v2201 = vsel %vm215, %v2199, %v2200
        %v2202 = vrot.slane %v2188, 5
        %v2203 = vrot.slane %v2190, 5
        %v2204 = vsel %vm215, %v2202, %v2203
        %v2205 = vrot.slane %v2191, 5
        %v2206 = vsel %vm215, %v2200, %v2205
        %v2207 = vrot.slane %v2192, 5
        %v2208 = vsel %vm215, %v2203, %v2207
        %2209 = vrot.lane.b32.xlu0 %v2201, 127
        %v2210 = vpop.permute.xlu0 %2209
        %2211 = vrot.lane.b32.xlu0 %v2204, 127
        %v2212 = vpop.permute.xlu0 %2211
        %2213 = vrot.lane.b32.xlu0 %v2206, 127
        %v2214 = vpop.permute.xlu0 %2213
        %2215 = vrot.lane.b32.xlu0 %v2208, 127
        %v2216 = vpop.permute.xlu0 %2215
        %v2217 = vsel %vm392, %v2210, %v2212
        %v2218 = vsel %vm392, %v2214, %v2216
        %v2221 = vadd.f32 %v2183, %v2217
        %v2222 = vadd.f32 %v2184, %v2218
        %s2223 = sld [smem:[#allocation7 + $0x5c]]
        %v2224 = vstv %s2223
        %v2225 = vmul.f32 %v2003, %v2224
        %v2226 = vmul.f32 %v2004, %v2224
        %v2227 = vmul.f32 %v2005, %v2224
        %v2228 = vmul.f32 %v2006, %v2224
        %v2229 = vmul.f32 %v2007, %v2224
        %v2230 = vmul.f32 %v2008, %v2224
        %v2237 = vrot.slane %v2225, 6
        %v2238 = vrot.slane %v2227, 6
        %v2239 = vsel %vm358, %v2237, %v2238
        %v2240 = vrot.slane %v2226, 6
        %v2241 = vrot.slane %v2228, 6
        %v2242 = vsel %vm358, %v2240, %v2241
        %v2243 = vrot.slane %v2229, 6
        %v2244 = vsel %vm358, %v2238, %v2243
        %v2245 = vrot.slane %v2230, 6
        %v2246 = vsel %vm358, %v2241, %v2245
        %2247 = vrot.lane.b32.xlu0 %v2239, 127
        %v2248 = vpop.permute.xlu0 %2247
        %2249 = vrot.lane.b32.xlu0 %v2242, 127
        %v2250 = vpop.permute.xlu0 %2249
        %2251 = vrot.lane.b32.xlu0 %v2244, 127
        %v2252 = vpop.permute.xlu0 %2251
        %2253 = vrot.lane.b32.xlu0 %v2246, 127
        %v2254 = vpop.permute.xlu0 %2253
        %v2255 = vsel %vm392, %v2248, %v2250
        %v2256 = vsel %vm392, %v2252, %v2254
        %v2259 = vadd.f32 %v2221, %v2255
        %v2260 = vadd.f32 %v2222, %v2256
        %s2261 = sld [smem:[#allocation7 + $0x33]]
        %v2262 = vstv %s2261
        %v2263 = vmul.f32 %v2003, %v2262
        %v2264 = vmul.f32 %v2004, %v2262
        %v2265 = vmul.f32 %v2005, %v2262
        %v2266 = vmul.f32 %v2006, %v2262
        %2271 = vrot.lane.b32.xlu0 %v2263, 126
        %v2272 = vpop.permute.xlu0 %2271
        %2273 = vrot.lane.b32.xlu0 %v2264, 126
        %v2274 = vpop.permute.xlu0 %2273
        %2275 = vrot.lane.b32.xlu0 %v2265, 126
        %v2276 = vpop.permute.xlu0 %2275
        %2277 = vrot.lane.b32.xlu0 %v2266, 126
        %v2278 = vpop.permute.xlu0 %2277
        %v2279 = vsel %vm645, %v2272, %v2274
        %v2280 = vsel %vm645, %v2276, %v2278
        %v2283 = vadd.f32 %v2259, %v2279
        %v2284 = vadd.f32 %v2260, %v2280
        %s2285 = sld [smem:[#allocation7 + $0x3a]]
        %v2286 = vstv %s2285
        %v2287 = vmul.f32 %v2003, %v2286
        %v2288 = vmul.f32 %v2004, %v2286
        %v2289 = vmul.f32 %v2005, %v2286
        %v2290 = vmul.f32 %v2006, %v2286
        %v2291 = vmul.f32 %v2007, %v2286
        %v2292 = vmul.f32 %v2008, %v2286
        %v2299 = vrot.slane %v2287, 1
        %v2300 = vrot.slane %v2289, 1
        %v2301 = vsel %vm269, %v2299, %v2300
        %v2302 = vrot.slane %v2288, 1
        %v2303 = vrot.slane %v2290, 1
        %v2304 = vsel %vm269, %v2302, %v2303
        %v2305 = vrot.slane %v2291, 1
        %v2306 = vsel %vm269, %v2300, %v2305
        %v2307 = vrot.slane %v2292, 1
        %v2308 = vsel %vm269, %v2303, %v2307
        %2309 = vrot.lane.b32.xlu0 %v2301, 126
        %v2310 = vpop.permute.xlu0 %2309
        %2311 = vrot.lane.b32.xlu0 %v2304, 126
        %v2312 = vpop.permute.xlu0 %2311
        %2313 = vrot.lane.b32.xlu0 %v2306, 126
        %v2314 = vpop.permute.xlu0 %2313
        %2315 = vrot.lane.b32.xlu0 %v2308, 126
        %v2316 = vpop.permute.xlu0 %2315
        %v2317 = vsel %vm645, %v2310, %v2312
        %v2318 = vsel %vm645, %v2314, %v2316
        %v2321 = vadd.f32 %v2283, %v2317
        %v2322 = vadd.f32 %v2284, %v2318
        %s2323 = sld [smem:[#allocation7 + $0x41]]
        %v2324 = vstv %s2323
        %v2325 = vmul.f32 %v2003, %v2324
        %v2326 = vmul.f32 %v2004, %v2324
        %v2327 = vmul.f32 %v2005, %v2324
        %v2328 = vmul.f32 %v2006, %v2324
        %v2329 = vmul.f32 %v2007, %v2324
        %v2330 = vmul.f32 %v2008, %v2324
        %v2337 = vrot.slane %v2325, 2
        %v2338 = vrot.slane %v2327, 2
        %v2339 = vsel %vm287, %v2337, %v2338
        %v2340 = vrot.slane %v2326, 2
        %v2341 = vrot.slane %v2328, 2
        %v2342 = vsel %vm287, %v2340, %v2341
        %v2343 = vrot.slane %v2329, 2
        %v2344 = vsel %vm287, %v2338, %v2343
        %v2345 = vrot.slane %v2330, 2
        %v2346 = vsel %vm287, %v2341, %v2345
        %2347 = vrot.lane.b32.xlu0 %v2339, 126
        %v2348 = vpop.permute.xlu0 %2347
        %2349 = vrot.lane.b32.xlu0 %v2342, 126
        %v2350 = vpop.permute.xlu0 %2349
        %2351 = vrot.lane.b32.xlu0 %v2344, 126
        %v2352 = vpop.permute.xlu0 %2351
        %2353 = vrot.lane.b32.xlu0 %v2346, 126
        %v2354 = vpop.permute.xlu0 %2353
        %v2355 = vsel %vm645, %v2348, %v2350
        %v2356 = vsel %vm645, %v2352, %v2354
        %v2359 = vadd.f32 %v2321, %v2355
        %v2360 = vadd.f32 %v2322, %v2356
        %s2361 = sld [smem:[#allocation7 + $0x48]]
        %v2362 = vstv %s2361
        %v2363 = vmul.f32 %v2003, %v2362
        %v2364 = vmul.f32 %v2004, %v2362
        %v2365 = vmul.f32 %v2005, %v2362
        %v2366 = vmul.f32 %v2006, %v2362
        %v2367 = vmul.f32 %v2007, %v2362
        %v2368 = vmul.f32 %v2008, %v2362
        %v2375 = vrot.slane %v2363, 3
        %v2376 = vrot.slane %v2365, 3
        %v2377 = vsel %vm305, %v2375, %v2376
        %v2378 = vrot.slane %v2364, 3
        %v2379 = vrot.slane %v2366, 3
        %v2380 = vsel %vm305, %v2378, %v2379
        %v2381 = vrot.slane %v2367, 3
        %v2382 = vsel %vm305, %v2376, %v2381
        %v2383 = vrot.slane %v2368, 3
        %v2384 = vsel %vm305, %v2379, %v2383
        %2385 = vrot.lane.b32.xlu0 %v2377, 126
        %v2386 = vpop.permute.xlu0 %2385
        %2387 = vrot.lane.b32.xlu0 %v2380, 126
        %v2388 = vpop.permute.xlu0 %2387
        %2389 = vrot.lane.b32.xlu0 %v2382, 126
        %v2390 = vpop.permute.xlu0 %2389
        %2391 = vrot.lane.b32.xlu0 %v2384, 126
        %v2392 = vpop.permute.xlu0 %2391
        %v2393 = vsel %vm645, %v2386, %v2388
        %v2394 = vsel %vm645, %v2390, %v2392
        %v2397 = vadd.f32 %v2359, %v2393
        %v2398 = vadd.f32 %v2360, %v2394
        %s2399 = sld [smem:[#allocation7 + $0x4f]]
        %v2400 = vstv %s2399
        %v2401 = vmul.f32 %v2003, %v2400
        %v2402 = vmul.f32 %v2004, %v2400
        %v2403 = vmul.f32 %v2005, %v2400
        %v2404 = vmul.f32 %v2006, %v2400
        %v2405 = vmul.f32 %v2007, %v2400
        %v2406 = vmul.f32 %v2008, %v2400
        %v2413 = vrot.slane %v2401, 4
        %v2414 = vrot.slane %v2403, 4
        %v2415 = vsel %vm323, %v2413, %v2414
        %v2416 = vrot.slane %v2402, 4
        %v2417 = vrot.slane %v2404, 4
        %v2418 = vsel %vm323, %v2416, %v2417
        %v2419 = vrot.slane %v2405, 4
        %v2420 = vsel %vm323, %v2414, %v2419
        %v2421 = vrot.slane %v2406, 4
        %v2422 = vsel %vm323, %v2417, %v2421
        %2423 = vrot.lane.b32.xlu0 %v2415, 126
        %v2424 = vpop.permute.xlu0 %2423
        %2425 = vrot.lane.b32.xlu0 %v2418, 126
        %v2426 = vpop.permute.xlu0 %2425
        %2427 = vrot.lane.b32.xlu0 %v2420, 126
        %v2428 = vpop.permute.xlu0 %2427
        %2429 = vrot.lane.b32.xlu0 %v2422, 126
        %v2430 = vpop.permute.xlu0 %2429
        %v2431 = vsel %vm645, %v2424, %v2426
        %v2432 = vsel %vm645, %v2428, %v2430
        %v2435 = vadd.f32 %v2397, %v2431
        %v2436 = vadd.f32 %v2398, %v2432
        %s2437 = sld [smem:[#allocation7 + $0x56]]
        %v2438 = vstv %s2437
        %v2439 = vmul.f32 %v2003, %v2438
        %v2440 = vmul.f32 %v2004, %v2438
        %v2441 = vmul.f32 %v2005, %v2438
        %v2442 = vmul.f32 %v2006, %v2438
        %v2443 = vmul.f32 %v2007, %v2438
        %v2444 = vmul.f32 %v2008, %v2438
        %v2451 = vrot.slane %v2439, 5
        %v2452 = vrot.slane %v2441, 5
        %v2453 = vsel %vm215, %v2451, %v2452
        %v2454 = vrot.slane %v2440, 5
        %v2455 = vrot.slane %v2442, 5
        %v2456 = vsel %vm215, %v2454, %v2455
        %v2457 = vrot.slane %v2443, 5
        %v2458 = vsel %vm215, %v2452, %v2457
        %v2459 = vrot.slane %v2444, 5
        %v2460 = vsel %vm215, %v2455, %v2459
        %2461 = vrot.lane.b32.xlu0 %v2453, 126
        %v2462 = vpop.permute.xlu0 %2461
        %2463 = vrot.lane.b32.xlu0 %v2456, 126
        %v2464 = vpop.permute.xlu0 %2463
        %2465 = vrot.lane.b32.xlu0 %v2458, 126
        %v2466 = vpop.permute.xlu0 %2465
        %2467 = vrot.lane.b32.xlu0 %v2460, 126
        %v2468 = vpop.permute.xlu0 %2467
        %v2469 = vsel %vm645, %v2462, %v2464
        %v2470 = vsel %vm645, %v2466, %v2468
        %v2473 = vadd.f32 %v2435, %v2469
        %v2474 = vadd.f32 %v2436, %v2470
        %s2475 = sld [smem:[#allocation7 + $0x5d]]
        %v2476 = vstv %s2475
        %v2477 = vmul.f32 %v2003, %v2476
        %v2478 = vmul.f32 %v2004, %v2476
        %v2479 = vmul.f32 %v2005, %v2476
        %v2480 = vmul.f32 %v2006, %v2476
        %v2481 = vmul.f32 %v2007, %v2476
        %v2482 = vmul.f32 %v2008, %v2476
        %v2489 = vrot.slane %v2477, 6
        %v2490 = vrot.slane %v2479, 6
        %v2491 = vsel %vm358, %v2489, %v2490
        %v2492 = vrot.slane %v2478, 6
        %v2493 = vrot.slane %v2480, 6
        %v2494 = vsel %vm358, %v2492, %v2493
        %v2495 = vrot.slane %v2481, 6
        %v2496 = vsel %vm358, %v2490, %v2495
        %v2497 = vrot.slane %v2482, 6
        %v2498 = vsel %vm358, %v2493, %v2497
        %2499 = vrot.lane.b32.xlu0 %v2491, 126
        %v2500 = vpop.permute.xlu0 %2499
        %2501 = vrot.lane.b32.xlu0 %v2494, 126
        %v2502 = vpop.permute.xlu0 %2501
        %2503 = vrot.lane.b32.xlu0 %v2496, 126
        %v2504 = vpop.permute.xlu0 %2503
        %2505 = vrot.lane.b32.xlu0 %v2498, 126
        %v2506 = vpop.permute.xlu0 %2505
        %v2507 = vsel %vm645, %v2500, %v2502
        %v2508 = vsel %vm645, %v2504, %v2506
        %v2511 = vadd.f32 %v2473, %v2507
        %v2512 = vadd.f32 %v2474, %v2508
        %s2513 = sld [smem:[#allocation7 + $0x34]]
        %v2514 = vstv %s2513
        %v2515 = vmul.f32 %v2003, %v2514
        %v2516 = vmul.f32 %v2004, %v2514
        %v2517 = vmul.f32 %v2005, %v2514
        %v2518 = vmul.f32 %v2006, %v2514
        %2523 = vrot.lane.b32.xlu0 %v2515, 125
        %v2524 = vpop.permute.xlu0 %2523
        %2525 = vrot.lane.b32.xlu0 %v2516, 125
        %v2526 = vpop.permute.xlu0 %2525
        %2527 = vrot.lane.b32.xlu0 %v2517, 125
        %v2528 = vpop.permute.xlu0 %2527
        %2529 = vrot.lane.b32.xlu0 %v2518, 125
        %v2530 = vpop.permute.xlu0 %2529
        %v2531 = vsel %vm898, %v2524, %v2526
        %v2532 = vsel %vm898, %v2528, %v2530
        %v2535 = vadd.f32 %v2511, %v2531
        %v2536 = vadd.f32 %v2512, %v2532
        %s2537 = sld [smem:[#allocation7 + $0x3b]]
        %v2538 = vstv %s2537
        %v2539 = vmul.f32 %v2003, %v2538
        %v2540 = vmul.f32 %v2004, %v2538
        %v2541 = vmul.f32 %v2005, %v2538
        %v2542 = vmul.f32 %v2006, %v2538
        %v2543 = vmul.f32 %v2007, %v2538
        %v2544 = vmul.f32 %v2008, %v2538
        %v2551 = vrot.slane %v2539, 1
        %v2552 = vrot.slane %v2541, 1
        %v2553 = vsel %vm269, %v2551, %v2552
        %v2554 = vrot.slane %v2540, 1
        %v2555 = vrot.slane %v2542, 1
        %v2556 = vsel %vm269, %v2554, %v2555
        %v2557 = vrot.slane %v2543, 1
        %v2558 = vsel %vm269, %v2552, %v2557
        %v2559 = vrot.slane %v2544, 1
        %v2560 = vsel %vm269, %v2555, %v2559
        %2561 = vrot.lane.b32.xlu0 %v2553, 125
        %v2562 = vpop.permute.xlu0 %2561
        %2563 = vrot.lane.b32.xlu0 %v2556, 125
        %v2564 = vpop.permute.xlu0 %2563
        %2565 = vrot.lane.b32.xlu0 %v2558, 125
        %v2566 = vpop.permute.xlu0 %2565
        %2567 = vrot.lane.b32.xlu0 %v2560, 125
        %v2568 = vpop.permute.xlu0 %2567
        %v2569 = vsel %vm898, %v2562, %v2564
        %v2570 = vsel %vm898, %v2566, %v2568
        %v2573 = vadd.f32 %v2535, %v2569
        %v2574 = vadd.f32 %v2536, %v2570
        %s2575 = sld [smem:[#allocation7 + $0x42]]
        %v2576 = vstv %s2575
        %v2577 = vmul.f32 %v2003, %v2576
        %v2578 = vmul.f32 %v2004, %v2576
        %v2579 = vmul.f32 %v2005, %v2576
        %v2580 = vmul.f32 %v2006, %v2576
        %v2581 = vmul.f32 %v2007, %v2576
        %v2582 = vmul.f32 %v2008, %v2576
        %v2589 = vrot.slane %v2577, 2
        %v2590 = vrot.slane %v2579, 2
        %v2591 = vsel %vm287, %v2589, %v2590
        %v2592 = vrot.slane %v2578, 2
        %v2593 = vrot.slane %v2580, 2
        %v2594 = vsel %vm287, %v2592, %v2593
        %v2595 = vrot.slane %v2581, 2
        %v2596 = vsel %vm287, %v2590, %v2595
        %v2597 = vrot.slane %v2582, 2
        %v2598 = vsel %vm287, %v2593, %v2597
        %2599 = vrot.lane.b32.xlu0 %v2591, 125
        %v2600 = vpop.permute.xlu0 %2599
        %2601 = vrot.lane.b32.xlu0 %v2594, 125
        %v2602 = vpop.permute.xlu0 %2601
        %2603 = vrot.lane.b32.xlu0 %v2596, 125
        %v2604 = vpop.permute.xlu0 %2603
        %2605 = vrot.lane.b32.xlu0 %v2598, 125
        %v2606 = vpop.permute.xlu0 %2605
        %v2607 = vsel %vm898, %v2600, %v2602
        %v2608 = vsel %vm898, %v2604, %v2606
        %v2611 = vadd.f32 %v2573, %v2607
        %v2612 = vadd.f32 %v2574, %v2608
        %s2613 = sld [smem:[#allocation7 + $0x49]]
        %v2614 = vstv %s2613
        %v2615 = vmul.f32 %v2003, %v2614
        %v2616 = vmul.f32 %v2004, %v2614
        %v2617 = vmul.f32 %v2005, %v2614
        %v2618 = vmul.f32 %v2006, %v2614
        %v2619 = vmul.f32 %v2007, %v2614
        %v2620 = vmul.f32 %v2008, %v2614
        %v2627 = vrot.slane %v2615, 3
        %v2628 = vrot.slane %v2617, 3
        %v2629 = vsel %vm305, %v2627, %v2628
        %v2630 = vrot.slane %v2616, 3
        %v2631 = vrot.slane %v2618, 3
        %v2632 = vsel %vm305, %v2630, %v2631
        %v2633 = vrot.slane %v2619, 3
        %v2634 = vsel %vm305, %v2628, %v2633
        %v2635 = vrot.slane %v2620, 3
        %v2636 = vsel %vm305, %v2631, %v2635
        %2637 = vrot.lane.b32.xlu0 %v2629, 125
        %v2638 = vpop.permute.xlu0 %2637
        %2639 = vrot.lane.b32.xlu0 %v2632, 125
        %v2640 = vpop.permute.xlu0 %2639
        %2641 = vrot.lane.b32.xlu0 %v2634, 125
        %v2642 = vpop.permute.xlu0 %2641
        %2643 = vrot.lane.b32.xlu0 %v2636, 125
        %v2644 = vpop.permute.xlu0 %2643
        %v2645 = vsel %vm898, %v2638, %v2640
        %v2646 = vsel %vm898, %v2642, %v2644
        %v2649 = vadd.f32 %v2611, %v2645
        %v2650 = vadd.f32 %v2612, %v2646
        %s2651 = sld [smem:[#allocation7 + $0x50]]
        %v2652 = vstv %s2651
        %v2653 = vmul.f32 %v2003, %v2652
        %v2654 = vmul.f32 %v2004, %v2652
        %v2655 = vmul.f32 %v2005, %v2652
        %v2656 = vmul.f32 %v2006, %v2652
        %v2657 = vmul.f32 %v2007, %v2652
        %v2658 = vmul.f32 %v2008, %v2652
        %v2665 = vrot.slane %v2653, 4
        %v2666 = vrot.slane %v2655, 4
        %v2667 = vsel %vm323, %v2665, %v2666
        %v2668 = vrot.slane %v2654, 4
        %v2669 = vrot.slane %v2656, 4
        %v2670 = vsel %vm323, %v2668, %v2669
        %v2671 = vrot.slane %v2657, 4
        %v2672 = vsel %vm323, %v2666, %v2671
        %v2673 = vrot.slane %v2658, 4
        %v2674 = vsel %vm323, %v2669, %v2673
        %2675 = vrot.lane.b32.xlu0 %v2667, 125
        %v2676 = vpop.permute.xlu0 %2675
        %2677 = vrot.lane.b32.xlu0 %v2670, 125
        %v2678 = vpop.permute.xlu0 %2677
        %2679 = vrot.lane.b32.xlu0 %v2672, 125
        %v2680 = vpop.permute.xlu0 %2679
        %2681 = vrot.lane.b32.xlu0 %v2674, 125
        %v2682 = vpop.permute.xlu0 %2681
        %v2683 = vsel %vm898, %v2676, %v2678
        %v2684 = vsel %vm898, %v2680, %v2682
        %v2687 = vadd.f32 %v2649, %v2683
        %v2688 = vadd.f32 %v2650, %v2684
        %s2689 = sld [smem:[#allocation7 + $0x57]]
        %v2690 = vstv %s2689
        %v2691 = vmul.f32 %v2003, %v2690
        %v2692 = vmul.f32 %v2004, %v2690
        %v2693 = vmul.f32 %v2005, %v2690
        %v2694 = vmul.f32 %v2006, %v2690
        %v2695 = vmul.f32 %v2007, %v2690
        %v2696 = vmul.f32 %v2008, %v2690
        %v2703 = vrot.slane %v2691, 5
        %v2704 = vrot.slane %v2693, 5
        %v2705 = vsel %vm215, %v2703, %v2704
        %v2706 = vrot.slane %v2692, 5
        %v2707 = vrot.slane %v2694, 5
        %v2708 = vsel %vm215, %v2706, %v2707
        %v2709 = vrot.slane %v2695, 5
        %v2710 = vsel %vm215, %v2704, %v2709
        %v2711 = vrot.slane %v2696, 5
        %v2712 = vsel %vm215, %v2707, %v2711
        %2713 = vrot.lane.b32.xlu0 %v2705, 125
        %v2714 = vpop.permute.xlu0 %2713
        %2715 = vrot.lane.b32.xlu0 %v2708, 125
        %v2716 = vpop.permute.xlu0 %2715
        %2717 = vrot.lane.b32.xlu0 %v2710, 125
        %v2718 = vpop.permute.xlu0 %2717
        %2719 = vrot.lane.b32.xlu0 %v2712, 125
        %v2720 = vpop.permute.xlu0 %2719
        %v2721 = vsel %vm898, %v2714, %v2716
        %v2722 = vsel %vm898, %v2718, %v2720
        %v2725 = vadd.f32 %v2687, %v2721
        %v2726 = vadd.f32 %v2688, %v2722
        %s2727 = sld [smem:[#allocation7 + $0x5e]]
        %v2728 = vstv %s2727
        %v2729 = vmul.f32 %v2003, %v2728
        %v2730 = vmul.f32 %v2004, %v2728
        %v2731 = vmul.f32 %v2005, %v2728
        %v2732 = vmul.f32 %v2006, %v2728
        %v2733 = vmul.f32 %v2007, %v2728
        %v2734 = vmul.f32 %v2008, %v2728
        %v2741 = vrot.slane %v2729, 6
        %v2742 = vrot.slane %v2731, 6
        %v2743 = vsel %vm358, %v2741, %v2742
        %v2744 = vrot.slane %v2730, 6
        %v2745 = vrot.slane %v2732, 6
        %v2746 = vsel %vm358, %v2744, %v2745
        %v2747 = vrot.slane %v2733, 6
        %v2748 = vsel %vm358, %v2742, %v2747
        %v2749 = vrot.slane %v2734, 6
        %v2750 = vsel %vm358, %v2745, %v2749
        %2751 = vrot.lane.b32.xlu0 %v2743, 125
        %v2752 = vpop.permute.xlu0 %2751
        %2753 = vrot.lane.b32.xlu0 %v2746, 125
        %v2754 = vpop.permute.xlu0 %2753
        %2755 = vrot.lane.b32.xlu0 %v2748, 125
        %v2756 = vpop.permute.xlu0 %2755
        %2757 = vrot.lane.b32.xlu0 %v2750, 125
        %v2758 = vpop.permute.xlu0 %2757
        %v2759 = vsel %vm898, %v2752, %v2754
        %v2760 = vsel %vm898, %v2756, %v2758
        %v2763 = vadd.f32 %v2725, %v2759
        %v2764 = vadd.f32 %v2726, %v2760
        %s2765 = sld [smem:[#allocation7 + $0x35]]
        %v2766 = vstv %s2765
        %v2767 = vmul.f32 %v2003, %v2766
        %v2768 = vmul.f32 %v2004, %v2766
        %v2769 = vmul.f32 %v2005, %v2766
        %v2770 = vmul.f32 %v2006, %v2766
        %2775 = vrot.lane.b32.xlu0 %v2767, 124
        %v2776 = vpop.permute.xlu0 %2775
        %2777 = vrot.lane.b32.xlu0 %v2768, 124
        %v2778 = vpop.permute.xlu0 %2777
        %2779 = vrot.lane.b32.xlu0 %v2769, 124
        %v2780 = vpop.permute.xlu0 %2779
        %2781 = vrot.lane.b32.xlu0 %v2770, 124
        %v2782 = vpop.permute.xlu0 %2781
        %v2783 = vsel %vm1151, %v2776, %v2778
        %v2784 = vsel %vm1151, %v2780, %v2782
        %v2787 = vadd.f32 %v2763, %v2783
        %v2788 = vadd.f32 %v2764, %v2784
        %s2789 = sld [smem:[#allocation7 + $0x3c]]
        %v2790 = vstv %s2789
        %v2791 = vmul.f32 %v2003, %v2790
        %v2792 = vmul.f32 %v2004, %v2790
        %v2793 = vmul.f32 %v2005, %v2790
        %v2794 = vmul.f32 %v2006, %v2790
        %v2795 = vmul.f32 %v2007, %v2790
        %v2796 = vmul.f32 %v2008, %v2790
        %v2803 = vrot.slane %v2791, 1
        %v2804 = vrot.slane %v2793, 1
        %v2805 = vsel %vm269, %v2803, %v2804
        %v2806 = vrot.slane %v2792, 1
        %v2807 = vrot.slane %v2794, 1
        %v2808 = vsel %vm269, %v2806, %v2807
        %v2809 = vrot.slane %v2795, 1
        %v2810 = vsel %vm269, %v2804, %v2809
        %v2811 = vrot.slane %v2796, 1
        %v2812 = vsel %vm269, %v2807, %v2811
        %2813 = vrot.lane.b32.xlu0 %v2805, 124
        %v2814 = vpop.permute.xlu0 %2813
        %2815 = vrot.lane.b32.xlu0 %v2808, 124
        %v2816 = vpop.permute.xlu0 %2815
        %2817 = vrot.lane.b32.xlu0 %v2810, 124
        %v2818 = vpop.permute.xlu0 %2817
        %2819 = vrot.lane.b32.xlu0 %v2812, 124
        %v2820 = vpop.permute.xlu0 %2819
        %v2821 = vsel %vm1151, %v2814, %v2816
        %v2822 = vsel %vm1151, %v2818, %v2820
        %v2825 = vadd.f32 %v2787, %v2821
        %v2826 = vadd.f32 %v2788, %v2822
        %s2827 = sld [smem:[#allocation7 + $0x43]]
        %v2828 = vstv %s2827
        %v2829 = vmul.f32 %v2003, %v2828
        %v2830 = vmul.f32 %v2004, %v2828
        %v2831 = vmul.f32 %v2005, %v2828
        %v2832 = vmul.f32 %v2006, %v2828
        %v2833 = vmul.f32 %v2007, %v2828
        %v2834 = vmul.f32 %v2008, %v2828
        %v2841 = vrot.slane %v2829, 2
        %v2842 = vrot.slane %v2831, 2
        %v2843 = vsel %vm287, %v2841, %v2842
        %v2844 = vrot.slane %v2830, 2
        %v2845 = vrot.slane %v2832, 2
        %v2846 = vsel %vm287, %v2844, %v2845
        %v2847 = vrot.slane %v2833, 2
        %v2848 = vsel %vm287, %v2842, %v2847
        %v2849 = vrot.slane %v2834, 2
        %v2850 = vsel %vm287, %v2845, %v2849
        %2851 = vrot.lane.b32.xlu0 %v2843, 124
        %v2852 = vpop.permute.xlu0 %2851
        %2853 = vrot.lane.b32.xlu0 %v2846, 124
        %v2854 = vpop.permute.xlu0 %2853
        %2855 = vrot.lane.b32.xlu0 %v2848, 124
        %v2856 = vpop.permute.xlu0 %2855
        %2857 = vrot.lane.b32.xlu0 %v2850, 124
        %v2858 = vpop.permute.xlu0 %2857
        %v2859 = vsel %vm1151, %v2852, %v2854
        %v2860 = vsel %vm1151, %v2856, %v2858
        %v2863 = vadd.f32 %v2825, %v2859
        %v2864 = vadd.f32 %v2826, %v2860
        %s2865 = sld [smem:[#allocation7 + $0x4a]]
        %v2866 = vstv %s2865
        %v2867 = vmul.f32 %v2003, %v2866
        %v2868 = vmul.f32 %v2004, %v2866
        %v2869 = vmul.f32 %v2005, %v2866
        %v2870 = vmul.f32 %v2006, %v2866
        %v2871 = vmul.f32 %v2007, %v2866
        %v2872 = vmul.f32 %v2008, %v2866
        %v2879 = vrot.slane %v2867, 3
        %v2880 = vrot.slane %v2869, 3
        %v2881 = vsel %vm305, %v2879, %v2880
        %v2882 = vrot.slane %v2868, 3
        %v2883 = vrot.slane %v2870, 3
        %v2884 = vsel %vm305, %v2882, %v2883
        %v2885 = vrot.slane %v2871, 3
        %v2886 = vsel %vm305, %v2880, %v2885
        %v2887 = vrot.slane %v2872, 3
        %v2888 = vsel %vm305, %v2883, %v2887
        %2889 = vrot.lane.b32.xlu0 %v2881, 124
        %v2890 = vpop.permute.xlu0 %2889
        %2891 = vrot.lane.b32.xlu0 %v2884, 124
        %v2892 = vpop.permute.xlu0 %2891
        %2893 = vrot.lane.b32.xlu0 %v2886, 124
        %v2894 = vpop.permute.xlu0 %2893
        %2895 = vrot.lane.b32.xlu0 %v2888, 124
        %v2896 = vpop.permute.xlu0 %2895
        %v2897 = vsel %vm1151, %v2890, %v2892
        %v2898 = vsel %vm1151, %v2894, %v2896
        %v2901 = vadd.f32 %v2863, %v2897
        %v2902 = vadd.f32 %v2864, %v2898
        %s2903 = sld [smem:[#allocation7 + $0x51]]
        %v2904 = vstv %s2903
        %v2905 = vmul.f32 %v2003, %v2904
        %v2906 = vmul.f32 %v2004, %v2904
        %v2907 = vmul.f32 %v2005, %v2904
        %v2908 = vmul.f32 %v2006, %v2904
        %v2909 = vmul.f32 %v2007, %v2904
        %v2910 = vmul.f32 %v2008, %v2904
        %v2917 = vrot.slane %v2905, 4
        %v2918 = vrot.slane %v2907, 4
        %v2919 = vsel %vm323, %v2917, %v2918
        %v2920 = vrot.slane %v2906, 4
        %v2921 = vrot.slane %v2908, 4
        %v2922 = vsel %vm323, %v2920, %v2921
        %v2923 = vrot.slane %v2909, 4
        %v2924 = vsel %vm323, %v2918, %v2923
        %v2925 = vrot.slane %v2910, 4
        %v2926 = vsel %vm323, %v2921, %v2925
        %2927 = vrot.lane.b32.xlu0 %v2919, 124
        %v2928 = vpop.permute.xlu0 %2927
        %2929 = vrot.lane.b32.xlu0 %v2922, 124
        %v2930 = vpop.permute.xlu0 %2929
        %2931 = vrot.lane.b32.xlu0 %v2924, 124
        %v2932 = vpop.permute.xlu0 %2931
        %2933 = vrot.lane.b32.xlu0 %v2926, 124
        %v2934 = vpop.permute.xlu0 %2933
        %v2935 = vsel %vm1151, %v2928, %v2930
        %v2936 = vsel %vm1151, %v2932, %v2934
        %v2939 = vadd.f32 %v2901, %v2935
        %v2940 = vadd.f32 %v2902, %v2936
        %s2941 = sld [smem:[#allocation7 + $0x58]]
        %v2942 = vstv %s2941
        %v2943 = vmul.f32 %v2003, %v2942
        %v2944 = vmul.f32 %v2004, %v2942
        %v2945 = vmul.f32 %v2005, %v2942
        %v2946 = vmul.f32 %v2006, %v2942
        %v2947 = vmul.f32 %v2007, %v2942
        %v2948 = vmul.f32 %v2008, %v2942
        %v2955 = vrot.slane %v2943, 5
        %v2956 = vrot.slane %v2945, 5
        %v2957 = vsel %vm215, %v2955, %v2956
        %v2958 = vrot.slane %v2944, 5
        %v2959 = vrot.slane %v2946, 5
        %v2960 = vsel %vm215, %v2958, %v2959
        %v2961 = vrot.slane %v2947, 5
        %v2962 = vsel %vm215, %v2956, %v2961
        %v2963 = vrot.slane %v2948, 5
        %v2964 = vsel %vm215, %v2959, %v2963
        %2965 = vrot.lane.b32.xlu0 %v2957, 124
        %v2966 = vpop.permute.xlu0 %2965
        %2967 = vrot.lane.b32.xlu0 %v2960, 124
        %v2968 = vpop.permute.xlu0 %2967
        %2969 = vrot.lane.b32.xlu0 %v2962, 124
        %v2970 = vpop.permute.xlu0 %2969
        %2971 = vrot.lane.b32.xlu0 %v2964, 124
        %v2972 = vpop.permute.xlu0 %2971
        %v2973 = vsel %vm1151, %v2966, %v2968
        %v2974 = vsel %vm1151, %v2970, %v2972
        %v2977 = vadd.f32 %v2939, %v2973
        %v2978 = vadd.f32 %v2940, %v2974
        %s2979 = sld [smem:[#allocation7 + $0x5f]]
        %v2980 = vstv %s2979
        %v2981 = vmul.f32 %v2003, %v2980
        %v2982 = vmul.f32 %v2004, %v2980
        %v2983 = vmul.f32 %v2005, %v2980
        %v2984 = vmul.f32 %v2006, %v2980
        %v2985 = vmul.f32 %v2007, %v2980
        %v2986 = vmul.f32 %v2008, %v2980
        %v2993 = vrot.slane %v2981, 6
        %v2994 = vrot.slane %v2983, 6
        %v2995 = vsel %vm358, %v2993, %v2994
        %v2996 = vrot.slane %v2982, 6
        %v2997 = vrot.slane %v2984, 6
        %v2998 = vsel %vm358, %v2996, %v2997
        %v2999 = vrot.slane %v2985, 6
        %v3000 = vsel %vm358, %v2994, %v2999
        %v3001 = vrot.slane %v2986, 6
        %v3002 = vsel %vm358, %v2997, %v3001
        %3003 = vrot.lane.b32.xlu0 %v2995, 124
        %v3004 = vpop.permute.xlu0 %3003
        %3005 = vrot.lane.b32.xlu0 %v2998, 124
        %v3006 = vpop.permute.xlu0 %3005
        %3007 = vrot.lane.b32.xlu0 %v3000, 124
        %v3008 = vpop.permute.xlu0 %3007
        %3009 = vrot.lane.b32.xlu0 %v3002, 124
        %v3010 = vpop.permute.xlu0 %3009
        %v3011 = vsel %vm1151, %v3004, %v3006
        %v3012 = vsel %vm1151, %v3008, %v3010
        %v3015 = vadd.f32 %v2977, %v3011
        %v3016 = vadd.f32 %v2978, %v3012
        %s3017 = sld [smem:[#allocation7 + $0x36]]
        %v3018 = vstv %s3017
        %v3019 = vmul.f32 %v2003, %v3018
        %v3020 = vmul.f32 %v2004, %v3018
        %v3021 = vmul.f32 %v2005, %v3018
        %v3022 = vmul.f32 %v2006, %v3018
        %3027 = vrot.lane.b32.xlu0 %v3019, 123
        %v3028 = vpop.permute.xlu0 %3027
        %3029 = vrot.lane.b32.xlu0 %v3020, 123
        %v3030 = vpop.permute.xlu0 %3029
        %3031 = vrot.lane.b32.xlu0 %v3021, 123
        %v3032 = vpop.permute.xlu0 %3031
        %3033 = vrot.lane.b32.xlu0 %v3022, 123
        %v3034 = vpop.permute.xlu0 %3033
        %v3035 = vsel %vm1404, %v3028, %v3030
        %v3036 = vsel %vm1404, %v3032, %v3034
        %v3039 = vadd.f32 %v3015, %v3035
        %v3040 = vadd.f32 %v3016, %v3036
        %s3041 = sld [smem:[#allocation7 + $0x3d]]
        %v3042 = vstv %s3041
        %v3043 = vmul.f32 %v2003, %v3042
        %v3044 = vmul.f32 %v2004, %v3042
        %v3045 = vmul.f32 %v2005, %v3042
        %v3046 = vmul.f32 %v2006, %v3042
        %v3047 = vmul.f32 %v2007, %v3042
        %v3048 = vmul.f32 %v2008, %v3042
        %v3055 = vrot.slane %v3043, 1
        %v3056 = vrot.slane %v3045, 1
        %v3057 = vsel %vm269, %v3055, %v3056
        %v3058 = vrot.slane %v3044, 1
        %v3059 = vrot.slane %v3046, 1
        %v3060 = vsel %vm269, %v3058, %v3059
        %v3061 = vrot.slane %v3047, 1
        %v3062 = vsel %vm269, %v3056, %v3061
        %v3063 = vrot.slane %v3048, 1
        %v3064 = vsel %vm269, %v3059, %v3063
        %3065 = vrot.lane.b32.xlu0 %v3057, 123
        %v3066 = vpop.permute.xlu0 %3065
        %3067 = vrot.lane.b32.xlu0 %v3060, 123
        %v3068 = vpop.permute.xlu0 %3067
        %3069 = vrot.lane.b32.xlu0 %v3062, 123
        %v3070 = vpop.permute.xlu0 %3069
        %3071 = vrot.lane.b32.xlu0 %v3064, 123
        %v3072 = vpop.permute.xlu0 %3071
        %v3073 = vsel %vm1404, %v3066, %v3068
        %v3074 = vsel %vm1404, %v3070, %v3072
        %v3077 = vadd.f32 %v3039, %v3073
        %v3078 = vadd.f32 %v3040, %v3074
        %s3079 = sld [smem:[#allocation7 + $0x44]]
        %v3080 = vstv %s3079
        %v3081 = vmul.f32 %v2003, %v3080
        %v3082 = vmul.f32 %v2004, %v3080
        %v3083 = vmul.f32 %v2005, %v3080
        %v3084 = vmul.f32 %v2006, %v3080
        %v3085 = vmul.f32 %v2007, %v3080
        %v3086 = vmul.f32 %v2008, %v3080
        %v3093 = vrot.slane %v3081, 2
        %v3094 = vrot.slane %v3083, 2
        %v3095 = vsel %vm287, %v3093, %v3094
        %v3096 = vrot.slane %v3082, 2
        %v3097 = vrot.slane %v3084, 2
        %v3098 = vsel %vm287, %v3096, %v3097
        %v3099 = vrot.slane %v3085, 2
        %v3100 = vsel %vm287, %v3094, %v3099
        %v3101 = vrot.slane %v3086, 2
        %v3102 = vsel %vm287, %v3097, %v3101
        %3103 = vrot.lane.b32.xlu0 %v3095, 123
        %v3104 = vpop.permute.xlu0 %3103
        %3105 = vrot.lane.b32.xlu0 %v3098, 123
        %v3106 = vpop.permute.xlu0 %3105
        %3107 = vrot.lane.b32.xlu0 %v3100, 123
        %v3108 = vpop.permute.xlu0 %3107
        %3109 = vrot.lane.b32.xlu0 %v3102, 123
        %v3110 = vpop.permute.xlu0 %3109
        %v3111 = vsel %vm1404, %v3104, %v3106
        %v3112 = vsel %vm1404, %v3108, %v3110
        %v3115 = vadd.f32 %v3077, %v3111
        %v3116 = vadd.f32 %v3078, %v3112
        %s3117 = sld [smem:[#allocation7 + $0x4b]]
        %v3118 = vstv %s3117
        %v3119 = vmul.f32 %v2003, %v3118
        %v3120 = vmul.f32 %v2004, %v3118
        %v3121 = vmul.f32 %v2005, %v3118
        %v3122 = vmul.f32 %v2006, %v3118
        %v3123 = vmul.f32 %v2007, %v3118
        %v3124 = vmul.f32 %v2008, %v3118
        %v3131 = vrot.slane %v3119, 3
        %v3132 = vrot.slane %v3121, 3
        %v3133 = vsel %vm305, %v3131, %v3132
        %v3134 = vrot.slane %v3120, 3
        %v3135 = vrot.slane %v3122, 3
        %v3136 = vsel %vm305, %v3134, %v3135
        %v3137 = vrot.slane %v3123, 3
        %v3138 = vsel %vm305, %v3132, %v3137
        %v3139 = vrot.slane %v3124, 3
        %v3140 = vsel %vm305, %v3135, %v3139
        %3141 = vrot.lane.b32.xlu0 %v3133, 123
        %v3142 = vpop.permute.xlu0 %3141
        %3143 = vrot.lane.b32.xlu0 %v3136, 123
        %v3144 = vpop.permute.xlu0 %3143
        %3145 = vrot.lane.b32.xlu0 %v3138, 123
        %v3146 = vpop.permute.xlu0 %3145
        %3147 = vrot.lane.b32.xlu0 %v3140, 123
        %v3148 = vpop.permute.xlu0 %3147
        %v3149 = vsel %vm1404, %v3142, %v3144
        %v3150 = vsel %vm1404, %v3146, %v3148
        %v3153 = vadd.f32 %v3115, %v3149
        %v3154 = vadd.f32 %v3116, %v3150
        %s3155 = sld [smem:[#allocation7 + $0x52]]
        %v3156 = vstv %s3155
        %v3157 = vmul.f32 %v2003, %v3156
        %v3158 = vmul.f32 %v2004, %v3156
        %v3159 = vmul.f32 %v2005, %v3156
        %v3160 = vmul.f32 %v2006, %v3156
        %v3161 = vmul.f32 %v2007, %v3156
        %v3162 = vmul.f32 %v2008, %v3156
        %v3169 = vrot.slane %v3157, 4
        %v3170 = vrot.slane %v3159, 4
        %v3171 = vsel %vm323, %v3169, %v3170
        %v3172 = vrot.slane %v3158, 4
        %v3173 = vrot.slane %v3160, 4
        %v3174 = vsel %vm323, %v3172, %v3173
        %v3175 = vrot.slane %v3161, 4
        %v3176 = vsel %vm323, %v3170, %v3175
        %v3177 = vrot.slane %v3162, 4
        %v3178 = vsel %vm323, %v3173, %v3177
        %3179 = vrot.lane.b32.xlu0 %v3171, 123
        %v3180 = vpop.permute.xlu0 %3179
        %3181 = vrot.lane.b32.xlu0 %v3174, 123
        %v3182 = vpop.permute.xlu0 %3181
        %3183 = vrot.lane.b32.xlu0 %v3176, 123
        %v3184 = vpop.permute.xlu0 %3183
        %3185 = vrot.lane.b32.xlu0 %v3178, 123
        %v3186 = vpop.permute.xlu0 %3185
        %v3187 = vsel %vm1404, %v3180, %v3182
        %v3188 = vsel %vm1404, %v3184, %v3186
        %v3191 = vadd.f32 %v3153, %v3187
        %v3192 = vadd.f32 %v3154, %v3188
        %s3193 = sld [smem:[#allocation7 + $0x59]]
        %v3194 = vstv %s3193
        %v3195 = vmul.f32 %v2003, %v3194
        %v3196 = vmul.f32 %v2004, %v3194
        %v3197 = vmul.f32 %v2005, %v3194
        %v3198 = vmul.f32 %v2006, %v3194
        %v3199 = vmul.f32 %v2007, %v3194
        %v3200 = vmul.f32 %v2008, %v3194
        %v3207 = vrot.slane %v3195, 5
        %v3208 = vrot.slane %v3197, 5
        %v3209 = vsel %vm215, %v3207, %v3208
        %v3210 = vrot.slane %v3196, 5
        %v3211 = vrot.slane %v3198, 5
        %v3212 = vsel %vm215, %v3210, %v3211
        %v3213 = vrot.slane %v3199, 5
        %v3214 = vsel %vm215, %v3208, %v3213
        %v3215 = vrot.slane %v3200, 5
        %v3216 = vsel %vm215, %v3211, %v3215
        %3217 = vrot.lane.b32.xlu0 %v3209, 123
        %v3218 = vpop.permute.xlu0 %3217
        %3219 = vrot.lane.b32.xlu0 %v3212, 123
        %v3220 = vpop.permute.xlu0 %3219
        %3221 = vrot.lane.b32.xlu0 %v3214, 123
        %v3222 = vpop.permute.xlu0 %3221
        %3223 = vrot.lane.b32.xlu0 %v3216, 123
        %v3224 = vpop.permute.xlu0 %3223
        %v3225 = vsel %vm1404, %v3218, %v3220
        %v3226 = vsel %vm1404, %v3222, %v3224
        %v3229 = vadd.f32 %v3191, %v3225
        %v3230 = vadd.f32 %v3192, %v3226
        %s3231 = sld [smem:[#allocation7 + $0x60]]
        %v3232 = vstv %s3231
        %v3233 = vmul.f32 %v2003, %v3232
        %v3234 = vmul.f32 %v2004, %v3232
        %v3235 = vmul.f32 %v2005, %v3232
        %v3236 = vmul.f32 %v2006, %v3232
        %v3237 = vmul.f32 %v2007, %v3232
        %v3238 = vmul.f32 %v2008, %v3232
        %v3245 = vrot.slane %v3233, 6
        %v3246 = vrot.slane %v3235, 6
        %v3247 = vsel %vm358, %v3245, %v3246
        %v3248 = vrot.slane %v3234, 6
        %v3249 = vrot.slane %v3236, 6
        %v3250 = vsel %vm358, %v3248, %v3249
        %v3251 = vrot.slane %v3237, 6
        %v3252 = vsel %vm358, %v3246, %v3251
        %v3253 = vrot.slane %v3238, 6
        %v3254 = vsel %vm358, %v3249, %v3253
        %3255 = vrot.lane.b32.xlu0 %v3247, 123
        %v3256 = vpop.permute.xlu0 %3255
        %3257 = vrot.lane.b32.xlu0 %v3250, 123
        %v3258 = vpop.permute.xlu0 %3257
        %3259 = vrot.lane.b32.xlu0 %v3252, 123
        %v3260 = vpop.permute.xlu0 %3259
        %3261 = vrot.lane.b32.xlu0 %v3254, 123
        %v3262 = vpop.permute.xlu0 %3261
        %v3263 = vsel %vm1404, %v3256, %v3258
        %v3264 = vsel %vm1404, %v3260, %v3262
        %v3267 = vadd.f32 %v3229, %v3263
        %v3268 = vadd.f32 %v3230, %v3264
        %s3269 = sld [smem:[#allocation7 + $0x37]]
        %v3270 = vstv %s3269
        %v3271 = vmul.f32 %v2003, %v3270
        %v3272 = vmul.f32 %v2004, %v3270
        %v3273 = vmul.f32 %v2005, %v3270
        %v3274 = vmul.f32 %v2006, %v3270
        %3279 = vrot.lane.b32.xlu0 %v3271, 122
        %v3280 = vpop.permute.xlu0 %3279
        %3281 = vrot.lane.b32.xlu0 %v3272, 122
        %v3282 = vpop.permute.xlu0 %3281
        %3283 = vrot.lane.b32.xlu0 %v3273, 122
        %v3284 = vpop.permute.xlu0 %3283
        %3285 = vrot.lane.b32.xlu0 %v3274, 122
        %v3286 = vpop.permute.xlu0 %3285
        %v3287 = vsel %vm1657, %v3280, %v3282
        %v3288 = vsel %vm1657, %v3284, %v3286
        %v3291 = vadd.f32 %v3267, %v3287
        %v3292 = vadd.f32 %v3268, %v3288
        %s3293 = sld [smem:[#allocation7 + $0x3e]]
        %v3294 = vstv %s3293
        %v3295 = vmul.f32 %v2003, %v3294
        %v3296 = vmul.f32 %v2004, %v3294
        %v3297 = vmul.f32 %v2005, %v3294
        %v3298 = vmul.f32 %v2006, %v3294
        %v3299 = vmul.f32 %v2007, %v3294
        %v3300 = vmul.f32 %v2008, %v3294
        %v3307 = vrot.slane %v3295, 1
        %v3308 = vrot.slane %v3297, 1
        %v3309 = vsel %vm269, %v3307, %v3308
        %v3310 = vrot.slane %v3296, 1
        %v3311 = vrot.slane %v3298, 1
        %v3312 = vsel %vm269, %v3310, %v3311
        %v3313 = vrot.slane %v3299, 1
        %v3314 = vsel %vm269, %v3308, %v3313
        %v3315 = vrot.slane %v3300, 1
        %v3316 = vsel %vm269, %v3311, %v3315
        %3317 = vrot.lane.b32.xlu0 %v3309, 122
        %v3318 = vpop.permute.xlu0 %3317
        %3319 = vrot.lane.b32.xlu0 %v3312, 122
        %v3320 = vpop.permute.xlu0 %3319
        %3321 = vrot.lane.b32.xlu0 %v3314, 122
        %v3322 = vpop.permute.xlu0 %3321
        %3323 = vrot.lane.b32.xlu0 %v3316, 122
        %v3324 = vpop.permute.xlu0 %3323
        %v3325 = vsel %vm1657, %v3318, %v3320
        %v3326 = vsel %vm1657, %v3322, %v3324
        %v3329 = vadd.f32 %v3291, %v3325
        %v3330 = vadd.f32 %v3292, %v3326
        %s3331 = sld [smem:[#allocation7 + $0x45]]
        %v3332 = vstv %s3331
        %v3333 = vmul.f32 %v2003, %v3332
        %v3334 = vmul.f32 %v2004, %v3332
        %v3335 = vmul.f32 %v2005, %v3332
        %v3336 = vmul.f32 %v2006, %v3332
        %v3337 = vmul.f32 %v2007, %v3332
        %v3338 = vmul.f32 %v2008, %v3332
        %v3345 = vrot.slane %v3333, 2
        %v3346 = vrot.slane %v3335, 2
        %v3347 = vsel %vm287, %v3345, %v3346
        %v3348 = vrot.slane %v3334, 2
        %v3349 = vrot.slane %v3336, 2
        %v3350 = vsel %vm287, %v3348, %v3349
        %v3351 = vrot.slane %v3337, 2
        %v3352 = vsel %vm287, %v3346, %v3351
        %v3353 = vrot.slane %v3338, 2
        %v3354 = vsel %vm287, %v3349, %v3353
        %3355 = vrot.lane.b32.xlu0 %v3347, 122
        %v3356 = vpop.permute.xlu0 %3355
        %3357 = vrot.lane.b32.xlu0 %v3350, 122
        %v3358 = vpop.permute.xlu0 %3357
        %3359 = vrot.lane.b32.xlu0 %v3352, 122
        %v3360 = vpop.permute.xlu0 %3359
        %3361 = vrot.lane.b32.xlu0 %v3354, 122
        %v3362 = vpop.permute.xlu0 %3361
        %v3363 = vsel %vm1657, %v3356, %v3358
        %v3364 = vsel %vm1657, %v3360, %v3362
        %v3367 = vadd.f32 %v3329, %v3363
        %v3368 = vadd.f32 %v3330, %v3364
        %s3369 = sld [smem:[#allocation7 + $0x4c]]
        %v3370 = vstv %s3369
        %v3371 = vmul.f32 %v2003, %v3370
        %v3372 = vmul.f32 %v2004, %v3370
        %v3373 = vmul.f32 %v2005, %v3370
        %v3374 = vmul.f32 %v2006, %v3370
        %v3375 = vmul.f32 %v2007, %v3370
        %v3376 = vmul.f32 %v2008, %v3370
        %v3383 = vrot.slane %v3371, 3
        %v3384 = vrot.slane %v3373, 3
        %v3385 = vsel %vm305, %v3383, %v3384
        %v3386 = vrot.slane %v3372, 3
        %v3387 = vrot.slane %v3374, 3
        %v3388 = vsel %vm305, %v3386, %v3387
        %v3389 = vrot.slane %v3375, 3
        %v3390 = vsel %vm305, %v3384, %v3389
        %v3391 = vrot.slane %v3376, 3
        %v3392 = vsel %vm305, %v3387, %v3391
        %3393 = vrot.lane.b32.xlu0 %v3385, 122
        %v3394 = vpop.permute.xlu0 %3393
        %3395 = vrot.lane.b32.xlu0 %v3388, 122
        %v3396 = vpop.permute.xlu0 %3395
        %3397 = vrot.lane.b32.xlu0 %v3390, 122
        %v3398 = vpop.permute.xlu0 %3397
        %3399 = vrot.lane.b32.xlu0 %v3392, 122
        %v3400 = vpop.permute.xlu0 %3399
        %v3401 = vsel %vm1657, %v3394, %v3396
        %v3402 = vsel %vm1657, %v3398, %v3400
        %v3405 = vadd.f32 %v3367, %v3401
        %v3406 = vadd.f32 %v3368, %v3402
        %s3407 = sld [smem:[#allocation7 + $0x53]]
        %v3408 = vstv %s3407
        %v3409 = vmul.f32 %v2003, %v3408
        %v3410 = vmul.f32 %v2004, %v3408
        %v3411 = vmul.f32 %v2005, %v3408
        %v3412 = vmul.f32 %v2006, %v3408
        %v3413 = vmul.f32 %v2007, %v3408
        %v3414 = vmul.f32 %v2008, %v3408
        %v3421 = vrot.slane %v3409, 4
        %v3422 = vrot.slane %v3411, 4
        %v3423 = vsel %vm323, %v3421, %v3422
        %v3424 = vrot.slane %v3410, 4
        %v3425 = vrot.slane %v3412, 4
        %v3426 = vsel %vm323, %v3424, %v3425
        %v3427 = vrot.slane %v3413, 4
        %v3428 = vsel %vm323, %v3422, %v3427
        %v3429 = vrot.slane %v3414, 4
        %v3430 = vsel %vm323, %v3425, %v3429
        %3431 = vrot.lane.b32.xlu0 %v3423, 122
        %v3432 = vpop.permute.xlu0 %3431
        %3433 = vrot.lane.b32.xlu0 %v3426, 122
        %v3434 = vpop.permute.xlu0 %3433
        %3435 = vrot.lane.b32.xlu0 %v3428, 122
        %v3436 = vpop.permute.xlu0 %3435
        %3437 = vrot.lane.b32.xlu0 %v3430, 122
        %v3438 = vpop.permute.xlu0 %3437
        %v3439 = vsel %vm1657, %v3432, %v3434
        %v3440 = vsel %vm1657, %v3436, %v3438
        %v3443 = vadd.f32 %v3405, %v3439
        %v3444 = vadd.f32 %v3406, %v3440
        %s3445 = sld [smem:[#allocation7 + $0x5a]]
        %v3446 = vstv %s3445
        %v3447 = vmul.f32 %v2003, %v3446
        %v3448 = vmul.f32 %v2004, %v3446
        %v3449 = vmul.f32 %v2005, %v3446
        %v3450 = vmul.f32 %v2006, %v3446
        %v3451 = vmul.f32 %v2007, %v3446
        %v3452 = vmul.f32 %v2008, %v3446
        %v3459 = vrot.slane %v3447, 5
        %v3460 = vrot.slane %v3449, 5
        %v3461 = vsel %vm215, %v3459, %v3460
        %v3462 = vrot.slane %v3448, 5
        %v3463 = vrot.slane %v3450, 5
        %v3464 = vsel %vm215, %v3462, %v3463
        %v3465 = vrot.slane %v3451, 5
        %v3466 = vsel %vm215, %v3460, %v3465
        %v3467 = vrot.slane %v3452, 5
        %v3468 = vsel %vm215, %v3463, %v3467
        %3469 = vrot.lane.b32.xlu0 %v3461, 122
        %v3470 = vpop.permute.xlu0 %3469
        %3471 = vrot.lane.b32.xlu0 %v3464, 122
        %v3472 = vpop.permute.xlu0 %3471
        %3473 = vrot.lane.b32.xlu0 %v3466, 122
        %v3474 = vpop.permute.xlu0 %3473
        %3475 = vrot.lane.b32.xlu0 %v3468, 122
        %v3476 = vpop.permute.xlu0 %3475
        %v3477 = vsel %vm1657, %v3470, %v3472
        %v3478 = vsel %vm1657, %v3474, %v3476
        %v3481 = vadd.f32 %v3443, %v3477
        %v3482 = vadd.f32 %v3444, %v3478
        %s3483 = sld [smem:[#allocation7 + $0x61]]
        %v3484 = vstv %s3483
        %v3485 = vmul.f32 %v2003, %v3484
        %v3486 = vmul.f32 %v2004, %v3484
        %v3487 = vmul.f32 %v2005, %v3484
        %v3488 = vmul.f32 %v2006, %v3484
        %v3489 = vmul.f32 %v2007, %v3484
        %v3490 = vmul.f32 %v2008, %v3484
        %v3497 = vrot.slane %v3485, 6
        %v3498 = vrot.slane %v3487, 6
        %v3499 = vsel %vm358, %v3497, %v3498
        %v3500 = vrot.slane %v3486, 6
        %v3501 = vrot.slane %v3488, 6
        %v3502 = vsel %vm358, %v3500, %v3501
        %v3503 = vrot.slane %v3489, 6
        %v3504 = vsel %vm358, %v3498, %v3503
        %v3505 = vrot.slane %v3490, 6
        %v3506 = vsel %vm358, %v3501, %v3505
        %3507 = vrot.lane.b32.xlu0 %v3499, 122
        %v3508 = vpop.permute.xlu0 %3507
        %3509 = vrot.lane.b32.xlu0 %v3502, 122
        %v3510 = vpop.permute.xlu0 %3509
        %3511 = vrot.lane.b32.xlu0 %v3504, 122
        %v3512 = vpop.permute.xlu0 %3511
        %3513 = vrot.lane.b32.xlu0 %v3506, 122
        %v3514 = vpop.permute.xlu0 %3513
        %v3515 = vsel %vm1657, %v3508, %v3510
        %v3516 = vsel %vm1657, %v3512, %v3514
        %v3519 = vadd.f32 %v3481, %v3515
        %v3520 = vadd.f32 %v3482, %v3516
        %v3521 = vxor.u32 %v3519, 2147483648
        %v3522 = vxor.u32 %v3520, 2147483648
        %v3523 = vmul.f32 %v3521, 1.442695
        %v3524 = vpow.pop %v3523
        %v3525 = vmul.f32 %v3522, 1.442695
        %v3526 = vpow.pop %v3525
        %v3527 = vadd.f32 %v3524, 1.0
        %v3528 = vadd.f32 %v3526, 1.0
        %v3529 = vrcp.pop %v3527
        %v3530 = vmul.f32 1.0, %v3529
        %v3531 = vrcp.pop %v3528
        %v3532 = vmul.f32 1.0, %v3531
        %3533 = vst [vmem:[%s175] sm:$0xff] %v3530
        %3534 = vst [vmem:[%s175 + $0x8] sm:$0xff] %v3532
        %s3535 = sand.u32 %s75, 1
        %s3536 = scalar_lea.sflag [#allocation5], %s3535
        %s3537 = sand.u32 %s75, 1
        %s3538 = smul.addr %s3537, 16
        %s3539 = scalar_lea.vmem [#allocation8], %s3538
        // Predicated region
        $region37: #{tpu_custom_call.1} parent=27 // pred_check
          %p3540 = pneg %p85
        $region38: #{tpu_custom_call.1} parent=27 // pred_check_branch
          %3542 = sbr.rel (%p3540) target = $region40
        $region39: #{tpu_custom_call.1} parent=27 // pred_region
          %s3544 = ssub.s32 256, 256
          %3545 = vsyncadd %s3536, %s3544
          %s3546 = smul.addr %s20, 2
          %s3547 = smul.addr %s3546, 128
          %s3548 = scalar_lea.hbm %s2, %s3547
          %s3549 = sshll.u32 %s3539, 4
          %s3550 = int_to_ptr.vmem [resolvable:$true] %s3549
          %3555 = dma.vmem_to_hbm [thread:$0]  %s3550, 256, %s3548, %s3536, 128, 128, 8
        $region40: #{tpu_custom_call.1} parent=27 // pred_fallthru
          _
      $region28: #{tpu_custom_call.1} parent=5 // pred_fallthru
        _
      %p3556 = scmp.le.s32.totalorder 2, %s15
      // Predicated region
      $region41: #{tpu_custom_call.1} parent=5 // pred_check
        %p3557 = pneg %p3556
      $region42: #{tpu_custom_call.1} parent=5 // pred_check_branch
        %3559 = sbr.rel (%p3557) target = $region44
      $region43: #{tpu_custom_call.1} parent=5 // pred_region
        %s3560 = ssub.s32 %s15, 2
        // Predicated region
        $region45: #{tpu_custom_call.1} parent=43 // pred_check
          %p3561 = pneg %p91
        $region46: #{tpu_custom_call.1} parent=43 // pred_check_branch
          %3563 = sbr.rel (%p3561) target = $region48
        $region47: #{tpu_custom_call.1} parent=43 // pred_region
          %s3564 = sand.u32 %s76, 1
          %s3565 = scalar_lea.sflag [#allocation5], %s3564
          %s3566 = sand.u32 %s76, 1
          %s3567 = smul.addr %s3566, 16
          %s3568 = scalar_lea.vmem [#allocation8], %s3567
          %3569 = dma.done %s3565, 256
        $region48: #{tpu_custom_call.1} parent=43 // pred_fallthru
          _
      $region44: #{tpu_custom_call.1} parent=5 // pred_fallthru
        _
    $region6: #{tpu_custom_call.1} parent=1 // loop_footer
      %s19 = sadd.s32 1, %s15
    $region7: #{tpu_custom_call.1} parent=1 // loop_footer_branch
      %14 = sbr.rel target = $region3
    $region8: #{tpu_custom_call.1} parent=1 // loop_exit
      _
    %3570 = vsyncpa [#allocation4], 1
    %s3571 = scalar_lea.sflag [#allocation4], 1
    %3572 = vsyncpa %s3571, 1
    %3573 = vsyncpa [#allocation5], 1
    %s3574 = scalar_lea.sflag [#allocation5], 1
    %3575 = vsyncpa %s3574, 1
    %3576 = vsyncpa [#allocation6], 1
    %s3577 = scalar_lea.sflag [#allocation6], 1
    %3578 = vsyncpa %s3577, 1

</llo_original>
